<compile_context>
chip_gen: v6e
topology: v6e:2x2x1
jax: 0.10.0
libtpu: 0.0.40
codegen_flags: <defaults>
</compile_context>

<pallas_src>
import math
from functools import partial

import numpy as np
import jax
import jax.numpy as jnp
from jax import lax
from jax.experimental import pallas as pl
from jax.experimental.pallas import tpu as pltpu

EPS = 1e-6
NEG_INF = -1e9


# ------------------------- shared in-kernel LayerNorm ------------------------
# Matches the torch module: mean over last dim, unbiased std (N-1), eps added
# to std (NOT variance):  a_2 * (x - mean) / (std + eps) + b_2
def _layernorm(x, gamma, beta):
    d = x.shape[-1]
    mean = jnp.mean(x, axis=-1, keepdims=True)
    diff = x - mean
    var = jnp.sum(diff * diff, axis=-1, keepdims=True) * (1.0 / (d - 1))
    return gamma * diff / (jnp.sqrt(var) + EPS) + beta


# ---------------------- fully fused encoder kernel (one call) ----------------
def _encoder_kernel(x_ref, mask_ref,
                    wq_ref, bq_ref, wk_ref, bk_ref, wv_ref, bv_ref,
                    wo_ref, bo_ref, w1_ref, b1_ref, w2_ref, b2_ref,
                    ln1_g_ref, ln1_b_ref, ln2_g_ref, ln2_b_ref,
                    lnf_g_ref, lnf_b_ref,
                    o_ref, *, n_layers, n_heads, scale):
    S, D = x_ref.shape[1], x_ref.shape[2]
    x = x_ref[0]                                              # (S, D) f32

    # mask bias hoisted out of the layer/head loops (masked_fill(mask==0,-1e9))
    bias = jnp.where(mask_ref[0] == 0.0, NEG_INF, 0.0)        # (1, S) f32

    for _ in range(n_layers):      # all layers share params (clones deep-copy)
        # ---- sublayer 0: x = x + OutProj(SelfAttn(LN1(x), mask)) ----
        y = _layernorm(x, ln1_g_ref[...], ln1_b_ref[...]).astype(jnp.bfloat16)
        attn = jnp.zeros((S, D), jnp.float32)
        for h in range(n_heads):                              # static unroll
            qh = (jnp.dot(y, wq_ref[h], preferred_element_type=jnp.float32)
                  + bq_ref[h]).astype(jnp.bfloat16)           # (S, dk)
            kh = (jnp.dot(y, wk_ref[h], preferred_element_type=jnp.float32)
                  + bk_ref[h]).astype(jnp.bfloat16)           # (S, dk)
            vh = (jnp.dot(y, wv_ref[h], preferred_element_type=jnp.float32)
                  + bv_ref[h]).astype(jnp.bfloat16)           # (S, dk)
            s = lax.dot_general(qh, kh, (((1,), (1,)), ((), ())),
                                preferred_element_type=jnp.float32)
            s = s * scale + bias                              # (S, S) f32
            m = jnp.max(s, axis=-1, keepdims=True)
            p = jnp.exp(s - m)
            l = jnp.sum(p, axis=-1, keepdims=True)
            acc_h = jnp.dot(p.astype(jnp.bfloat16), vh,
                            preferred_element_type=jnp.float32)    # (S, dk)
            acc_h = acc_h * pl.reciprocal(l, approx=True)     # normalize (S,dk)
            # concat(heads) @ Wo == sum_h head_h @ Wo[h]  -> lane-dense (S, D)
            attn = attn + jnp.dot(acc_h.astype(jnp.bfloat16), wo_ref[h],
                                  preferred_element_type=jnp.float32)
        x = x + attn + bo_ref[...]                            # fused residual

        # ---- sublayer 1: x = x + FFN(LN2(x)) ----
        y = _layernorm(x, ln2_g_ref[...], ln2_b_ref[...]).astype(jnp.bfloat16)
        hdn = jnp.dot(y, w1_ref[...],
                      preferred_element_type=jnp.float32) + b1_ref[...]
        hdn = jnp.maximum(hdn, 0.0).astype(jnp.bfloat16)      # ReLU
        ffn = jnp.dot(hdn, w2_ref[...],
                      preferred_element_type=jnp.float32) + b2_ref[...]
        x = x + ffn                                           # fused residual

    # Encoder.norm (final LayerNorm)
    o_ref[0] = _layernorm(x, lnf_g_ref[...], lnf_b_ref[...])


def _wspec(shape):
    zeros = (0,) * len(shape)
    return pl.BlockSpec(shape, lambda b, _z=zeros: _z)        # VMEM-resident


def encoder_pallas(x, mask, params, n_layers, n_heads):
    B, S, D = x.shape
    H = n_heads
    dk = D // H
    F = params["w1"].shape[1]
    scale = 1.0 / math.sqrt(dk)
    kernel = partial(_encoder_kernel, n_layers=n_layers, n_heads=n_heads,
                     scale=scale)
    return pl.pallas_call(
        kernel,
        out_shape=jax.ShapeDtypeStruct((B, S, D), jnp.float32),
        grid=(B,),
        in_specs=[
            pl.BlockSpec((1, S, D), lambda b: (b, 0, 0)),     # x
            pl.BlockSpec((1, 1, S), lambda b: (b, 0, 0)),     # mask
            _wspec((H, D, dk)), _wspec((H, 1, dk)),           # wq, bq
            _wspec((H, D, dk)), _wspec((H, 1, dk)),           # wk, bk
            _wspec((H, D, dk)), _wspec((H, 1, dk)),           # wv, bv
            _wspec((H, dk, D)), _wspec((1, D)),               # wo, bo
            _wspec((D, F)), _wspec((1, F)),                   # w1, b1
            _wspec((F, D)), _wspec((1, D)),                   # w2, b2
            _wspec((1, D)), _wspec((1, D)),                   # ln1 g/b
            _wspec((1, D)), _wspec((1, D)),                   # ln2 g/b
            _wspec((1, D)), _wspec((1, D)),                   # lnf g/b
        ],
        out_specs=pl.BlockSpec((1, S, D), lambda b: (b, 0, 0)),
        compiler_params=pltpu.CompilerParams(
            dimension_semantics=("parallel",)),
    )(x, mask,
      params["wq"], params["bq"], params["wk"], params["bk"],
      params["wv"], params["bv"], params["wo"], params["bo"],
      params["w1"], params["b1"], params["w2"], params["b2"],
      params["ln1_g"], params["ln1_b"], params["ln2_g"], params["ln2_b"],
      params["lnf_g"], params["lnf_b"])


@partial(jax.jit, static_argnames=("n_layers", "n_heads"))
def encoder_forward(x, mask, params, n_layers, n_heads):
    """x: (B, S, D) f32; mask: (B, 1, S) f32 (1 = keep, 0 = masked)."""
    return encoder_pallas(x, mask, params, n_layers, n_heads)


# --------------------------------- parameters ---------------------------------
def init_params(key, d_model, n_heads, d_ff):
    dk = d_model // n_heads
    ks = jax.random.split(key, 6)
    s = 0.05
    W = lambda k, shape: (jax.random.normal(k, shape, jnp.float32) * s
                          ).astype(jnp.bfloat16)              # bf16 MXU weights
    z = lambda shape: jnp.zeros(shape, jnp.float32)
    one = lambda shape: jnp.ones(shape, jnp.float32)
    return {
        # per-head projection weights: head index is a LEADING dim -> no lane
        # slicing inside the kernel.
        "wq": W(ks[0], (n_heads, d_model, dk)), "bq": z((n_heads, 1, dk)),
        "wk": W(ks[1], (n_heads, d_model, dk)), "bk": z((n_heads, 1, dk)),
        "wv": W(ks[2], (n_heads, d_model, dk)), "bv": z((n_heads, 1, dk)),
        "wo": W(ks[3], (n_heads, dk, d_model)), "bo": z((1, d_model)),
        # position-wise feed forward
        "w1": W(ks[4], (d_model, d_ff)), "b1": z((1, d_ff)),
        "w2": W(ks[5], (d_ff, d_model)), "b2": z((1, d_model)),
        # LayerNorms (gamma=1, beta=0 like the module __init__)
        "ln1_g": one((1, d_model)), "ln1_b": z((1, d_model)),
        "ln2_g": one((1, d_model)), "ln2_b": z((1, d_model)),
        "lnf_g": one((1, d_model)), "lnf_b": z((1, d_model)),
    }


# --------------------------- pure-JAX reference check -------------------------
def encoder_reference(x, mask, params, n_layers, n_heads):
    B, S, D = x.shape
    dk = D // n_heads
    scale = 1.0 / math.sqrt(dk)
    f32 = lambda a: a.astype(jnp.float32)

    def ln(v, g, b):
        mean = v.mean(-1, keepdims=True)
        diff = v - mean
        var = (diff * diff).sum(-1, keepdims=True) / (D - 1)
        return g * diff / (jnp.sqrt(var) + EPS) + b

    bias = jnp.where(mask == 0.0, NEG_INF, 0.0)               # (B, 1, S)
    for _ in range(n_layers):
        y = ln(x, params["ln1_g"], params["ln1_b"])
        attn = jnp.zeros_like(x)
        for h in range(n_heads):
            q = y @ f32(params["wq"][h]) + params["bq"][h]
            k = y @ f32(params["wk"][h]) + params["bk"][h]
            v = y @ f32(params["wv"][h]) + params["bv"][h]
            s = jnp.einsum("bqd,bkd->bqk", q, k) * scale + bias
            p = jax.nn.softmax(s, axis=-1)
            attn = attn + jnp.einsum("bqk,bkd->bqd", p, v) @ f32(params["wo"][h])
        x = x + attn + params["bo"]
        y = ln(x, params["ln2_g"], params["ln2_b"])
        hdn = jnp.maximum(y @ f32(params["w1"]) + params["b1"], 0.0)
        x = x + hdn @ f32(params["w2"]) + params["b2"]
    return ln(x, params["lnf_g"], params["lnf_b"])


if __name__ == "__main__":
    B, S, D, H, D_FF, N_LAYERS = 2, 8, 32, 4, 64, 2

    key = jax.random.PRNGKey(0)
    kx, kp = jax.random.split(key)
    x = jax.random.normal(kx, (B, S, D), jnp.float32)

    # padding mask: batch 0 fully valid, batch 1 last 2 positions masked
    lens = jnp.array([8, 6], jnp.int32)
    mask = (jnp.arange(S)[None, :] < lens[:, None]).astype(jnp.float32)[:, None, :]

    params = init_params(kp, D, H, D_FF)

    out = encoder_forward(x, mask, params, n_layers=N_LAYERS, n_heads=H)
    jax.block_until_ready(out)
    assert out.shape == (B, S, D) and out.dtype == jnp.float32

    ref = encoder_reference(x, mask, params, N_LAYERS, H)
    assert np.allclose(np.asarray(out), np.asarray(ref), atol=5e-2, rtol=5e-2), (
        "kernel output does not match pure-JAX reference")

    print("KERNEL_OK")
</pallas_src>

<mosaic_0001>
module attributes {stable_mosaic.version = 11 : i64} {
  func.func @_encoder_kernel(%arg0: i32, %arg1: memref<1x8x32xf32, #tpu.memory_space<vmem>>, %arg2: memref<1x1x8xf32, #tpu.memory_space<vmem>>, %arg3: memref<4x32x8xbf16, #tpu.memory_space<vmem>>, %arg4: memref<4x1x8xf32, #tpu.memory_space<vmem>>, %arg5: memref<4x32x8xbf16, #tpu.memory_space<vmem>>, %arg6: memref<4x1x8xf32, #tpu.memory_space<vmem>>, %arg7: memref<4x32x8xbf16, #tpu.memory_space<vmem>>, %arg8: memref<4x1x8xf32, #tpu.memory_space<vmem>>, %arg9: memref<4x8x32xbf16, #tpu.memory_space<vmem>>, %arg10: memref<1x32xf32, #tpu.memory_space<vmem>>, %arg11: memref<32x64xbf16, #tpu.memory_space<vmem>>, %arg12: memref<1x64xf32, #tpu.memory_space<vmem>>, %arg13: memref<64x32xbf16, #tpu.memory_space<vmem>>, %arg14: memref<1x32xf32, #tpu.memory_space<vmem>>, %arg15: memref<1x32xf32, #tpu.memory_space<vmem>>, %arg16: memref<1x32xf32, #tpu.memory_space<vmem>>, %arg17: memref<1x32xf32, #tpu.memory_space<vmem>>, %arg18: memref<1x32xf32, #tpu.memory_space<vmem>>, %arg19: memref<1x32xf32, #tpu.memory_space<vmem>>, %arg20: memref<1x32xf32, #tpu.memory_space<vmem>>, %arg21: memref<1x8x32xf32, #tpu.memory_space<vmem>>) attributes {dimension_semantics = [#tpu.dimension_semantics<parallel>], iteration_bounds = array<i64: 2>, scalar_prefetch = 0 : i64, scratch_operands = 0 : i64, tpu.core_type = #tpu.core_type<tc>, window_params = [{transform_indices = @transform_0, window_bounds = array<i64: 1, 8, 32>}, {transform_indices = @transform_1, window_bounds = array<i64: 1, 1, 8>}, {pipeline_mode = #tpu.pipeline_mode<synchronous>, transform_indices = @transform_2, window_bounds = array<i64: 4, 32, 8>}, {pipeline_mode = #tpu.pipeline_mode<synchronous>, transform_indices = @transform_3, window_bounds = array<i64: 4, 1, 8>}, {pipeline_mode = #tpu.pipeline_mode<synchronous>, transform_indices = @transform_4, window_bounds = array<i64: 4, 32, 8>}, {pipeline_mode = #tpu.pipeline_mode<synchronous>, transform_indices = @transform_5, window_bounds = array<i64: 4, 1, 8>}, {pipeline_mode = #tpu.pipeline_mode<synchronous>, transform_indices = @transform_6, window_bounds = array<i64: 4, 32, 8>}, {pipeline_mode = #tpu.pipeline_mode<synchronous>, transform_indices = @transform_7, window_bounds = array<i64: 4, 1, 8>}, {pipeline_mode = #tpu.pipeline_mode<synchronous>, transform_indices = @transform_8, window_bounds = array<i64: 4, 8, 32>}, {pipeline_mode = #tpu.pipeline_mode<synchronous>, transform_indices = @transform_9, window_bounds = array<i64: 1, 32>}, {pipeline_mode = #tpu.pipeline_mode<synchronous>, transform_indices = @transform_10, window_bounds = array<i64: 32, 64>}, {pipeline_mode = #tpu.pipeline_mode<synchronous>, transform_indices = @transform_11, window_bounds = array<i64: 1, 64>}, {pipeline_mode = #tpu.pipeline_mode<synchronous>, transform_indices = @transform_12, window_bounds = array<i64: 64, 32>}, {pipeline_mode = #tpu.pipeline_mode<synchronous>, transform_indices = @transform_13, window_bounds = array<i64: 1, 32>}, {pipeline_mode = #tpu.pipeline_mode<synchronous>, transform_indices = @transform_14, window_bounds = array<i64: 1, 32>}, {pipeline_mode = #tpu.pipeline_mode<synchronous>, transform_indices = @transform_15, window_bounds = array<i64: 1, 32>}, {pipeline_mode = #tpu.pipeline_mode<synchronous>, transform_indices = @transform_16, window_bounds = array<i64: 1, 32>}, {pipeline_mode = #tpu.pipeline_mode<synchronous>, transform_indices = @transform_17, window_bounds = array<i64: 1, 32>}, {pipeline_mode = #tpu.pipeline_mode<synchronous>, transform_indices = @transform_18, window_bounds = array<i64: 1, 32>}, {pipeline_mode = #tpu.pipeline_mode<synchronous>, transform_indices = @transform_19, window_bounds = array<i64: 1, 32>}, {transform_indices = @transform_20, window_bounds = array<i64: 1, 8, 32>}]} {
    %c0 = arith.constant 0 : index
    %c0_0 = arith.constant 0 : index
    %c0_1 = arith.constant 0 : index
    %0 = vector.load %arg1[%c0, %c0_0, %c0_1] : memref<1x8x32xf32, #tpu.memory_space<vmem>>, vector<1x8x32xf32>
    %1 = vector.shape_cast %0 : vector<1x8x32xf32> to vector<8x32xf32>
    %c0_2 = arith.constant 0 : index
    %c0_3 = arith.constant 0 : index
    %c0_4 = arith.constant 0 : index
    %2 = vector.load %arg2[%c0_2, %c0_3, %c0_4] : memref<1x1x8xf32, #tpu.memory_space<vmem>>, vector<1x1x8xf32>
    %3 = vector.shape_cast %2 : vector<1x1x8xf32> to vector<1x8xf32>
    %cst = arith.constant 0.000000e+00 : f32
    %4 = vector.broadcast %cst : f32 to vector<1x8xf32>
    %5 = arith.cmpf oeq, %3, %4 : vector<1x8xf32>
    %cst_5 = arith.constant -1.000000e+09 : f32
    %cst_6 = arith.constant 0.000000e+00 : f32
    %6 = vector.broadcast %cst_5 : f32 to vector<1x8xf32>
    %7 = vector.broadcast %cst_6 : f32 to vector<1x8xf32>
    %8 = arith.select %5, %6, %7 : vector<1x8xi1>, vector<1x8xf32>
    %c0_7 = arith.constant 0 : index
    %c0_8 = arith.constant 0 : index
    %9 = vector.load %arg15[%c0_7, %c0_8] : memref<1x32xf32, #tpu.memory_space<vmem>>, vector<1x32xf32>
    %c0_9 = arith.constant 0 : index
    %c0_10 = arith.constant 0 : index
    %10 = vector.load %arg16[%c0_9, %c0_10] : memref<1x32xf32, #tpu.memory_space<vmem>>, vector<1x32xf32>
    %cst_11 = arith.constant dense<0.000000e+00> : vector<8xf32>
    %11 = vector.multi_reduction <add>, %1, %cst_11 [1] : vector<8x32xf32> to vector<8xf32>
    %12 = vector.shape_cast %11 : vector<8xf32> to vector<8x1xf32>
    %cst_12 = arith.constant 3.200000e+01 : f32
    %13 = vector.broadcast %cst_12 : f32 to vector<8x1xf32>
    %14 = arith.divf %12, %13 : vector<8x1xf32>
    %15 = vector.broadcast %14 : vector<8x1xf32> to vector<8x32xf32>
    %16 = arith.subf %1, %15 : vector<8x32xf32>
    %17 = arith.mulf %16, %16 : vector<8x32xf32>
    %cst_13 = arith.constant dense<0.000000e+00> : vector<8xf32>
    %18 = vector.multi_reduction <add>, %17, %cst_13 [1] : vector<8x32xf32> to vector<8xf32>
    %19 = vector.shape_cast %18 : vector<8xf32> to vector<8x1xf32>
    %cst_14 = arith.constant 0.0322580636 : f32
    %20 = vector.broadcast %cst_14 : f32 to vector<8x1xf32>
    %21 = arith.mulf %19, %20 : vector<8x1xf32>
    %22 = vector.broadcast %9 : vector<1x32xf32> to vector<8x32xf32>
    %23 = arith.mulf %22, %16 : vector<8x32xf32>
    %24 = math.sqrt %21 : vector<8x1xf32>
    %cst_15 = arith.constant 9.99999997E-7 : f32
    %25 = vector.broadcast %cst_15 : f32 to vector<8x1xf32>
    %26 = arith.addf %24, %25 : vector<8x1xf32>
    %27 = vector.broadcast %26 : vector<8x1xf32> to vector<8x32xf32>
    %28 = arith.divf %23, %27 : vector<8x32xf32>
    %29 = vector.broadcast %10 : vector<1x32xf32> to vector<8x32xf32>
    %30 = arith.addf %28, %29 : vector<8x32xf32>
    %31 = arith.truncf %30 : vector<8x32xf32> to vector<8x32xbf16>
    %cst_16 = arith.constant 0.000000e+00 : f32
    %32 = vector.broadcast %cst_16 : f32 to vector<8x32xf32>
    %c0_17 = arith.constant 0 : index
    %c0_18 = arith.constant 0 : index
    %c0_19 = arith.constant 0 : index
    %33 = vector.load %arg3[%c0_17, %c0_18, %c0_19] : memref<4x32x8xbf16, #tpu.memory_space<vmem>>, vector<1x32x8xbf16>
    %34 = vector.shape_cast %33 : vector<1x32x8xbf16> to vector<32x8xbf16>
    %cst_20 = arith.constant dense<0.000000e+00> : vector<8x8xf32>
    %35 = tpu.matmul %31, %34, %cst_20 {dimension_numbers = #tpu.dot_dimension_numbers<[1], [0], [0], [1], [0, 0, 1, 1], [], []>} : vector<8x32xbf16>, vector<32x8xbf16>, vector<8x8xf32> -> vector<8x8xf32>
    %c0_21 = arith.constant 0 : index
    %c0_22 = arith.constant 0 : index
    %c0_23 = arith.constant 0 : index
    %36 = vector.load %arg4[%c0_21, %c0_22, %c0_23] : memref<4x1x8xf32, #tpu.memory_space<vmem>>, vector<1x1x8xf32>
    %37 = vector.shape_cast %36 : vector<1x1x8xf32> to vector<1x8xf32>
    %38 = vector.broadcast %37 : vector<1x8xf32> to vector<8x8xf32>
    %39 = arith.addf %35, %38 : vector<8x8xf32>
    %40 = arith.truncf %39 : vector<8x8xf32> to vector<8x8xbf16>
    %c0_24 = arith.constant 0 : index
    %c0_25 = arith.constant 0 : index
    %c0_26 = arith.constant 0 : index
    %41 = vector.load %arg5[%c0_24, %c0_25, %c0_26] : memref<4x32x8xbf16, #tpu.memory_space<vmem>>, vector<1x32x8xbf16>
    %42 = vector.shape_cast %41 : vector<1x32x8xbf16> to vector<32x8xbf16>
    %cst_27 = arith.constant dense<0.000000e+00> : vector<8x8xf32>
    %43 = tpu.matmul %31, %42, %cst_27 {dimension_numbers = #tpu.dot_dimension_numbers<[1], [0], [0], [1], [0, 0, 1, 1], [], []>} : vector<8x32xbf16>, vector<32x8xbf16>, vector<8x8xf32> -> vector<8x8xf32>
    %c0_28 = arith.constant 0 : index
    %c0_29 = arith.constant 0 : index
    %c0_30 = arith.constant 0 : index
    %44 = vector.load %arg6[%c0_28, %c0_29, %c0_30] : memref<4x1x8xf32, #tpu.memory_space<vmem>>, vector<1x1x8xf32>
    %45 = vector.shape_cast %44 : vector<1x1x8xf32> to vector<1x8xf32>
    %46 = vector.broadcast %45 : vector<1x8xf32> to vector<8x8xf32>
    %47 = arith.addf %43, %46 : vector<8x8xf32>
    %48 = arith.truncf %47 : vector<8x8xf32> to vector<8x8xbf16>
    %c0_31 = arith.constant 0 : index
    %c0_32 = arith.constant 0 : index
    %c0_33 = arith.constant 0 : index
    %49 = vector.load %arg7[%c0_31, %c0_32, %c0_33] : memref<4x32x8xbf16, #tpu.memory_space<vmem>>, vector<1x32x8xbf16>
    %50 = vector.shape_cast %49 : vector<1x32x8xbf16> to vector<32x8xbf16>
    %cst_34 = arith.constant dense<0.000000e+00> : vector<8x8xf32>
    %51 = tpu.matmul %31, %50, %cst_34 {dimension_numbers = #tpu.dot_dimension_numbers<[1], [0], [0], [1], [0, 0, 1, 1], [], []>} : vector<8x32xbf16>, vector<32x8xbf16>, vector<8x8xf32> -> vector<8x8xf32>
    %c0_35 = arith.constant 0 : index
    %c0_36 = arith.constant 0 : index
    %c0_37 = arith.constant 0 : index
    %52 = vector.load %arg8[%c0_35, %c0_36, %c0_37] : memref<4x1x8xf32, #tpu.memory_space<vmem>>, vector<1x1x8xf32>
    %53 = vector.shape_cast %52 : vector<1x1x8xf32> to vector<1x8xf32>
    %54 = vector.broadcast %53 : vector<1x8xf32> to vector<8x8xf32>
    %55 = arith.addf %51, %54 : vector<8x8xf32>
    %56 = arith.truncf %55 : vector<8x8xf32> to vector<8x8xbf16>
    %cst_38 = arith.constant dense<0.000000e+00> : vector<8x8xf32>
    %57 = tpu.matmul %40, %48, %cst_38 {dimension_numbers = #tpu.dot_dimension_numbers<[1], [1], [0], [0], [0, 0, 1, 0], [], []>} : vector<8x8xbf16>, vector<8x8xbf16>, vector<8x8xf32> -> vector<8x8xf32>
    %cst_39 = arith.constant 0.353553385 : f32
    %58 = vector.broadcast %cst_39 : f32 to vector<8x8xf32>
    %59 = arith.mulf %57, %58 : vector<8x8xf32>
    %60 = vector.broadcast %8 : vector<1x8xf32> to vector<8x8xf32>
    %61 = arith.addf %59, %60 : vector<8x8xf32>
    %cst_40 = arith.constant dense<0xFF800000> : vector<8xf32>
    %62 = vector.multi_reduction <maximumf>, %61, %cst_40 [1] : vector<8x8xf32> to vector<8xf32>
    %63 = vector.shape_cast %62 : vector<8xf32> to vector<8x1xf32>
    %64 = vector.broadcast %63 : vector<8x1xf32> to vector<8x8xf32>
    %65 = arith.subf %61, %64 : vector<8x8xf32>
    %66 = math.exp %65 : vector<8x8xf32>
    %cst_41 = arith.constant dense<0.000000e+00> : vector<8xf32>
    %67 = vector.multi_reduction <add>, %66, %cst_41 [1] : vector<8x8xf32> to vector<8xf32>
    %68 = vector.shape_cast %67 : vector<8xf32> to vector<8x1xf32>
    %69 = arith.truncf %66 : vector<8x8xf32> to vector<8x8xbf16>
    %cst_42 = arith.constant dense<0.000000e+00> : vector<8x8xf32>
    %70 = tpu.matmul %69, %56, %cst_42 {dimension_numbers = #tpu.dot_dimension_numbers<[1], [0], [0], [1], [0, 0, 1, 1], [], []>} : vector<8x8xbf16>, vector<8x8xbf16>, vector<8x8xf32> -> vector<8x8xf32>
    %71 = tpu.reciprocal %68 {approx = true} : vector<8x1xf32> -> vector<8x1xf32>
    %72 = vector.broadcast %71 : vector<8x1xf32> to vector<8x8xf32>
    %73 = arith.mulf %70, %72 : vector<8x8xf32>
    %74 = arith.truncf %73 : vector<8x8xf32> to vector<8x8xbf16>
    %c0_43 = arith.constant 0 : index
    %c0_44 = arith.constant 0 : index
    %c0_45 = arith.constant 0 : index
    %75 = vector.load %arg9[%c0_43, %c0_44, %c0_45] : memref<4x8x32xbf16, #tpu.memory_space<vmem>>, vector<1x8x32xbf16>
    %76 = vector.shape_cast %75 : vector<1x8x32xbf16> to vector<8x32xbf16>
    %cst_46 = arith.constant dense<0.000000e+00> : vector<8x32xf32>
    %77 = tpu.matmul %74, %76, %cst_46 {dimension_numbers = #tpu.dot_dimension_numbers<[1], [0], [0], [1], [0, 0, 1, 1], [], []>} : vector<8x8xbf16>, vector<8x32xbf16>, vector<8x32xf32> -> vector<8x32xf32>
    %78 = arith.addf %32, %77 : vector<8x32xf32>
    %c1 = arith.constant 1 : index
    %c0_47 = arith.constant 0 : index
    %c0_48 = arith.constant 0 : index
    %79 = vector.load %arg3[%c1, %c0_47, %c0_48] : memref<4x32x8xbf16, #tpu.memory_space<vmem>>, vector<1x32x8xbf16>
    %80 = vector.shape_cast %79 : vector<1x32x8xbf16> to vector<32x8xbf16>
    %cst_49 = arith.constant dense<0.000000e+00> : vector<8x8xf32>
    %81 = tpu.matmul %31, %80, %cst_49 {dimension_numbers = #tpu.dot_dimension_numbers<[1], [0], [0], [1], [0, 0, 1, 1], [], []>} : vector<8x32xbf16>, vector<32x8xbf16>, vector<8x8xf32> -> vector<8x8xf32>
    %c1_50 = arith.constant 1 : index
    %c0_51 = arith.constant 0 : index
    %c0_52 = arith.constant 0 : index
    %82 = vector.load %arg4[%c1_50, %c0_51, %c0_52] : memref<4x1x8xf32, #tpu.memory_space<vmem>>, vector<1x1x8xf32>
    %83 = vector.shape_cast %82 : vector<1x1x8xf32> to vector<1x8xf32>
    %84 = vector.broadcast %83 : vector<1x8xf32> to vector<8x8xf32>
    %85 = arith.addf %81, %84 : vector<8x8xf32>
    %86 = arith.truncf %85 : vector<8x8xf32> to vector<8x8xbf16>
    %c1_53 = arith.constant 1 : index
    %c0_54 = arith.constant 0 : index
    %c0_55 = arith.constant 0 : index
    %87 = vector.load %arg5[%c1_53, %c0_54, %c0_55] : memref<4x32x8xbf16, #tpu.memory_space<vmem>>, vector<1x32x8xbf16>
    %88 = vector.shape_cast %87 : vector<1x32x8xbf16> to vector<32x8xbf16>
    %cst_56 = arith.constant dense<0.000000e+00> : vector<8x8xf32>
    %89 = tpu.matmul %31, %88, %cst_56 {dimension_numbers = #tpu.dot_dimension_numbers<[1], [0], [0], [1], [0, 0, 1, 1], [], []>} : vector<8x32xbf16>, vector<32x8xbf16>, vector<8x8xf32> -> vector<8x8xf32>
    %c1_57 = arith.constant 1 : index
    %c0_58 = arith.constant 0 : index
    %c0_59 = arith.constant 0 : index
    %90 = vector.load %arg6[%c1_57, %c0_58, %c0_59] : memref<4x1x8xf32, #tpu.memory_space<vmem>>, vector<1x1x8xf32>
    %91 = vector.shape_cast %90 : vector<1x1x8xf32> to vector<1x8xf32>
    %92 = vector.broadcast %91 : vector<1x8xf32> to vector<8x8xf32>
    %93 = arith.addf %89, %92 : vector<8x8xf32>
    %94 = arith.truncf %93 : vector<8x8xf32> to vector<8x8xbf16>
    %c1_60 = arith.constant 1 : index
    %c0_61 = arith.constant 0 : index
    %c0_62 = arith.constant 0 : index
    %95 = vector.load %arg7[%c1_60, %c0_61, %c0_62] : memref<4x32x8xbf16, #tpu.memory_space<vmem>>, vector<1x32x8xbf16>
    %96 = vector.shape_cast %95 : vector<1x32x8xbf16> to vector<32x8xbf16>
    %cst_63 = arith.constant dense<0.000000e+00> : vector<8x8xf32>
    %97 = tpu.matmul %31, %96, %cst_63 {dimension_numbers = #tpu.dot_dimension_numbers<[1], [0], [0], [1], [0, 0, 1, 1], [], []>} : vector<8x32xbf16>, vector<32x8xbf16>, vector<8x8xf32> -> vector<8x8xf32>
    %c1_64 = arith.constant 1 : index
    %c0_65 = arith.constant 0 : index
    %c0_66 = arith.constant 0 : index
    %98 = vector.load %arg8[%c1_64, %c0_65, %c0_66] : memref<4x1x8xf32, #tpu.memory_space<vmem>>, vector<1x1x8xf32>
    %99 = vector.shape_cast %98 : vector<1x1x8xf32> to vector<1x8xf32>
    %100 = vector.broadcast %99 : vector<1x8xf32> to vector<8x8xf32>
    %101 = arith.addf %97, %100 : vector<8x8xf32>
    %102 = arith.truncf %101 : vector<8x8xf32> to vector<8x8xbf16>
    %cst_67 = arith.constant dense<0.000000e+00> : vector<8x8xf32>
    %103 = tpu.matmul %86, %94, %cst_67 {dimension_numbers = #tpu.dot_dimension_numbers<[1], [1], [0], [0], [0, 0, 1, 0], [], []>} : vector<8x8xbf16>, vector<8x8xbf16>, vector<8x8xf32> -> vector<8x8xf32>
    %cst_68 = arith.constant 0.353553385 : f32
    %104 = vector.broadcast %cst_68 : f32 to vector<8x8xf32>
    %105 = arith.mulf %103, %104 : vector<8x8xf32>
    %106 = vector.broadcast %8 : vector<1x8xf32> to vector<8x8xf32>
    %107 = arith.addf %105, %106 : vector<8x8xf32>
    %cst_69 = arith.constant dense<0xFF800000> : vector<8xf32>
    %108 = vector.multi_reduction <maximumf>, %107, %cst_69 [1] : vector<8x8xf32> to vector<8xf32>
    %109 = vector.shape_cast %108 : vector<8xf32> to vector<8x1xf32>
    %110 = vector.broadcast %109 : vector<8x1xf32> to vector<8x8xf32>
    %111 = arith.subf %107, %110 : vector<8x8xf32>
    %112 = math.exp %111 : vector<8x8xf32>
    %cst_70 = arith.constant dense<0.000000e+00> : vector<8xf32>
    %113 = vector.multi_reduction <add>, %112, %cst_70 [1] : vector<8x8xf32> to vector<8xf32>
    %114 = vector.shape_cast %113 : vector<8xf32> to vector<8x1xf32>
    %115 = arith.truncf %112 : vector<8x8xf32> to vector<8x8xbf16>
    %cst_71 = arith.constant dense<0.000000e+00> : vector<8x8xf32>
    %116 = tpu.matmul %115, %102, %cst_71 {dimension_numbers = #tpu.dot_dimension_numbers<[1], [0], [0], [1], [0, 0, 1, 1], [], []>} : vector<8x8xbf16>, vector<8x8xbf16>, vector<8x8xf32> -> vector<8x8xf32>
    %117 = tpu.reciprocal %114 {approx = true} : vector<8x1xf32> -> vector<8x1xf32>
    %118 = vector.broadcast %117 : vector<8x1xf32> to vector<8x8xf32>
    %119 = arith.mulf %116, %118 : vector<8x8xf32>
    %120 = arith.truncf %119 : vector<8x8xf32> to vector<8x8xbf16>
    %c1_72 = arith.constant 1 : index
    %c0_73 = arith.constant 0 : index
    %c0_74 = arith.constant 0 : index
    %121 = vector.load %arg9[%c1_72, %c0_73, %c0_74] : memref<4x8x32xbf16, #tpu.memory_space<vmem>>, vector<1x8x32xbf16>
    %122 = vector.shape_cast %121 : vector<1x8x32xbf16> to vector<8x32xbf16>
    %cst_75 = arith.constant dense<0.000000e+00> : vector<8x32xf32>
    %123 = tpu.matmul %120, %122, %cst_75 {dimension_numbers = #tpu.dot_dimension_numbers<[1], [0], [0], [1], [0, 0, 1, 1], [], []>} : vector<8x8xbf16>, vector<8x32xbf16>, vector<8x32xf32> -> vector<8x32xf32>
    %124 = arith.addf %78, %123 : vector<8x32xf32>
    %c2 = arith.constant 2 : index
    %c0_76 = arith.constant 0 : index
    %c0_77 = arith.constant 0 : index
    %125 = vector.load %arg3[%c2, %c0_76, %c0_77] : memref<4x32x8xbf16, #tpu.memory_space<vmem>>, vector<1x32x8xbf16>
    %126 = vector.shape_cast %125 : vector<1x32x8xbf16> to vector<32x8xbf16>
    %cst_78 = arith.constant dense<0.000000e+00> : vector<8x8xf32>
    %127 = tpu.matmul %31, %126, %cst_78 {dimension_numbers = #tpu.dot_dimension_numbers<[1], [0], [0], [1], [0, 0, 1, 1], [], []>} : vector<8x32xbf16>, vector<32x8xbf16>, vector<8x8xf32> -> vector<8x8xf32>
    %c2_79 = arith.constant 2 : index
    %c0_80 = arith.constant 0 : index
    %c0_81 = arith.constant 0 : index
    %128 = vector.load %arg4[%c2_79, %c0_80, %c0_81] : memref<4x1x8xf32, #tpu.memory_space<vmem>>, vector<1x1x8xf32>
    %129 = vector.shape_cast %128 : vector<1x1x8xf32> to vector<1x8xf32>
    %130 = vector.broadcast %129 : vector<1x8xf32> to vector<8x8xf32>
    %131 = arith.addf %127, %130 : vector<8x8xf32>
    %132 = arith.truncf %131 : vector<8x8xf32> to vector<8x8xbf16>
    %c2_82 = arith.constant 2 : index
    %c0_83 = arith.constant 0 : index
    %c0_84 = arith.constant 0 : index
    %133 = vector.load %arg5[%c2_82, %c0_83, %c0_84] : memref<4x32x8xbf16, #tpu.memory_space<vmem>>, vector<1x32x8xbf16>
    %134 = vector.shape_cast %133 : vector<1x32x8xbf16> to vector<32x8xbf16>
    %cst_85 = arith.constant dense<0.000000e+00> : vector<8x8xf32>
    %135 = tpu.matmul %31, %134, %cst_85 {dimension_numbers = #tpu.dot_dimension_numbers<[1], [0], [0], [1], [0, 0, 1, 1], [], []>} : vector<8x32xbf16>, vector<32x8xbf16>, vector<8x8xf32> -> vector<8x8xf32>
    %c2_86 = arith.constant 2 : index
    %c0_87 = arith.constant 0 : index
    %c0_88 = arith.constant 0 : index
    %136 = vector.load %arg6[%c2_86, %c0_87, %c0_88] : memref<4x1x8xf32, #tpu.memory_space<vmem>>, vector<1x1x8xf32>
    %137 = vector.shape_cast %136 : vector<1x1x8xf32> to vector<1x8xf32>
    %138 = vector.broadcast %137 : vector<1x8xf32> to vector<8x8xf32>
    %139 = arith.addf %135, %138 : vector<8x8xf32>
    %140 = arith.truncf %139 : vector<8x8xf32> to vector<8x8xbf16>
    %c2_89 = arith.constant 2 : index
    %c0_90 = arith.constant 0 : index
    %c0_91 = arith.constant 0 : index
    %141 = vector.load %arg7[%c2_89, %c0_90, %c0_91] : memref<4x32x8xbf16, #tpu.memory_space<vmem>>, vector<1x32x8xbf16>
    %142 = vector.shape_cast %141 : vector<1x32x8xbf16> to vector<32x8xbf16>
    %cst_92 = arith.constant dense<0.000000e+00> : vector<8x8xf32>
    %143 = tpu.matmul %31, %142, %cst_92 {dimension_numbers = #tpu.dot_dimension_numbers<[1], [0], [0], [1], [0, 0, 1, 1], [], []>} : vector<8x32xbf16>, vector<32x8xbf16>, vector<8x8xf32> -> vector<8x8xf32>
    %c2_93 = arith.constant 2 : index
    %c0_94 = arith.constant 0 : index
    %c0_95 = arith.constant 0 : index
    %144 = vector.load %arg8[%c2_93, %c0_94, %c0_95] : memref<4x1x8xf32, #tpu.memory_space<vmem>>, vector<1x1x8xf32>
    %145 = vector.shape_cast %144 : vector<1x1x8xf32> to vector<1x8xf32>
    %146 = vector.broadcast %145 : vector<1x8xf32> to vector<8x8xf32>
    %147 = arith.addf %143, %146 : vector<8x8xf32>
    %148 = arith.truncf %147 : vector<8x8xf32> to vector<8x8xbf16>
    %cst_96 = arith.constant dense<0.000000e+00> : vector<8x8xf32>
    %149 = tpu.matmul %132, %140, %cst_96 {dimension_numbers = #tpu.dot_dimension_numbers<[1], [1], [0], [0], [0, 0, 1, 0], [], []>} : vector<8x8xbf16>, vector<8x8xbf16>, vector<8x8xf32> -> vector<8x8xf32>
    %cst_97 = arith.constant 0.353553385 : f32
    %150 = vector.broadcast %cst_97 : f32 to vector<8x8xf32>
    %151 = arith.mulf %149, %150 : vector<8x8xf32>
    %152 = vector.broadcast %8 : vector<1x8xf32> to vector<8x8xf32>
    %153 = arith.addf %151, %152 : vector<8x8xf32>
    %cst_98 = arith.constant dense<0xFF800000> : vector<8xf32>
    %154 = vector.multi_reduction <maximumf>, %153, %cst_98 [1] : vector<8x8xf32> to vector<8xf32>
    %155 = vector.shape_cast %154 : vector<8xf32> to vector<8x1xf32>
    %156 = vector.broadcast %155 : vector<8x1xf32> to vector<8x8xf32>
    %157 = arith.subf %153, %156 : vector<8x8xf32>
    %158 = math.exp %157 : vector<8x8xf32>
    %cst_99 = arith.constant dense<0.000000e+00> : vector<8xf32>
    %159 = vector.multi_reduction <add>, %158, %cst_99 [1] : vector<8x8xf32> to vector<8xf32>
    %160 = vector.shape_cast %159 : vector<8xf32> to vector<8x1xf32>
    %161 = arith.truncf %158 : vector<8x8xf32> to vector<8x8xbf16>
    %cst_100 = arith.constant dense<0.000000e+00> : vector<8x8xf32>
    %162 = tpu.matmul %161, %148, %cst_100 {dimension_numbers = #tpu.dot_dimension_numbers<[1], [0], [0], [1], [0, 0, 1, 1], [], []>} : vector<8x8xbf16>, vector<8x8xbf16>, vector<8x8xf32> -> vector<8x8xf32>
    %163 = tpu.reciprocal %160 {approx = true} : vector<8x1xf32> -> vector<8x1xf32>
    %164 = vector.broadcast %163 : vector<8x1xf32> to vector<8x8xf32>
    %165 = arith.mulf %162, %164 : vector<8x8xf32>
    %166 = arith.truncf %165 : vector<8x8xf32> to vector<8x8xbf16>
    %c2_101 = arith.constant 2 : index
    %c0_102 = arith.constant 0 : index
    %c0_103 = arith.constant 0 : index
    %167 = vector.load %arg9[%c2_101, %c0_102, %c0_103] : memref<4x8x32xbf16, #tpu.memory_space<vmem>>, vector<1x8x32xbf16>
    %168 = vector.shape_cast %167 : vector<1x8x32xbf16> to vector<8x32xbf16>
    %cst_104 = arith.constant dense<0.000000e+00> : vector<8x32xf32>
    %169 = tpu.matmul %166, %168, %cst_104 {dimension_numbers = #tpu.dot_dimension_numbers<[1], [0], [0], [1], [0, 0, 1, 1], [], []>} : vector<8x8xbf16>, vector<8x32xbf16>, vector<8x32xf32> -> vector<8x32xf32>
    %170 = arith.addf %124, %169 : vector<8x32xf32>
    %c3 = arith.constant 3 : index
    %c0_105 = arith.constant 0 : index
    %c0_106 = arith.constant 0 : index
    %171 = vector.load %arg3[%c3, %c0_105, %c0_106] : memref<4x32x8xbf16, #tpu.memory_space<vmem>>, vector<1x32x8xbf16>
    %172 = vector.shape_cast %171 : vector<1x32x8xbf16> to vector<32x8xbf16>
    %cst_107 = arith.constant dense<0.000000e+00> : vector<8x8xf32>
    %173 = tpu.matmul %31, %172, %cst_107 {dimension_numbers = #tpu.dot_dimension_numbers<[1], [0], [0], [1], [0, 0, 1, 1], [], []>} : vector<8x32xbf16>, vector<32x8xbf16>, vector<8x8xf32> -> vector<8x8xf32>
    %c3_108 = arith.constant 3 : index
    %c0_109 = arith.constant 0 : index
    %c0_110 = arith.constant 0 : index
    %174 = vector.load %arg4[%c3_108, %c0_109, %c0_110] : memref<4x1x8xf32, #tpu.memory_space<vmem>>, vector<1x1x8xf32>
    %175 = vector.shape_cast %174 : vector<1x1x8xf32> to vector<1x8xf32>
    %176 = vector.broadcast %175 : vector<1x8xf32> to vector<8x8xf32>
    %177 = arith.addf %173, %176 : vector<8x8xf32>
    %178 = arith.truncf %177 : vector<8x8xf32> to vector<8x8xbf16>
    %c3_111 = arith.constant 3 : index
    %c0_112 = arith.constant 0 : index
    %c0_113 = arith.constant 0 : index
    %179 = vector.load %arg5[%c3_111, %c0_112, %c0_113] : memref<4x32x8xbf16, #tpu.memory_space<vmem>>, vector<1x32x8xbf16>
    %180 = vector.shape_cast %179 : vector<1x32x8xbf16> to vector<32x8xbf16>
    %cst_114 = arith.constant dense<0.000000e+00> : vector<8x8xf32>
    %181 = tpu.matmul %31, %180, %cst_114 {dimension_numbers = #tpu.dot_dimension_numbers<[1], [0], [0], [1], [0, 0, 1, 1], [], []>} : vector<8x32xbf16>, vector<32x8xbf16>, vector<8x8xf32> -> vector<8x8xf32>
    %c3_115 = arith.constant 3 : index
    %c0_116 = arith.constant 0 : index
    %c0_117 = arith.constant 0 : index
    %182 = vector.load %arg6[%c3_115, %c0_116, %c0_117] : memref<4x1x8xf32, #tpu.memory_space<vmem>>, vector<1x1x8xf32>
    %183 = vector.shape_cast %182 : vector<1x1x8xf32> to vector<1x8xf32>
    %184 = vector.broadcast %183 : vector<1x8xf32> to vector<8x8xf32>
    %185 = arith.addf %181, %184 : vector<8x8xf32>
    %186 = arith.truncf %185 : vector<8x8xf32> to vector<8x8xbf16>
    %c3_118 = arith.constant 3 : index
    %c0_119 = arith.constant 0 : index
    %c0_120 = arith.constant 0 : index
    %187 = vector.load %arg7[%c3_118, %c0_119, %c0_120] : memref<4x32x8xbf16, #tpu.memory_space<vmem>>, vector<1x32x8xbf16>
    %188 = vector.shape_cast %187 : vector<1x32x8xbf16> to vector<32x8xbf16>
    %cst_121 = arith.constant dense<0.000000e+00> : vector<8x8xf32>
    %189 = tpu.matmul %31, %188, %cst_121 {dimension_numbers = #tpu.dot_dimension_numbers<[1], [0], [0], [1], [0, 0, 1, 1], [], []>} : vector<8x32xbf16>, vector<32x8xbf16>, vector<8x8xf32> -> vector<8x8xf32>
    %c3_122 = arith.constant 3 : index
    %c0_123 = arith.constant 0 : index
    %c0_124 = arith.constant 0 : index
    %190 = vector.load %arg8[%c3_122, %c0_123, %c0_124] : memref<4x1x8xf32, #tpu.memory_space<vmem>>, vector<1x1x8xf32>
    %191 = vector.shape_cast %190 : vector<1x1x8xf32> to vector<1x8xf32>
    %192 = vector.broadcast %191 : vector<1x8xf32> to vector<8x8xf32>
    %193 = arith.addf %189, %192 : vector<8x8xf32>
    %194 = arith.truncf %193 : vector<8x8xf32> to vector<8x8xbf16>
    %cst_125 = arith.constant dense<0.000000e+00> : vector<8x8xf32>
    %195 = tpu.matmul %178, %186, %cst_125 {dimension_numbers = #tpu.dot_dimension_numbers<[1], [1], [0], [0], [0, 0, 1, 0], [], []>} : vector<8x8xbf16>, vector<8x8xbf16>, vector<8x8xf32> -> vector<8x8xf32>
    %cst_126 = arith.constant 0.353553385 : f32
    %196 = vector.broadcast %cst_126 : f32 to vector<8x8xf32>
    %197 = arith.mulf %195, %196 : vector<8x8xf32>
    %198 = vector.broadcast %8 : vector<1x8xf32> to vector<8x8xf32>
    %199 = arith.addf %197, %198 : vector<8x8xf32>
    %cst_127 = arith.constant dense<0xFF800000> : vector<8xf32>
    %200 = vector.multi_reduction <maximumf>, %199, %cst_127 [1] : vector<8x8xf32> to vector<8xf32>
    %201 = vector.shape_cast %200 : vector<8xf32> to vector<8x1xf32>
    %202 = vector.broadcast %201 : vector<8x1xf32> to vector<8x8xf32>
    %203 = arith.subf %199, %202 : vector<8x8xf32>
    %204 = math.exp %203 : vector<8x8xf32>
    %cst_128 = arith.constant dense<0.000000e+00> : vector<8xf32>
    %205 = vector.multi_reduction <add>, %204, %cst_128 [1] : vector<8x8xf32> to vector<8xf32>
    %206 = vector.shape_cast %205 : vector<8xf32> to vector<8x1xf32>
    %207 = arith.truncf %204 : vector<8x8xf32> to vector<8x8xbf16>
    %cst_129 = arith.constant dense<0.000000e+00> : vector<8x8xf32>
    %208 = tpu.matmul %207, %194, %cst_129 {dimension_numbers = #tpu.dot_dimension_numbers<[1], [0], [0], [1], [0, 0, 1, 1], [], []>} : vector<8x8xbf16>, vector<8x8xbf16>, vector<8x8xf32> -> vector<8x8xf32>
    %209 = tpu.reciprocal %206 {approx = true} : vector<8x1xf32> -> vector<8x1xf32>
    %210 = vector.broadcast %209 : vector<8x1xf32> to vector<8x8xf32>
    %211 = arith.mulf %208, %210 : vector<8x8xf32>
    %212 = arith.truncf %211 : vector<8x8xf32> to vector<8x8xbf16>
    %c3_130 = arith.constant 3 : index
    %c0_131 = arith.constant 0 : index
    %c0_132 = arith.constant 0 : index
    %213 = vector.load %arg9[%c3_130, %c0_131, %c0_132] : memref<4x8x32xbf16, #tpu.memory_space<vmem>>, vector<1x8x32xbf16>
    %214 = vector.shape_cast %213 : vector<1x8x32xbf16> to vector<8x32xbf16>
    %cst_133 = arith.constant dense<0.000000e+00> : vector<8x32xf32>
    %215 = tpu.matmul %212, %214, %cst_133 {dimension_numbers = #tpu.dot_dimension_numbers<[1], [0], [0], [1], [0, 0, 1, 1], [], []>} : vector<8x8xbf16>, vector<8x32xbf16>, vector<8x32xf32> -> vector<8x32xf32>
    %216 = arith.addf %170, %215 : vector<8x32xf32>
    %217 = arith.addf %1, %216 : vector<8x32xf32>
    %c0_134 = arith.constant 0 : index
    %c0_135 = arith.constant 0 : index
    %218 = vector.load %arg10[%c0_134, %c0_135] : memref<1x32xf32, #tpu.memory_space<vmem>>, vector<1x32xf32>
    %219 = vector.broadcast %218 : vector<1x32xf32> to vector<8x32xf32>
    %220 = arith.addf %217, %219 : vector<8x32xf32>
    %c0_136 = arith.constant 0 : index
    %c0_137 = arith.constant 0 : index
    %221 = vector.load %arg17[%c0_136, %c0_137] : memref<1x32xf32, #tpu.memory_space<vmem>>, vector<1x32xf32>
    %c0_138 = arith.constant 0 : index
    %c0_139 = arith.constant 0 : index
    %222 = vector.load %arg18[%c0_138, %c0_139] : memref<1x32xf32, #tpu.memory_space<vmem>>, vector<1x32xf32>
    %cst_140 = arith.constant dense<0.000000e+00> : vector<8xf32>
    %223 = vector.multi_reduction <add>, %220, %cst_140 [1] : vector<8x32xf32> to vector<8xf32>
    %224 = vector.shape_cast %223 : vector<8xf32> to vector<8x1xf32>
    %cst_141 = arith.constant 3.200000e+01 : f32
    %225 = vector.broadcast %cst_141 : f32 to vector<8x1xf32>
    %226 = arith.divf %224, %225 : vector<8x1xf32>
    %227 = vector.broadcast %226 : vector<8x1xf32> to vector<8x32xf32>
    %228 = arith.subf %220, %227 : vector<8x32xf32>
    %229 = arith.mulf %228, %228 : vector<8x32xf32>
    %cst_142 = arith.constant dense<0.000000e+00> : vector<8xf32>
    %230 = vector.multi_reduction <add>, %229, %cst_142 [1] : vector<8x32xf32> to vector<8xf32>
    %231 = vector.shape_cast %230 : vector<8xf32> to vector<8x1xf32>
    %cst_143 = arith.constant 0.0322580636 : f32
    %232 = vector.broadcast %cst_143 : f32 to vector<8x1xf32>
    %233 = arith.mulf %231, %232 : vector<8x1xf32>
    %234 = vector.broadcast %221 : vector<1x32xf32> to vector<8x32xf32>
    %235 = arith.mulf %234, %228 : vector<8x32xf32>
    %236 = math.sqrt %233 : vector<8x1xf32>
    %cst_144 = arith.constant 9.99999997E-7 : f32
    %237 = vector.broadcast %cst_144 : f32 to vector<8x1xf32>
    %238 = arith.addf %236, %237 : vector<8x1xf32>
    %239 = vector.broadcast %238 : vector<8x1xf32> to vector<8x32xf32>
    %240 = arith.divf %235, %239 : vector<8x32xf32>
    %241 = vector.broadcast %222 : vector<1x32xf32> to vector<8x32xf32>
    %242 = arith.addf %240, %241 : vector<8x32xf32>
    %243 = arith.truncf %242 : vector<8x32xf32> to vector<8x32xbf16>
    %c0_145 = arith.constant 0 : index
    %c0_146 = arith.constant 0 : index
    %244 = vector.load %arg11[%c0_145, %c0_146] : memref<32x64xbf16, #tpu.memory_space<vmem>>, vector<32x64xbf16>
    %cst_147 = arith.constant dense<0.000000e+00> : vector<8x64xf32>
    %245 = tpu.matmul %243, %244, %cst_147 {dimension_numbers = #tpu.dot_dimension_numbers<[1], [0], [0], [1], [0, 0, 1, 1], [], []>} : vector<8x32xbf16>, vector<32x64xbf16>, vector<8x64xf32> -> vector<8x64xf32>
    %c0_148 = arith.constant 0 : index
    %c0_149 = arith.constant 0 : index
    %246 = vector.load %arg12[%c0_148, %c0_149] : memref<1x64xf32, #tpu.memory_space<vmem>>, vector<1x64xf32>
    %247 = vector.broadcast %246 : vector<1x64xf32> to vector<8x64xf32>
    %248 = arith.addf %245, %247 : vector<8x64xf32>
    %cst_150 = arith.constant 0.000000e+00 : f32
    %249 = vector.broadcast %cst_150 : f32 to vector<8x64xf32>
    %250 = arith.maximumf %248, %249 : vector<8x64xf32>
    %251 = arith.truncf %250 : vector<8x64xf32> to vector<8x64xbf16>
    %c0_151 = arith.constant 0 : index
    %c0_152 = arith.constant 0 : index
    %252 = vector.load %arg13[%c0_151, %c0_152] : memref<64x32xbf16, #tpu.memory_space<vmem>>, vector<64x32xbf16>
    %cst_153 = arith.constant dense<0.000000e+00> : vector<8x32xf32>
    %253 = tpu.matmul %251, %252, %cst_153 {dimension_numbers = #tpu.dot_dimension_numbers<[1], [0], [0], [1], [0, 0, 1, 1], [], []>} : vector<8x64xbf16>, vector<64x32xbf16>, vector<8x32xf32> -> vector<8x32xf32>
    %c0_154 = arith.constant 0 : index
    %c0_155 = arith.constant 0 : index
    %254 = vector.load %arg14[%c0_154, %c0_155] : memref<1x32xf32, #tpu.memory_space<vmem>>, vector<1x32xf32>
    %255 = vector.broadcast %254 : vector<1x32xf32> to vector<8x32xf32>
    %256 = arith.addf %253, %255 : vector<8x32xf32>
    %257 = arith.addf %220, %256 : vector<8x32xf32>
    %c0_156 = arith.constant 0 : index
    %c0_157 = arith.constant 0 : index
    %258 = vector.load %arg15[%c0_156, %c0_157] : memref<1x32xf32, #tpu.memory_space<vmem>>, vector<1x32xf32>
    %c0_158 = arith.constant 0 : index
    %c0_159 = arith.constant 0 : index
    %259 = vector.load %arg16[%c0_158, %c0_159] : memref<1x32xf32, #tpu.memory_space<vmem>>, vector<1x32xf32>
    %cst_160 = arith.constant dense<0.000000e+00> : vector<8xf32>
    %260 = vector.multi_reduction <add>, %257, %cst_160 [1] : vector<8x32xf32> to vector<8xf32>
    %261 = vector.shape_cast %260 : vector<8xf32> to vector<8x1xf32>
    %cst_161 = arith.constant 3.200000e+01 : f32
    %262 = vector.broadcast %cst_161 : f32 to vector<8x1xf32>
    %263 = arith.divf %261, %262 : vector<8x1xf32>
    %264 = vector.broadcast %263 : vector<8x1xf32> to vector<8x32xf32>
    %265 = arith.subf %257, %264 : vector<8x32xf32>
    %266 = arith.mulf %265, %265 : vector<8x32xf32>
    %cst_162 = arith.constant dense<0.000000e+00> : vector<8xf32>
    %267 = vector.multi_reduction <add>, %266, %cst_162 [1] : vector<8x32xf32> to vector<8xf32>
    %268 = vector.shape_cast %267 : vector<8xf32> to vector<8x1xf32>
    %cst_163 = arith.constant 0.0322580636 : f32
    %269 = vector.broadcast %cst_163 : f32 to vector<8x1xf32>
    %270 = arith.mulf %268, %269 : vector<8x1xf32>
    %271 = vector.broadcast %258 : vector<1x32xf32> to vector<8x32xf32>
    %272 = arith.mulf %271, %265 : vector<8x32xf32>
    %273 = math.sqrt %270 : vector<8x1xf32>
    %cst_164 = arith.constant 9.99999997E-7 : f32
    %274 = vector.broadcast %cst_164 : f32 to vector<8x1xf32>
    %275 = arith.addf %273, %274 : vector<8x1xf32>
    %276 = vector.broadcast %275 : vector<8x1xf32> to vector<8x32xf32>
    %277 = arith.divf %272, %276 : vector<8x32xf32>
    %278 = vector.broadcast %259 : vector<1x32xf32> to vector<8x32xf32>
    %279 = arith.addf %277, %278 : vector<8x32xf32>
    %280 = arith.truncf %279 : vector<8x32xf32> to vector<8x32xbf16>
    %cst_165 = arith.constant 0.000000e+00 : f32
    %281 = vector.broadcast %cst_165 : f32 to vector<8x32xf32>
    %c0_166 = arith.constant 0 : index
    %c0_167 = arith.constant 0 : index
    %c0_168 = arith.constant 0 : index
    %282 = vector.load %arg3[%c0_166, %c0_167, %c0_168] : memref<4x32x8xbf16, #tpu.memory_space<vmem>>, vector<1x32x8xbf16>
    %283 = vector.shape_cast %282 : vector<1x32x8xbf16> to vector<32x8xbf16>
    %cst_169 = arith.constant dense<0.000000e+00> : vector<8x8xf32>
    %284 = tpu.matmul %280, %283, %cst_169 {dimension_numbers = #tpu.dot_dimension_numbers<[1], [0], [0], [1], [0, 0, 1, 1], [], []>} : vector<8x32xbf16>, vector<32x8xbf16>, vector<8x8xf32> -> vector<8x8xf32>
    %c0_170 = arith.constant 0 : index
    %c0_171 = arith.constant 0 : index
    %c0_172 = arith.constant 0 : index
    %285 = vector.load %arg4[%c0_170, %c0_171, %c0_172] : memref<4x1x8xf32, #tpu.memory_space<vmem>>, vector<1x1x8xf32>
    %286 = vector.shape_cast %285 : vector<1x1x8xf32> to vector<1x8xf32>
    %287 = vector.broadcast %286 : vector<1x8xf32> to vector<8x8xf32>
    %288 = arith.addf %284, %287 : vector<8x8xf32>
    %289 = arith.truncf %288 : vector<8x8xf32> to vector<8x8xbf16>
    %c0_173 = arith.constant 0 : index
    %c0_174 = arith.constant 0 : index
    %c0_175 = arith.constant 0 : index
    %290 = vector.load %arg5[%c0_173, %c0_174, %c0_175] : memref<4x32x8xbf16, #tpu.memory_space<vmem>>, vector<1x32x8xbf16>
    %291 = vector.shape_cast %290 : vector<1x32x8xbf16> to vector<32x8xbf16>
    %cst_176 = arith.constant dense<0.000000e+00> : vector<8x8xf32>
    %292 = tpu.matmul %280, %291, %cst_176 {dimension_numbers = #tpu.dot_dimension_numbers<[1], [0], [0], [1], [0, 0, 1, 1], [], []>} : vector<8x32xbf16>, vector<32x8xbf16>, vector<8x8xf32> -> vector<8x8xf32>
    %c0_177 = arith.constant 0 : index
    %c0_178 = arith.constant 0 : index
    %c0_179 = arith.constant 0 : index
    %293 = vector.load %arg6[%c0_177, %c0_178, %c0_179] : memref<4x1x8xf32, #tpu.memory_space<vmem>>, vector<1x1x8xf32>
    %294 = vector.shape_cast %293 : vector<1x1x8xf32> to vector<1x8xf32>
    %295 = vector.broadcast %294 : vector<1x8xf32> to vector<8x8xf32>
    %296 = arith.addf %292, %295 : vector<8x8xf32>
    %297 = arith.truncf %296 : vector<8x8xf32> to vector<8x8xbf16>
    %c0_180 = arith.constant 0 : index
    %c0_181 = arith.constant 0 : index
    %c0_182 = arith.constant 0 : index
    %298 = vector.load %arg7[%c0_180, %c0_181, %c0_182] : memref<4x32x8xbf16, #tpu.memory_space<vmem>>, vector<1x32x8xbf16>
    %299 = vector.shape_cast %298 : vector<1x32x8xbf16> to vector<32x8xbf16>
    %cst_183 = arith.constant dense<0.000000e+00> : vector<8x8xf32>
    %300 = tpu.matmul %280, %299, %cst_183 {dimension_numbers = #tpu.dot_dimension_numbers<[1], [0], [0], [1], [0, 0, 1, 1], [], []>} : vector<8x32xbf16>, vector<32x8xbf16>, vector<8x8xf32> -> vector<8x8xf32>
    %c0_184 = arith.constant 0 : index
    %c0_185 = arith.constant 0 : index
    %c0_186 = arith.constant 0 : index
    %301 = vector.load %arg8[%c0_184, %c0_185, %c0_186] : memref<4x1x8xf32, #tpu.memory_space<vmem>>, vector<1x1x8xf32>
    %302 = vector.shape_cast %301 : vector<1x1x8xf32> to vector<1x8xf32>
    %303 = vector.broadcast %302 : vector<1x8xf32> to vector<8x8xf32>
    %304 = arith.addf %300, %303 : vector<8x8xf32>
    %305 = arith.truncf %304 : vector<8x8xf32> to vector<8x8xbf16>
    %cst_187 = arith.constant dense<0.000000e+00> : vector<8x8xf32>
    %306 = tpu.matmul %289, %297, %cst_187 {dimension_numbers = #tpu.dot_dimension_numbers<[1], [1], [0], [0], [0, 0, 1, 0], [], []>} : vector<8x8xbf16>, vector<8x8xbf16>, vector<8x8xf32> -> vector<8x8xf32>
    %cst_188 = arith.constant 0.353553385 : f32
    %307 = vector.broadcast %cst_188 : f32 to vector<8x8xf32>
    %308 = arith.mulf %306, %307 : vector<8x8xf32>
    %309 = vector.broadcast %8 : vector<1x8xf32> to vector<8x8xf32>
    %310 = arith.addf %308, %309 : vector<8x8xf32>
    %cst_189 = arith.constant dense<0xFF800000> : vector<8xf32>
    %311 = vector.multi_reduction <maximumf>, %310, %cst_189 [1] : vector<8x8xf32> to vector<8xf32>
    %312 = vector.shape_cast %311 : vector<8xf32> to vector<8x1xf32>
    %313 = vector.broadcast %312 : vector<8x1xf32> to vector<8x8xf32>
    %314 = arith.subf %310, %313 : vector<8x8xf32>
    %315 = math.exp %314 : vector<8x8xf32>
    %cst_190 = arith.constant dense<0.000000e+00> : vector<8xf32>
    %316 = vector.multi_reduction <add>, %315, %cst_190 [1] : vector<8x8xf32> to vector<8xf32>
    %317 = vector.shape_cast %316 : vector<8xf32> to vector<8x1xf32>
    %318 = arith.truncf %315 : vector<8x8xf32> to vector<8x8xbf16>
    %cst_191 = arith.constant dense<0.000000e+00> : vector<8x8xf32>
    %319 = tpu.matmul %318, %305, %cst_191 {dimension_numbers = #tpu.dot_dimension_numbers<[1], [0], [0], [1], [0, 0, 1, 1], [], []>} : vector<8x8xbf16>, vector<8x8xbf16>, vector<8x8xf32> -> vector<8x8xf32>
    %320 = tpu.reciprocal %317 {approx = true} : vector<8x1xf32> -> vector<8x1xf32>
    %321 = vector.broadcast %320 : vector<8x1xf32> to vector<8x8xf32>
    %322 = arith.mulf %319, %321 : vector<8x8xf32>
    %323 = arith.truncf %322 : vector<8x8xf32> to vector<8x8xbf16>
    %c0_192 = arith.constant 0 : index
    %c0_193 = arith.constant 0 : index
    %c0_194 = arith.constant 0 : index
    %324 = vector.load %arg9[%c0_192, %c0_193, %c0_194] : memref<4x8x32xbf16, #tpu.memory_space<vmem>>, vector<1x8x32xbf16>
    %325 = vector.shape_cast %324 : vector<1x8x32xbf16> to vector<8x32xbf16>
    %cst_195 = arith.constant dense<0.000000e+00> : vector<8x32xf32>
    %326 = tpu.matmul %323, %325, %cst_195 {dimension_numbers = #tpu.dot_dimension_numbers<[1], [0], [0], [1], [0, 0, 1, 1], [], []>} : vector<8x8xbf16>, vector<8x32xbf16>, vector<8x32xf32> -> vector<8x32xf32>
    %327 = arith.addf %281, %326 : vector<8x32xf32>
    %c1_196 = arith.constant 1 : index
    %c0_197 = arith.constant 0 : index
    %c0_198 = arith.constant 0 : index
    %328 = vector.load %arg3[%c1_196, %c0_197, %c0_198] : memref<4x32x8xbf16, #tpu.memory_space<vmem>>, vector<1x32x8xbf16>
    %329 = vector.shape_cast %328 : vector<1x32x8xbf16> to vector<32x8xbf16>
    %cst_199 = arith.constant dense<0.000000e+00> : vector<8x8xf32>
    %330 = tpu.matmul %280, %329, %cst_199 {dimension_numbers = #tpu.dot_dimension_numbers<[1], [0], [0], [1], [0, 0, 1, 1], [], []>} : vector<8x32xbf16>, vector<32x8xbf16>, vector<8x8xf32> -> vector<8x8xf32>
    %c1_200 = arith.constant 1 : index
    %c0_201 = arith.constant 0 : index
    %c0_202 = arith.constant 0 : index
    %331 = vector.load %arg4[%c1_200, %c0_201, %c0_202] : memref<4x1x8xf32, #tpu.memory_space<vmem>>, vector<1x1x8xf32>
    %332 = vector.shape_cast %331 : vector<1x1x8xf32> to vector<1x8xf32>
    %333 = vector.broadcast %332 : vector<1x8xf32> to vector<8x8xf32>
    %334 = arith.addf %330, %333 : vector<8x8xf32>
    %335 = arith.truncf %334 : vector<8x8xf32> to vector<8x8xbf16>
    %c1_203 = arith.constant 1 : index
    %c0_204 = arith.constant 0 : index
    %c0_205 = arith.constant 0 : index
    %336 = vector.load %arg5[%c1_203, %c0_204, %c0_205] : memref<4x32x8xbf16, #tpu.memory_space<vmem>>, vector<1x32x8xbf16>
    %337 = vector.shape_cast %336 : vector<1x32x8xbf16> to vector<32x8xbf16>
    %cst_206 = arith.constant dense<0.000000e+00> : vector<8x8xf32>
    %338 = tpu.matmul %280, %337, %cst_206 {dimension_numbers = #tpu.dot_dimension_numbers<[1], [0], [0], [1], [0, 0, 1, 1], [], []>} : vector<8x32xbf16>, vector<32x8xbf16>, vector<8x8xf32> -> vector<8x8xf32>
    %c1_207 = arith.constant 1 : index
    %c0_208 = arith.constant 0 : index
    %c0_209 = arith.constant 0 : index
    %339 = vector.load %arg6[%c1_207, %c0_208, %c0_209] : memref<4x1x8xf32, #tpu.memory_space<vmem>>, vector<1x1x8xf32>
    %340 = vector.shape_cast %339 : vector<1x1x8xf32> to vector<1x8xf32>
    %341 = vector.broadcast %340 : vector<1x8xf32> to vector<8x8xf32>
    %342 = arith.addf %338, %341 : vector<8x8xf32>
    %343 = arith.truncf %342 : vector<8x8xf32> to vector<8x8xbf16>
    %c1_210 = arith.constant 1 : index
    %c0_211 = arith.constant 0 : index
    %c0_212 = arith.constant 0 : index
    %344 = vector.load %arg7[%c1_210, %c0_211, %c0_212] : memref<4x32x8xbf16, #tpu.memory_space<vmem>>, vector<1x32x8xbf16>
    %345 = vector.shape_cast %344 : vector<1x32x8xbf16> to vector<32x8xbf16>
    %cst_213 = arith.constant dense<0.000000e+00> : vector<8x8xf32>
    %346 = tpu.matmul %280, %345, %cst_213 {dimension_numbers = #tpu.dot_dimension_numbers<[1], [0], [0], [1], [0, 0, 1, 1], [], []>} : vector<8x32xbf16>, vector<32x8xbf16>, vector<8x8xf32> -> vector<8x8xf32>
    %c1_214 = arith.constant 1 : index
    %c0_215 = arith.constant 0 : index
    %c0_216 = arith.constant 0 : index
    %347 = vector.load %arg8[%c1_214, %c0_215, %c0_216] : memref<4x1x8xf32, #tpu.memory_space<vmem>>, vector<1x1x8xf32>
    %348 = vector.shape_cast %347 : vector<1x1x8xf32> to vector<1x8xf32>
    %349 = vector.broadcast %348 : vector<1x8xf32> to vector<8x8xf32>
    %350 = arith.addf %346, %349 : vector<8x8xf32>
    %351 = arith.truncf %350 : vector<8x8xf32> to vector<8x8xbf16>
    %cst_217 = arith.constant dense<0.000000e+00> : vector<8x8xf32>
    %352 = tpu.matmul %335, %343, %cst_217 {dimension_numbers = #tpu.dot_dimension_numbers<[1], [1], [0], [0], [0, 0, 1, 0], [], []>} : vector<8x8xbf16>, vector<8x8xbf16>, vector<8x8xf32> -> vector<8x8xf32>
    %cst_218 = arith.constant 0.353553385 : f32
    %353 = vector.broadcast %cst_218 : f32 to vector<8x8xf32>
    %354 = arith.mulf %352, %353 : vector<8x8xf32>
    %355 = vector.broadcast %8 : vector<1x8xf32> to vector<8x8xf32>
    %356 = arith.addf %354, %355 : vector<8x8xf32>
    %cst_219 = arith.constant dense<0xFF800000> : vector<8xf32>
    %357 = vector.multi_reduction <maximumf>, %356, %cst_219 [1] : vector<8x8xf32> to vector<8xf32>
    %358 = vector.shape_cast %357 : vector<8xf32> to vector<8x1xf32>
    %359 = vector.broadcast %358 : vector<8x1xf32> to vector<8x8xf32>
    %360 = arith.subf %356, %359 : vector<8x8xf32>
    %361 = math.exp %360 : vector<8x8xf32>
    %cst_220 = arith.constant dense<0.000000e+00> : vector<8xf32>
    %362 = vector.multi_reduction <add>, %361, %cst_220 [1] : vector<8x8xf32> to vector<8xf32>
    %363 = vector.shape_cast %362 : vector<8xf32> to vector<8x1xf32>
    %364 = arith.truncf %361 : vector<8x8xf32> to vector<8x8xbf16>
    %cst_221 = arith.constant dense<0.000000e+00> : vector<8x8xf32>
    %365 = tpu.matmul %364, %351, %cst_221 {dimension_numbers = #tpu.dot_dimension_numbers<[1], [0], [0], [1], [0, 0, 1, 1], [], []>} : vector<8x8xbf16>, vector<8x8xbf16>, vector<8x8xf32> -> vector<8x8xf32>
    %366 = tpu.reciprocal %363 {approx = true} : vector<8x1xf32> -> vector<8x1xf32>
    %367 = vector.broadcast %366 : vector<8x1xf32> to vector<8x8xf32>
    %368 = arith.mulf %365, %367 : vector<8x8xf32>
    %369 = arith.truncf %368 : vector<8x8xf32> to vector<8x8xbf16>
    %c1_222 = arith.constant 1 : index
    %c0_223 = arith.constant 0 : index
    %c0_224 = arith.constant 0 : index
    %370 = vector.load %arg9[%c1_222, %c0_223, %c0_224] : memref<4x8x32xbf16, #tpu.memory_space<vmem>>, vector<1x8x32xbf16>
    %371 = vector.shape_cast %370 : vector<1x8x32xbf16> to vector<8x32xbf16>
    %cst_225 = arith.constant dense<0.000000e+00> : vector<8x32xf32>
    %372 = tpu.matmul %369, %371, %cst_225 {dimension_numbers = #tpu.dot_dimension_numbers<[1], [0], [0], [1], [0, 0, 1, 1], [], []>} : vector<8x8xbf16>, vector<8x32xbf16>, vector<8x32xf32> -> vector<8x32xf32>
    %373 = arith.addf %327, %372 : vector<8x32xf32>
    %c2_226 = arith.constant 2 : index
    %c0_227 = arith.constant 0 : index
    %c0_228 = arith.constant 0 : index
    %374 = vector.load %arg3[%c2_226, %c0_227, %c0_228] : memref<4x32x8xbf16, #tpu.memory_space<vmem>>, vector<1x32x8xbf16>
    %375 = vector.shape_cast %374 : vector<1x32x8xbf16> to vector<32x8xbf16>
    %cst_229 = arith.constant dense<0.000000e+00> : vector<8x8xf32>
    %376 = tpu.matmul %280, %375, %cst_229 {dimension_numbers = #tpu.dot_dimension_numbers<[1], [0], [0], [1], [0, 0, 1, 1], [], []>} : vector<8x32xbf16>, vector<32x8xbf16>, vector<8x8xf32> -> vector<8x8xf32>
    %c2_230 = arith.constant 2 : index
    %c0_231 = arith.constant 0 : index
    %c0_232 = arith.constant 0 : index
    %377 = vector.load %arg4[%c2_230, %c0_231, %c0_232] : memref<4x1x8xf32, #tpu.memory_space<vmem>>, vector<1x1x8xf32>
    %378 = vector.shape_cast %377 : vector<1x1x8xf32> to vector<1x8xf32>
    %379 = vector.broadcast %378 : vector<1x8xf32> to vector<8x8xf32>
    %380 = arith.addf %376, %379 : vector<8x8xf32>
    %381 = arith.truncf %380 : vector<8x8xf32> to vector<8x8xbf16>
    %c2_233 = arith.constant 2 : index
    %c0_234 = arith.constant 0 : index
    %c0_235 = arith.constant 0 : index
    %382 = vector.load %arg5[%c2_233, %c0_234, %c0_235] : memref<4x32x8xbf16, #tpu.memory_space<vmem>>, vector<1x32x8xbf16>
    %383 = vector.shape_cast %382 : vector<1x32x8xbf16> to vector<32x8xbf16>
    %cst_236 = arith.constant dense<0.000000e+00> : vector<8x8xf32>
    %384 = tpu.matmul %280, %383, %cst_236 {dimension_numbers = #tpu.dot_dimension_numbers<[1], [0], [0], [1], [0, 0, 1, 1], [], []>} : vector<8x32xbf16>, vector<32x8xbf16>, vector<8x8xf32> -> vector<8x8xf32>
    %c2_237 = arith.constant 2 : index
    %c0_238 = arith.constant 0 : index
    %c0_239 = arith.constant 0 : index
    %385 = vector.load %arg6[%c2_237, %c0_238, %c0_239] : memref<4x1x8xf32, #tpu.memory_space<vmem>>, vector<1x1x8xf32>
    %386 = vector.shape_cast %385 : vector<1x1x8xf32> to vector<1x8xf32>
    %387 = vector.broadcast %386 : vector<1x8xf32> to vector<8x8xf32>
    %388 = arith.addf %384, %387 : vector<8x8xf32>
    %389 = arith.truncf %388 : vector<8x8xf32> to vector<8x8xbf16>
    %c2_240 = arith.constant 2 : index
    %c0_241 = arith.constant 0 : index
    %c0_242 = arith.constant 0 : index
    %390 = vector.load %arg7[%c2_240, %c0_241, %c0_242] : memref<4x32x8xbf16, #tpu.memory_space<vmem>>, vector<1x32x8xbf16>
    %391 = vector.shape_cast %390 : vector<1x32x8xbf16> to vector<32x8xbf16>
    %cst_243 = arith.constant dense<0.000000e+00> : vector<8x8xf32>
    %392 = tpu.matmul %280, %391, %cst_243 {dimension_numbers = #tpu.dot_dimension_numbers<[1], [0], [0], [1], [0, 0, 1, 1], [], []>} : vector<8x32xbf16>, vector<32x8xbf16>, vector<8x8xf32> -> vector<8x8xf32>
    %c2_244 = arith.constant 2 : index
    %c0_245 = arith.constant 0 : index
    %c0_246 = arith.constant 0 : index
    %393 = vector.load %arg8[%c2_244, %c0_245, %c0_246] : memref<4x1x8xf32, #tpu.memory_space<vmem>>, vector<1x1x8xf32>
    %394 = vector.shape_cast %393 : vector<1x1x8xf32> to vector<1x8xf32>
    %395 = vector.broadcast %394 : vector<1x8xf32> to vector<8x8xf32>
    %396 = arith.addf %392, %395 : vector<8x8xf32>
    %397 = arith.truncf %396 : vector<8x8xf32> to vector<8x8xbf16>
    %cst_247 = arith.constant dense<0.000000e+00> : vector<8x8xf32>
    %398 = tpu.matmul %381, %389, %cst_247 {dimension_numbers = #tpu.dot_dimension_numbers<[1], [1], [0], [0], [0, 0, 1, 0], [], []>} : vector<8x8xbf16>, vector<8x8xbf16>, vector<8x8xf32> -> vector<8x8xf32>
    %cst_248 = arith.constant 0.353553385 : f32
    %399 = vector.broadcast %cst_248 : f32 to vector<8x8xf32>
    %400 = arith.mulf %398, %399 : vector<8x8xf32>
    %401 = vector.broadcast %8 : vector<1x8xf32> to vector<8x8xf32>
    %402 = arith.addf %400, %401 : vector<8x8xf32>
    %cst_249 = arith.constant dense<0xFF800000> : vector<8xf32>
    %403 = vector.multi_reduction <maximumf>, %402, %cst_249 [1] : vector<8x8xf32> to vector<8xf32>
    %404 = vector.shape_cast %403 : vector<8xf32> to vector<8x1xf32>
    %405 = vector.broadcast %404 : vector<8x1xf32> to vector<8x8xf32>
    %406 = arith.subf %402, %405 : vector<8x8xf32>
    %407 = math.exp %406 : vector<8x8xf32>
    %cst_250 = arith.constant dense<0.000000e+00> : vector<8xf32>
    %408 = vector.multi_reduction <add>, %407, %cst_250 [1] : vector<8x8xf32> to vector<8xf32>
    %409 = vector.shape_cast %408 : vector<8xf32> to vector<8x1xf32>
    %410 = arith.truncf %407 : vector<8x8xf32> to vector<8x8xbf16>
    %cst_251 = arith.constant dense<0.000000e+00> : vector<8x8xf32>
    %411 = tpu.matmul %410, %397, %cst_251 {dimension_numbers = #tpu.dot_dimension_numbers<[1], [0], [0], [1], [0, 0, 1, 1], [], []>} : vector<8x8xbf16>, vector<8x8xbf16>, vector<8x8xf32> -> vector<8x8xf32>
    %412 = tpu.reciprocal %409 {approx = true} : vector<8x1xf32> -> vector<8x1xf32>
    %413 = vector.broadcast %412 : vector<8x1xf32> to vector<8x8xf32>
    %414 = arith.mulf %411, %413 : vector<8x8xf32>
    %415 = arith.truncf %414 : vector<8x8xf32> to vector<8x8xbf16>
    %c2_252 = arith.constant 2 : index
    %c0_253 = arith.constant 0 : index
    %c0_254 = arith.constant 0 : index
    %416 = vector.load %arg9[%c2_252, %c0_253, %c0_254] : memref<4x8x32xbf16, #tpu.memory_space<vmem>>, vector<1x8x32xbf16>
    %417 = vector.shape_cast %416 : vector<1x8x32xbf16> to vector<8x32xbf16>
    %cst_255 = arith.constant dense<0.000000e+00> : vector<8x32xf32>
    %418 = tpu.matmul %415, %417, %cst_255 {dimension_numbers = #tpu.dot_dimension_numbers<[1], [0], [0], [1], [0, 0, 1, 1], [], []>} : vector<8x8xbf16>, vector<8x32xbf16>, vector<8x32xf32> -> vector<8x32xf32>
    %419 = arith.addf %373, %418 : vector<8x32xf32>
    %c3_256 = arith.constant 3 : index
    %c0_257 = arith.constant 0 : index
    %c0_258 = arith.constant 0 : index
    %420 = vector.load %arg3[%c3_256, %c0_257, %c0_258] : memref<4x32x8xbf16, #tpu.memory_space<vmem>>, vector<1x32x8xbf16>
    %421 = vector.shape_cast %420 : vector<1x32x8xbf16> to vector<32x8xbf16>
    %cst_259 = arith.constant dense<0.000000e+00> : vector<8x8xf32>
    %422 = tpu.matmul %280, %421, %cst_259 {dimension_numbers = #tpu.dot_dimension_numbers<[1], [0], [0], [1], [0, 0, 1, 1], [], []>} : vector<8x32xbf16>, vector<32x8xbf16>, vector<8x8xf32> -> vector<8x8xf32>
    %c3_260 = arith.constant 3 : index
    %c0_261 = arith.constant 0 : index
    %c0_262 = arith.constant 0 : index
    %423 = vector.load %arg4[%c3_260, %c0_261, %c0_262] : memref<4x1x8xf32, #tpu.memory_space<vmem>>, vector<1x1x8xf32>
    %424 = vector.shape_cast %423 : vector<1x1x8xf32> to vector<1x8xf32>
    %425 = vector.broadcast %424 : vector<1x8xf32> to vector<8x8xf32>
    %426 = arith.addf %422, %425 : vector<8x8xf32>
    %427 = arith.truncf %426 : vector<8x8xf32> to vector<8x8xbf16>
    %c3_263 = arith.constant 3 : index
    %c0_264 = arith.constant 0 : index
    %c0_265 = arith.constant 0 : index
    %428 = vector.load %arg5[%c3_263, %c0_264, %c0_265] : memref<4x32x8xbf16, #tpu.memory_space<vmem>>, vector<1x32x8xbf16>
    %429 = vector.shape_cast %428 : vector<1x32x8xbf16> to vector<32x8xbf16>
    %cst_266 = arith.constant dense<0.000000e+00> : vector<8x8xf32>
    %430 = tpu.matmul %280, %429, %cst_266 {dimension_numbers = #tpu.dot_dimension_numbers<[1], [0], [0], [1], [0, 0, 1, 1], [], []>} : vector<8x32xbf16>, vector<32x8xbf16>, vector<8x8xf32> -> vector<8x8xf32>
    %c3_267 = arith.constant 3 : index
    %c0_268 = arith.constant 0 : index
    %c0_269 = arith.constant 0 : index
    %431 = vector.load %arg6[%c3_267, %c0_268, %c0_269] : memref<4x1x8xf32, #tpu.memory_space<vmem>>, vector<1x1x8xf32>
    %432 = vector.shape_cast %431 : vector<1x1x8xf32> to vector<1x8xf32>
    %433 = vector.broadcast %432 : vector<1x8xf32> to vector<8x8xf32>
    %434 = arith.addf %430, %433 : vector<8x8xf32>
    %435 = arith.truncf %434 : vector<8x8xf32> to vector<8x8xbf16>
    %c3_270 = arith.constant 3 : index
    %c0_271 = arith.constant 0 : index
    %c0_272 = arith.constant 0 : index
    %436 = vector.load %arg7[%c3_270, %c0_271, %c0_272] : memref<4x32x8xbf16, #tpu.memory_space<vmem>>, vector<1x32x8xbf16>
    %437 = vector.shape_cast %436 : vector<1x32x8xbf16> to vector<32x8xbf16>
    %cst_273 = arith.constant dense<0.000000e+00> : vector<8x8xf32>
    %438 = tpu.matmul %280, %437, %cst_273 {dimension_numbers = #tpu.dot_dimension_numbers<[1], [0], [0], [1], [0, 0, 1, 1], [], []>} : vector<8x32xbf16>, vector<32x8xbf16>, vector<8x8xf32> -> vector<8x8xf32>
    %c3_274 = arith.constant 3 : index
    %c0_275 = arith.constant 0 : index
    %c0_276 = arith.constant 0 : index
    %439 = vector.load %arg8[%c3_274, %c0_275, %c0_276] : memref<4x1x8xf32, #tpu.memory_space<vmem>>, vector<1x1x8xf32>
    %440 = vector.shape_cast %439 : vector<1x1x8xf32> to vector<1x8xf32>
    %441 = vector.broadcast %440 : vector<1x8xf32> to vector<8x8xf32>
    %442 = arith.addf %438, %441 : vector<8x8xf32>
    %443 = arith.truncf %442 : vector<8x8xf32> to vector<8x8xbf16>
    %cst_277 = arith.constant dense<0.000000e+00> : vector<8x8xf32>
    %444 = tpu.matmul %427, %435, %cst_277 {dimension_numbers = #tpu.dot_dimension_numbers<[1], [1], [0], [0], [0, 0, 1, 0], [], []>} : vector<8x8xbf16>, vector<8x8xbf16>, vector<8x8xf32> -> vector<8x8xf32>
    %cst_278 = arith.constant 0.353553385 : f32
    %445 = vector.broadcast %cst_278 : f32 to vector<8x8xf32>
    %446 = arith.mulf %444, %445 : vector<8x8xf32>
    %447 = vector.broadcast %8 : vector<1x8xf32> to vector<8x8xf32>
    %448 = arith.addf %446, %447 : vector<8x8xf32>
    %cst_279 = arith.constant dense<0xFF800000> : vector<8xf32>
    %449 = vector.multi_reduction <maximumf>, %448, %cst_279 [1] : vector<8x8xf32> to vector<8xf32>
    %450 = vector.shape_cast %449 : vector<8xf32> to vector<8x1xf32>
    %451 = vector.broadcast %450 : vector<8x1xf32> to vector<8x8xf32>
    %452 = arith.subf %448, %451 : vector<8x8xf32>
    %453 = math.exp %452 : vector<8x8xf32>
    %cst_280 = arith.constant dense<0.000000e+00> : vector<8xf32>
    %454 = vector.multi_reduction <add>, %453, %cst_280 [1] : vector<8x8xf32> to vector<8xf32>
    %455 = vector.shape_cast %454 : vector<8xf32> to vector<8x1xf32>
    %456 = arith.truncf %453 : vector<8x8xf32> to vector<8x8xbf16>
    %cst_281 = arith.constant dense<0.000000e+00> : vector<8x8xf32>
    %457 = tpu.matmul %456, %443, %cst_281 {dimension_numbers = #tpu.dot_dimension_numbers<[1], [0], [0], [1], [0, 0, 1, 1], [], []>} : vector<8x8xbf16>, vector<8x8xbf16>, vector<8x8xf32> -> vector<8x8xf32>
    %458 = tpu.reciprocal %455 {approx = true} : vector<8x1xf32> -> vector<8x1xf32>
    %459 = vector.broadcast %458 : vector<8x1xf32> to vector<8x8xf32>
    %460 = arith.mulf %457, %459 : vector<8x8xf32>
    %461 = arith.truncf %460 : vector<8x8xf32> to vector<8x8xbf16>
    %c3_282 = arith.constant 3 : index
    %c0_283 = arith.constant 0 : index
    %c0_284 = arith.constant 0 : index
    %462 = vector.load %arg9[%c3_282, %c0_283, %c0_284] : memref<4x8x32xbf16, #tpu.memory_space<vmem>>, vector<1x8x32xbf16>
    %463 = vector.shape_cast %462 : vector<1x8x32xbf16> to vector<8x32xbf16>
    %cst_285 = arith.constant dense<0.000000e+00> : vector<8x32xf32>
    %464 = tpu.matmul %461, %463, %cst_285 {dimension_numbers = #tpu.dot_dimension_numbers<[1], [0], [0], [1], [0, 0, 1, 1], [], []>} : vector<8x8xbf16>, vector<8x32xbf16>, vector<8x32xf32> -> vector<8x32xf32>
    %465 = arith.addf %419, %464 : vector<8x32xf32>
    %466 = arith.addf %257, %465 : vector<8x32xf32>
    %c0_286 = arith.constant 0 : index
    %c0_287 = arith.constant 0 : index
    %467 = vector.load %arg10[%c0_286, %c0_287] : memref<1x32xf32, #tpu.memory_space<vmem>>, vector<1x32xf32>
    %468 = vector.broadcast %467 : vector<1x32xf32> to vector<8x32xf32>
    %469 = arith.addf %466, %468 : vector<8x32xf32>
    %c0_288 = arith.constant 0 : index
    %c0_289 = arith.constant 0 : index
    %470 = vector.load %arg17[%c0_288, %c0_289] : memref<1x32xf32, #tpu.memory_space<vmem>>, vector<1x32xf32>
    %c0_290 = arith.constant 0 : index
    %c0_291 = arith.constant 0 : index
    %471 = vector.load %arg18[%c0_290, %c0_291] : memref<1x32xf32, #tpu.memory_space<vmem>>, vector<1x32xf32>
    %cst_292 = arith.constant dense<0.000000e+00> : vector<8xf32>
    %472 = vector.multi_reduction <add>, %469, %cst_292 [1] : vector<8x32xf32> to vector<8xf32>
    %473 = vector.shape_cast %472 : vector<8xf32> to vector<8x1xf32>
    %cst_293 = arith.constant 3.200000e+01 : f32
    %474 = vector.broadcast %cst_293 : f32 to vector<8x1xf32>
    %475 = arith.divf %473, %474 : vector<8x1xf32>
    %476 = vector.broadcast %475 : vector<8x1xf32> to vector<8x32xf32>
    %477 = arith.subf %469, %476 : vector<8x32xf32>
    %478 = arith.mulf %477, %477 : vector<8x32xf32>
    %cst_294 = arith.constant dense<0.000000e+00> : vector<8xf32>
    %479 = vector.multi_reduction <add>, %478, %cst_294 [1] : vector<8x32xf32> to vector<8xf32>
    %480 = vector.shape_cast %479 : vector<8xf32> to vector<8x1xf32>
    %cst_295 = arith.constant 0.0322580636 : f32
    %481 = vector.broadcast %cst_295 : f32 to vector<8x1xf32>
    %482 = arith.mulf %480, %481 : vector<8x1xf32>
    %483 = vector.broadcast %470 : vector<1x32xf32> to vector<8x32xf32>
    %484 = arith.mulf %483, %477 : vector<8x32xf32>
    %485 = math.sqrt %482 : vector<8x1xf32>
    %cst_296 = arith.constant 9.99999997E-7 : f32
    %486 = vector.broadcast %cst_296 : f32 to vector<8x1xf32>
    %487 = arith.addf %485, %486 : vector<8x1xf32>
    %488 = vector.broadcast %487 : vector<8x1xf32> to vector<8x32xf32>
    %489 = arith.divf %484, %488 : vector<8x32xf32>
    %490 = vector.broadcast %471 : vector<1x32xf32> to vector<8x32xf32>
    %491 = arith.addf %489, %490 : vector<8x32xf32>
    %492 = arith.truncf %491 : vector<8x32xf32> to vector<8x32xbf16>
    %c0_297 = arith.constant 0 : index
    %c0_298 = arith.constant 0 : index
    %493 = vector.load %arg11[%c0_297, %c0_298] : memref<32x64xbf16, #tpu.memory_space<vmem>>, vector<32x64xbf16>
    %cst_299 = arith.constant dense<0.000000e+00> : vector<8x64xf32>
    %494 = tpu.matmul %492, %493, %cst_299 {dimension_numbers = #tpu.dot_dimension_numbers<[1], [0], [0], [1], [0, 0, 1, 1], [], []>} : vector<8x32xbf16>, vector<32x64xbf16>, vector<8x64xf32> -> vector<8x64xf32>
    %c0_300 = arith.constant 0 : index
    %c0_301 = arith.constant 0 : index
    %495 = vector.load %arg12[%c0_300, %c0_301] : memref<1x64xf32, #tpu.memory_space<vmem>>, vector<1x64xf32>
    %496 = vector.broadcast %495 : vector<1x64xf32> to vector<8x64xf32>
    %497 = arith.addf %494, %496 : vector<8x64xf32>
    %cst_302 = arith.constant 0.000000e+00 : f32
    %498 = vector.broadcast %cst_302 : f32 to vector<8x64xf32>
    %499 = arith.maximumf %497, %498 : vector<8x64xf32>
    %500 = arith.truncf %499 : vector<8x64xf32> to vector<8x64xbf16>
    %c0_303 = arith.constant 0 : index
    %c0_304 = arith.constant 0 : index
    %501 = vector.load %arg13[%c0_303, %c0_304] : memref<64x32xbf16, #tpu.memory_space<vmem>>, vector<64x32xbf16>
    %cst_305 = arith.constant dense<0.000000e+00> : vector<8x32xf32>
    %502 = tpu.matmul %500, %501, %cst_305 {dimension_numbers = #tpu.dot_dimension_numbers<[1], [0], [0], [1], [0, 0, 1, 1], [], []>} : vector<8x64xbf16>, vector<64x32xbf16>, vector<8x32xf32> -> vector<8x32xf32>
    %c0_306 = arith.constant 0 : index
    %c0_307 = arith.constant 0 : index
    %503 = vector.load %arg14[%c0_306, %c0_307] : memref<1x32xf32, #tpu.memory_space<vmem>>, vector<1x32xf32>
    %504 = vector.broadcast %503 : vector<1x32xf32> to vector<8x32xf32>
    %505 = arith.addf %502, %504 : vector<8x32xf32>
    %506 = arith.addf %469, %505 : vector<8x32xf32>
    %c0_308 = arith.constant 0 : index
    %c0_309 = arith.constant 0 : index
    %507 = vector.load %arg19[%c0_308, %c0_309] : memref<1x32xf32, #tpu.memory_space<vmem>>, vector<1x32xf32>
    %c0_310 = arith.constant 0 : index
    %c0_311 = arith.constant 0 : index
    %508 = vector.load %arg20[%c0_310, %c0_311] : memref<1x32xf32, #tpu.memory_space<vmem>>, vector<1x32xf32>
    %cst_312 = arith.constant dense<0.000000e+00> : vector<8xf32>
    %509 = vector.multi_reduction <add>, %506, %cst_312 [1] : vector<8x32xf32> to vector<8xf32>
    %510 = vector.shape_cast %509 : vector<8xf32> to vector<8x1xf32>
    %cst_313 = arith.constant 3.200000e+01 : f32
    %511 = vector.broadcast %cst_313 : f32 to vector<8x1xf32>
    %512 = arith.divf %510, %511 : vector<8x1xf32>
    %513 = vector.broadcast %512 : vector<8x1xf32> to vector<8x32xf32>
    %514 = arith.subf %506, %513 : vector<8x32xf32>
    %515 = arith.mulf %514, %514 : vector<8x32xf32>
    %cst_314 = arith.constant dense<0.000000e+00> : vector<8xf32>
    %516 = vector.multi_reduction <add>, %515, %cst_314 [1] : vector<8x32xf32> to vector<8xf32>
    %517 = vector.shape_cast %516 : vector<8xf32> to vector<8x1xf32>
    %cst_315 = arith.constant 0.0322580636 : f32
    %518 = vector.broadcast %cst_315 : f32 to vector<8x1xf32>
    %519 = arith.mulf %517, %518 : vector<8x1xf32>
    %520 = vector.broadcast %507 : vector<1x32xf32> to vector<8x32xf32>
    %521 = arith.mulf %520, %514 : vector<8x32xf32>
    %522 = math.sqrt %519 : vector<8x1xf32>
    %cst_316 = arith.constant 9.99999997E-7 : f32
    %523 = vector.broadcast %cst_316 : f32 to vector<8x1xf32>
    %524 = arith.addf %522, %523 : vector<8x1xf32>
    %525 = vector.broadcast %524 : vector<8x1xf32> to vector<8x32xf32>
    %526 = arith.divf %521, %525 : vector<8x32xf32>
    %527 = vector.broadcast %508 : vector<1x32xf32> to vector<8x32xf32>
    %528 = arith.addf %526, %527 : vector<8x32xf32>
    %c0_317 = arith.constant 0 : index
    %c0_318 = arith.constant 0 : index
    %c0_319 = arith.constant 0 : index
    %529 = vector.load %arg21[%c0_317, %c0_318, %c0_319] : memref<1x8x32xf32, #tpu.memory_space<vmem>>, vector<1x8x32xf32>
    %530 = vector.shape_cast %529 : vector<1x8x32xf32> to vector<8x32xf32>
    %531 = vector.shape_cast %528 : vector<8x32xf32> to vector<1x8x32xf32>
    tpu.vector_store %arg21[%c0_317, %c0_318, %c0_319], %531 {strides = array<i32>} : memref<1x8x32xf32, #tpu.memory_space<vmem>>, vector<1x8x32xf32>,
    return
  }
  func.func @transform_0(%arg0: i32) -> (i32, i32, i32) {
    %c0_i32 = arith.constant 0 : i32
    %c0_i32_0 = arith.constant 0 : i32
    %c0_i32_1 = arith.constant 0 : i32
    return %arg0, %c0_i32, %c0_i32_0 : i32, i32, i32
  }
  func.func @transform_1(%arg0: i32) -> (i32, i32, i32) {
    %c0_i32 = arith.constant 0 : i32
    %c0_i32_0 = arith.constant 0 : i32
    %c0_i32_1 = arith.constant 0 : i32
    return %arg0, %c0_i32, %c0_i32_0 : i32, i32, i32
  }
  func.func @transform_2(%arg0: i32) -> (i32, i32, i32) {
    %c0_i32 = arith.constant 0 : i32
    %c0_i32_0 = arith.constant 0 : i32
    %c0_i32_1 = arith.constant 0 : i32
    %c0_i32_2 = arith.constant 0 : i32
    return %c0_i32, %c0_i32_0, %c0_i32_1 : i32, i32, i32
  }
  func.func @transform_3(%arg0: i32) -> (i32, i32, i32) {
    %c0_i32 = arith.constant 0 : i32
    %c0_i32_0 = arith.constant 0 : i32
    %c0_i32_1 = arith.constant 0 : i32
    %c0_i32_2 = arith.constant 0 : i32
    return %c0_i32, %c0_i32_0, %c0_i32_1 : i32, i32, i32
  }
  func.func @transform_4(%arg0: i32) -> (i32, i32, i32) {
    %c0_i32 = arith.constant 0 : i32
    %c0_i32_0 = arith.constant 0 : i32
    %c0_i32_1 = arith.constant 0 : i32
    %c0_i32_2 = arith.constant 0 : i32
    return %c0_i32, %c0_i32_0, %c0_i32_1 : i32, i32, i32
  }
  func.func @transform_5(%arg0: i32) -> (i32, i32, i32) {
    %c0_i32 = arith.constant 0 : i32
    %c0_i32_0 = arith.constant 0 : i32
    %c0_i32_1 = arith.constant 0 : i32
    %c0_i32_2 = arith.constant 0 : i32
    return %c0_i32, %c0_i32_0, %c0_i32_1 : i32, i32, i32
  }
  func.func @transform_6(%arg0: i32) -> (i32, i32, i32) {
    %c0_i32 = arith.constant 0 : i32
    %c0_i32_0 = arith.constant 0 : i32
    %c0_i32_1 = arith.constant 0 : i32
    %c0_i32_2 = arith.constant 0 : i32
    return %c0_i32, %c0_i32_0, %c0_i32_1 : i32, i32, i32
  }
  func.func @transform_7(%arg0: i32) -> (i32, i32, i32) {
    %c0_i32 = arith.constant 0 : i32
    %c0_i32_0 = arith.constant 0 : i32
    %c0_i32_1 = arith.constant 0 : i32
    %c0_i32_2 = arith.constant 0 : i32
    return %c0_i32, %c0_i32_0, %c0_i32_1 : i32, i32, i32
  }
  func.func @transform_8(%arg0: i32) -> (i32, i32, i32) {
    %c0_i32 = arith.constant 0 : i32
    %c0_i32_0 = arith.constant 0 : i32
    %c0_i32_1 = arith.constant 0 : i32
    %c0_i32_2 = arith.constant 0 : i32
    return %c0_i32, %c0_i32_0, %c0_i32_1 : i32, i32, i32
  }
  func.func @transform_9(%arg0: i32) -> (i32, i32) {
    %c0_i32 = arith.constant 0 : i32
    %c0_i32_0 = arith.constant 0 : i32
    %c0_i32_1 = arith.constant 0 : i32
    return %c0_i32, %c0_i32_0 : i32, i32
  }
  func.func @transform_10(%arg0: i32) -> (i32, i32) {
    %c0_i32 = arith.constant 0 : i32
    %c0_i32_0 = arith.constant 0 : i32
    %c0_i32_1 = arith.constant 0 : i32
    return %c0_i32, %c0_i32_0 : i32, i32
  }
  func.func @transform_11(%arg0: i32) -> (i32, i32) {
    %c0_i32 = arith.constant 0 : i32
    %c0_i32_0 = arith.constant 0 : i32
    %c0_i32_1 = arith.constant 0 : i32
    return %c0_i32, %c0_i32_0 : i32, i32
  }
  func.func @transform_12(%arg0: i32) -> (i32, i32) {
    %c0_i32 = arith.constant 0 : i32
    %c0_i32_0 = arith.constant 0 : i32
    %c0_i32_1 = arith.constant 0 : i32
    return %c0_i32, %c0_i32_0 : i32, i32
  }
  func.func @transform_13(%arg0: i32) -> (i32, i32) {
    %c0_i32 = arith.constant 0 : i32
    %c0_i32_0 = arith.constant 0 : i32
    %c0_i32_1 = arith.constant 0 : i32
    return %c0_i32, %c0_i32_0 : i32, i32
  }
  func.func @transform_14(%arg0: i32) -> (i32, i32) {
    %c0_i32 = arith.constant 0 : i32
    %c0_i32_0 = arith.constant 0 : i32
    %c0_i32_1 = arith.constant 0 : i32
    return %c0_i32, %c0_i32_0 : i32, i32
  }
  func.func @transform_15(%arg0: i32) -> (i32, i32) {
    %c0_i32 = arith.constant 0 : i32
    %c0_i32_0 = arith.constant 0 : i32
    %c0_i32_1 = arith.constant 0 : i32
    return %c0_i32, %c0_i32_0 : i32, i32
  }
  func.func @transform_16(%arg0: i32) -> (i32, i32) {
    %c0_i32 = arith.constant 0 : i32
    %c0_i32_0 = arith.constant 0 : i32
    %c0_i32_1 = arith.constant 0 : i32
    return %c0_i32, %c0_i32_0 : i32, i32
  }
  func.func @transform_17(%arg0: i32) -> (i32, i32) {
    %c0_i32 = arith.constant 0 : i32
    %c0_i32_0 = arith.constant 0 : i32
    %c0_i32_1 = arith.constant 0 : i32
    return %c0_i32, %c0_i32_0 : i32, i32
  }
  func.func @transform_18(%arg0: i32) -> (i32, i32) {
    %c0_i32 = arith.constant 0 : i32
    %c0_i32_0 = arith.constant 0 : i32
    %c0_i32_1 = arith.constant 0 : i32
    return %c0_i32, %c0_i32_0 : i32, i32
  }
  func.func @transform_19(%arg0: i32) -> (i32, i32) {
    %c0_i32 = arith.constant 0 : i32
    %c0_i32_0 = arith.constant 0 : i32
    %c0_i32_1 = arith.constant 0 : i32
    return %c0_i32, %c0_i32_0 : i32, i32
  }
  func.func @transform_20(%arg0: i32) -> (i32, i32, i32) {
    %c0_i32 = arith.constant 0 : i32
    %c0_i32_0 = arith.constant 0 : i32
    %c0_i32_1 = arith.constant 0 : i32
    return %arg0, %c0_i32, %c0_i32_0 : i32, i32, i32
  }
}

</mosaic_0001>

<llo_original>
// kernel: encoder_forward.1
$region0: #{encoder_forward.1}
  #allocation0 [shape = 'u32[]', space=smem, size = 0x4, offset = 0x4, fixed_abs, tag = 'smem constant byte address 0x4 - core index']
  #allocation1 [shape = 'u32[144,128]{1,0:T(1,128)}', space=vmem, size = 0x12000, scoped, tag = 'internal scratch']
  %s0 = inlined_call_operand.vmem [shape: f32[2,8,32], index: 0, kind: input, shape index: {}]
  %s1 = inlined_call_operand.vmem [shape: f32[2,1,8], index: 1, kind: input, shape index: {}]
  %s2 = inlined_call_operand.vmem [shape: bf16[4,32,8], index: 2, kind: input, shape index: {}]
  %s3 = inlined_call_operand.vmem [shape: f32[4,1,8], index: 3, kind: input, shape index: {}]
  %s4 = inlined_call_operand.vmem [shape: bf16[4,32,8], index: 4, kind: input, shape index: {}]
  %s5 = inlined_call_operand.vmem [shape: f32[4,1,8], index: 5, kind: input, shape index: {}]
  %s6 = inlined_call_operand.vmem [shape: bf16[4,32,8], index: 6, kind: input, shape index: {}]
  %s7 = inlined_call_operand.vmem [shape: f32[4,1,8], index: 7, kind: input, shape index: {}]
  %s8 = inlined_call_operand.vmem [shape: bf16[4,8,32], index: 8, kind: input, shape index: {}]
  %s9 = inlined_call_operand.vmem [shape: f32[1,32], index: 9, kind: input, shape index: {}]
  %s10 = inlined_call_operand.vmem [shape: bf16[32,64], index: 10, kind: input, shape index: {}]
  %s11 = inlined_call_operand.vmem [shape: f32[1,64], index: 11, kind: input, shape index: {}]
  %s12 = inlined_call_operand.vmem [shape: bf16[64,32], index: 12, kind: input, shape index: {}]
  %s13 = inlined_call_operand.vmem [shape: f32[1,32], index: 13, kind: input, shape index: {}]
  %s14 = inlined_call_operand.vmem [shape: f32[1,32], index: 14, kind: input, shape index: {}]
  %s15 = inlined_call_operand.vmem [shape: f32[1,32], index: 15, kind: input, shape index: {}]
  %s16 = inlined_call_operand.vmem [shape: f32[1,32], index: 16, kind: input, shape index: {}]
  %s17 = inlined_call_operand.vmem [shape: f32[1,32], index: 17, kind: input, shape index: {}]
  %s18 = inlined_call_operand.vmem [shape: f32[1,32], index: 18, kind: input, shape index: {}]
  %s19 = inlined_call_operand.vmem [shape: f32[1,32], index: 19, kind: input, shape index: {}]
  %s20 = inlined_call_operand.hbm [shape: f32[2,8,32], index: 20, kind: output, shape index: {}]
  %s21 = sld [smem:[#allocation0]]
  $region113: #{encoder_forward.1} parent=0
    _
  %s23 = ssub.s32 1, %s21
  %s24 = scalar_select 0, %s23, %s21
  $region1: #{encoder_forward.1} parent=0
    #allocation2 [shape = 'u8[8192]{0}', space=vmem, size = 0x2000, scoped, tag = 'output window, operand 0']
    #allocation3 [shape = 's32[2]{0}', space=sflag, size = 0x8, scoped, tag = 'scoped memory for encoder_forward.1']
    %25 = vsyncpa [#allocation3], 0
    %s26 = scalar_lea.sflag [#allocation3], 1
    %27 = vsyncpa %s26, 0
    loop: start=0, step=1, limit=4
    $region2: #{encoder_forward.1} parent=1 // loop_pre_header
      _
    $region3: #{encoder_forward.1} parent=1 // loop_header
      %s29 = sphi 0, %s33
      %p30 = scmp.ge.s32.totalorder %s29, 4
      %s39 = sphi 0, %s41
      %s42 = sphi 0, %s39
      %s43 = sphi 0, %s42
      %s59 = sphi 0, %s43
      %s65 = sphi 0, %s67
      %s68 = sphi 0, %s65
      %s69 = sphi 0, %s68
      %s85 = sphi 0, %s69
      %s89 = sphi 0, %s89
      %s91 = sphi 0, %s89
      %s92 = sphi 0, %s91
      %s106 = sphi 0, %s92
      %s110 = sphi 0, %s110
      %s112 = sphi 0, %s110
      %s113 = sphi 0, %s112
      %s127 = sphi 0, %s113
      %s131 = sphi 0, %s131
      %s133 = sphi 0, %s131
      %s134 = sphi 0, %s133
      %s148 = sphi 0, %s134
      %s152 = sphi 0, %s152
      %s154 = sphi 0, %s152
      %s155 = sphi 0, %s154
      %s169 = sphi 0, %s155
      %s173 = sphi 0, %s173
      %s175 = sphi 0, %s173
      %s176 = sphi 0, %s175
      %s190 = sphi 0, %s176
      %s194 = sphi 0, %s194
      %s196 = sphi 0, %s194
      %s197 = sphi 0, %s196
      %s211 = sphi 0, %s197
      %s215 = sphi 0, %s215
      %s217 = sphi 0, %s215
      %s218 = sphi 0, %s217
      %s232 = sphi 0, %s218
      %s236 = sphi 0, %s236
      %s238 = sphi 0, %s236
      %s239 = sphi 0, %s238
      %s253 = sphi 0, %s239
      %s257 = sphi 0, %s257
      %s259 = sphi 0, %s257
      %s260 = sphi 0, %s259
      %s274 = sphi 0, %s260
      %s278 = sphi 0, %s278
      %s280 = sphi 0, %s278
      %s281 = sphi 0, %s280
      %s295 = sphi 0, %s281
      %s299 = sphi 0, %s299
      %s301 = sphi 0, %s299
      %s302 = sphi 0, %s301
      %s316 = sphi 0, %s302
      %s320 = sphi 0, %s320
      %s322 = sphi 0, %s320
      %s323 = sphi 0, %s322
      %s337 = sphi 0, %s323
      %s341 = sphi 0, %s341
      %s343 = sphi 0, %s341
      %s344 = sphi 0, %s343
      %s358 = sphi 0, %s344
      %s362 = sphi 0, %s362
      %s364 = sphi 0, %s362
      %s365 = sphi 0, %s364
      %s379 = sphi 0, %s365
      %s383 = sphi 0, %s383
      %s385 = sphi 0, %s383
      %s386 = sphi 0, %s385
      %s400 = sphi 0, %s386
      %s404 = sphi 0, %s404
      %s406 = sphi 0, %s404
      %s407 = sphi 0, %s406
      %s421 = sphi 0, %s407
      %s425 = sphi 0, %s425
      %s427 = sphi 0, %s425
      %s428 = sphi 0, %s427
      %s442 = sphi 0, %s428
      %s446 = sphi 0, %s446
      %s448 = sphi 0, %s446
      %s449 = sphi 0, %s448
      %s463 = sphi 0, %s449
      %s469 = sphi 0, %s471
      %s472 = sphi 0, %s469
      %s473 = sphi 0, %s472
      %s489 = sphi 0, %s473
    $region4: #{encoder_forward.1} parent=1 // loop_header_branch
      %32 = sbr.rel (%p30) target = $region8
    $region5: #{encoder_forward.1} parent=1 // loop_body
      %s34 = ssub.s32 %s29, 1
      %s35 = ssub.s32 %s29, 2
      %s36 = sadd.s32 %s29, 1
      %s37 = ssub.s32 %s29, %s36
      %p38 = scmp.eq.s32.totalorder %s37, 0
      %s40 = sadd.s32 %s39, 1
      %s41 = scalar_select %p38, %s39, %s40
      %p44 = pneg %p38
      %p45 = scmp.eq.s32.totalorder %s29, 1
      %p46 = por %p44, %p45
      %p47 = scmp.ne.s32.totalorder %s39, %s42
      %p48 = scmp.eq.s32.totalorder %s29, 0
      %p49 = por %p47, %p48
      %p50 = scmp.ne.s32.totalorder %s39, %s42
      %p51 = scmp.eq.s32.totalorder %s34, 1
      %p52 = por %p50, %p51
      %p53 = scmp.ne.s32.totalorder %s42, %s43
      %p54 = scmp.eq.s32.totalorder %s34, 0
      %p55 = por %p53, %p54
      %p56 = scmp.ne.s32.totalorder %s42, %s43
      %p57 = scmp.eq.s32.totalorder %s35, 1
      %p58 = por %p56, %p57
      %p60 = scmp.ne.s32.totalorder %s43, %s59
      %p61 = scmp.eq.s32.totalorder %s35, 0
      %p62 = por %p60, %p61
      %s63 = ssub.s32 %s29, %s36
      %p64 = scmp.eq.s32.totalorder %s63, 0
      %s66 = sadd.s32 %s65, 1
      %s67 = scalar_select %p64, %s65, %s66
      %p70 = pneg %p64
      %p71 = scmp.eq.s32.totalorder %s29, 1
      %p72 = por %p70, %p71
      %p73 = scmp.ne.s32.totalorder %s65, %s68
      %p74 = scmp.eq.s32.totalorder %s29, 0
      %p75 = por %p73, %p74
      %p76 = scmp.ne.s32.totalorder %s65, %s68
      %p77 = scmp.eq.s32.totalorder %s34, 1
      %p78 = por %p76, %p77
      %p79 = scmp.ne.s32.totalorder %s68, %s69
      %p80 = scmp.eq.s32.totalorder %s34, 0
      %p81 = por %p79, %p80
      %p82 = scmp.ne.s32.totalorder %s68, %s69
      %p83 = scmp.eq.s32.totalorder %s35, 1
      %p84 = por %p82, %p83
      %p86 = scmp.ne.s32.totalorder %s69, %s85
      %p87 = scmp.eq.s32.totalorder %s35, 0
      %p88 = por %p86, %p87
      %s90 = sadd.s32 %s89, 1
      %p93 = scmp.eq.s32.totalorder %s29, 1
      %p94 = scmp.ne.s32.totalorder %s89, %s91
      %p95 = scmp.eq.s32.totalorder %s29, 0
      %p96 = por %p94, %p95
      %p97 = scmp.ne.s32.totalorder %s89, %s91
      %p98 = scmp.eq.s32.totalorder %s34, 1
      %p99 = por %p97, %p98
      %p100 = scmp.ne.s32.totalorder %s91, %s92
      %p101 = scmp.eq.s32.totalorder %s34, 0
      %p102 = por %p100, %p101
      %p103 = scmp.ne.s32.totalorder %s91, %s92
      %p104 = scmp.eq.s32.totalorder %s35, 1
      %p105 = por %p103, %p104
      %p107 = scmp.ne.s32.totalorder %s92, %s106
      %p108 = scmp.eq.s32.totalorder %s35, 0
      %p109 = por %p107, %p108
      %s111 = sadd.s32 %s110, 1
      %p114 = scmp.eq.s32.totalorder %s29, 1
      %p115 = scmp.ne.s32.totalorder %s110, %s112
      %p116 = scmp.eq.s32.totalorder %s29, 0
      %p117 = por %p115, %p116
      %p118 = scmp.ne.s32.totalorder %s110, %s112
      %p119 = scmp.eq.s32.totalorder %s34, 1
      %p120 = por %p118, %p119
      %p121 = scmp.ne.s32.totalorder %s112, %s113
      %p122 = scmp.eq.s32.totalorder %s34, 0
      %p123 = por %p121, %p122
      %p124 = scmp.ne.s32.totalorder %s112, %s113
      %p125 = scmp.eq.s32.totalorder %s35, 1
      %p126 = por %p124, %p125
      %p128 = scmp.ne.s32.totalorder %s113, %s127
      %p129 = scmp.eq.s32.totalorder %s35, 0
      %p130 = por %p128, %p129
      %s132 = sadd.s32 %s131, 1
      %p135 = scmp.eq.s32.totalorder %s29, 1
      %p136 = scmp.ne.s32.totalorder %s131, %s133
      %p137 = scmp.eq.s32.totalorder %s29, 0
      %p138 = por %p136, %p137
      %p139 = scmp.ne.s32.totalorder %s131, %s133
      %p140 = scmp.eq.s32.totalorder %s34, 1
      %p141 = por %p139, %p140
      %p142 = scmp.ne.s32.totalorder %s133, %s134
      %p143 = scmp.eq.s32.totalorder %s34, 0
      %p144 = por %p142, %p143
      %p145 = scmp.ne.s32.totalorder %s133, %s134
      %p146 = scmp.eq.s32.totalorder %s35, 1
      %p147 = por %p145, %p146
      %p149 = scmp.ne.s32.totalorder %s134, %s148
      %p150 = scmp.eq.s32.totalorder %s35, 0
      %p151 = por %p149, %p150
      %s153 = sadd.s32 %s152, 1
      %p156 = scmp.eq.s32.totalorder %s29, 1
      %p157 = scmp.ne.s32.totalorder %s152, %s154
      %p158 = scmp.eq.s32.totalorder %s29, 0
      %p159 = por %p157, %p158
      %p160 = scmp.ne.s32.totalorder %s152, %s154
      %p161 = scmp.eq.s32.totalorder %s34, 1
      %p162 = por %p160, %p161
      %p163 = scmp.ne.s32.totalorder %s154, %s155
      %p164 = scmp.eq.s32.totalorder %s34, 0
      %p165 = por %p163, %p164
      %p166 = scmp.ne.s32.totalorder %s154, %s155
      %p167 = scmp.eq.s32.totalorder %s35, 1
      %p168 = por %p166, %p167
      %p170 = scmp.ne.s32.totalorder %s155, %s169
      %p171 = scmp.eq.s32.totalorder %s35, 0
      %p172 = por %p170, %p171
      %s174 = sadd.s32 %s173, 1
      %p177 = scmp.eq.s32.totalorder %s29, 1
      %p178 = scmp.ne.s32.totalorder %s173, %s175
      %p179 = scmp.eq.s32.totalorder %s29, 0
      %p180 = por %p178, %p179
      %p181 = scmp.ne.s32.totalorder %s173, %s175
      %p182 = scmp.eq.s32.totalorder %s34, 1
      %p183 = por %p181, %p182
      %p184 = scmp.ne.s32.totalorder %s175, %s176
      %p185 = scmp.eq.s32.totalorder %s34, 0
      %p186 = por %p184, %p185
      %p187 = scmp.ne.s32.totalorder %s175, %s176
      %p188 = scmp.eq.s32.totalorder %s35, 1
      %p189 = por %p187, %p188
      %p191 = scmp.ne.s32.totalorder %s176, %s190
      %p192 = scmp.eq.s32.totalorder %s35, 0
      %p193 = por %p191, %p192
      %s195 = sadd.s32 %s194, 1
      %p198 = scmp.eq.s32.totalorder %s29, 1
      %p199 = scmp.ne.s32.totalorder %s194, %s196
      %p200 = scmp.eq.s32.totalorder %s29, 0
      %p201 = por %p199, %p200
      %p202 = scmp.ne.s32.totalorder %s194, %s196
      %p203 = scmp.eq.s32.totalorder %s34, 1
      %p204 = por %p202, %p203
      %p205 = scmp.ne.s32.totalorder %s196, %s197
      %p206 = scmp.eq.s32.totalorder %s34, 0
      %p207 = por %p205, %p206
      %p208 = scmp.ne.s32.totalorder %s196, %s197
      %p209 = scmp.eq.s32.totalorder %s35, 1
      %p210 = por %p208, %p209
      %p212 = scmp.ne.s32.totalorder %s197, %s211
      %p213 = scmp.eq.s32.totalorder %s35, 0
      %p214 = por %p212, %p213
      %s216 = sadd.s32 %s215, 1
      %p219 = scmp.eq.s32.totalorder %s29, 1
      %p220 = scmp.ne.s32.totalorder %s215, %s217
      %p221 = scmp.eq.s32.totalorder %s29, 0
      %p222 = por %p220, %p221
      %p223 = scmp.ne.s32.totalorder %s215, %s217
      %p224 = scmp.eq.s32.totalorder %s34, 1
      %p225 = por %p223, %p224
      %p226 = scmp.ne.s32.totalorder %s217, %s218
      %p227 = scmp.eq.s32.totalorder %s34, 0
      %p228 = por %p226, %p227
      %p229 = scmp.ne.s32.totalorder %s217, %s218
      %p230 = scmp.eq.s32.totalorder %s35, 1
      %p231 = por %p229, %p230
      %p233 = scmp.ne.s32.totalorder %s218, %s232
      %p234 = scmp.eq.s32.totalorder %s35, 0
      %p235 = por %p233, %p234
      %s237 = sadd.s32 %s236, 1
      %p240 = scmp.eq.s32.totalorder %s29, 1
      %p241 = scmp.ne.s32.totalorder %s236, %s238
      %p242 = scmp.eq.s32.totalorder %s29, 0
      %p243 = por %p241, %p242
      %p244 = scmp.ne.s32.totalorder %s236, %s238
      %p245 = scmp.eq.s32.totalorder %s34, 1
      %p246 = por %p244, %p245
      %p247 = scmp.ne.s32.totalorder %s238, %s239
      %p248 = scmp.eq.s32.totalorder %s34, 0
      %p249 = por %p247, %p248
      %p250 = scmp.ne.s32.totalorder %s238, %s239
      %p251 = scmp.eq.s32.totalorder %s35, 1
      %p252 = por %p250, %p251
      %p254 = scmp.ne.s32.totalorder %s239, %s253
      %p255 = scmp.eq.s32.totalorder %s35, 0
      %p256 = por %p254, %p255
      %s258 = sadd.s32 %s257, 1
      %p261 = scmp.eq.s32.totalorder %s29, 1
      %p262 = scmp.ne.s32.totalorder %s257, %s259
      %p263 = scmp.eq.s32.totalorder %s29, 0
      %p264 = por %p262, %p263
      %p265 = scmp.ne.s32.totalorder %s257, %s259
      %p266 = scmp.eq.s32.totalorder %s34, 1
      %p267 = por %p265, %p266
      %p268 = scmp.ne.s32.totalorder %s259, %s260
      %p269 = scmp.eq.s32.totalorder %s34, 0
      %p270 = por %p268, %p269
      %p271 = scmp.ne.s32.totalorder %s259, %s260
      %p272 = scmp.eq.s32.totalorder %s35, 1
      %p273 = por %p271, %p272
      %p275 = scmp.ne.s32.totalorder %s260, %s274
      %p276 = scmp.eq.s32.totalorder %s35, 0
      %p277 = por %p275, %p276
      %s279 = sadd.s32 %s278, 1
      %p282 = scmp.eq.s32.totalorder %s29, 1
      %p283 = scmp.ne.s32.totalorder %s278, %s280
      %p284 = scmp.eq.s32.totalorder %s29, 0
      %p285 = por %p283, %p284
      %p286 = scmp.ne.s32.totalorder %s278, %s280
      %p287 = scmp.eq.s32.totalorder %s34, 1
      %p288 = por %p286, %p287
      %p289 = scmp.ne.s32.totalorder %s280, %s281
      %p290 = scmp.eq.s32.totalorder %s34, 0
      %p291 = por %p289, %p290
      %p292 = scmp.ne.s32.totalorder %s280, %s281
      %p293 = scmp.eq.s32.totalorder %s35, 1
      %p294 = por %p292, %p293
      %p296 = scmp.ne.s32.totalorder %s281, %s295
      %p297 = scmp.eq.s32.totalorder %s35, 0
      %p298 = por %p296, %p297
      %s300 = sadd.s32 %s299, 1
      %p303 = scmp.eq.s32.totalorder %s29, 1
      %p304 = scmp.ne.s32.totalorder %s299, %s301
      %p305 = scmp.eq.s32.totalorder %s29, 0
      %p306 = por %p304, %p305
      %p307 = scmp.ne.s32.totalorder %s299, %s301
      %p308 = scmp.eq.s32.totalorder %s34, 1
      %p309 = por %p307, %p308
      %p310 = scmp.ne.s32.totalorder %s301, %s302
      %p311 = scmp.eq.s32.totalorder %s34, 0
      %p312 = por %p310, %p311
      %p313 = scmp.ne.s32.totalorder %s301, %s302
      %p314 = scmp.eq.s32.totalorder %s35, 1
      %p315 = por %p313, %p314
      %p317 = scmp.ne.s32.totalorder %s302, %s316
      %p318 = scmp.eq.s32.totalorder %s35, 0
      %p319 = por %p317, %p318
      %s321 = sadd.s32 %s320, 1
      %p324 = scmp.eq.s32.totalorder %s29, 1
      %p325 = scmp.ne.s32.totalorder %s320, %s322
      %p326 = scmp.eq.s32.totalorder %s29, 0
      %p327 = por %p325, %p326
      %p328 = scmp.ne.s32.totalorder %s320, %s322
      %p329 = scmp.eq.s32.totalorder %s34, 1
      %p330 = por %p328, %p329
      %p331 = scmp.ne.s32.totalorder %s322, %s323
      %p332 = scmp.eq.s32.totalorder %s34, 0
      %p333 = por %p331, %p332
      %p334 = scmp.ne.s32.totalorder %s322, %s323
      %p335 = scmp.eq.s32.totalorder %s35, 1
      %p336 = por %p334, %p335
      %p338 = scmp.ne.s32.totalorder %s323, %s337
      %p339 = scmp.eq.s32.totalorder %s35, 0
      %p340 = por %p338, %p339
      %s342 = sadd.s32 %s341, 1
      %p345 = scmp.eq.s32.totalorder %s29, 1
      %p346 = scmp.ne.s32.totalorder %s341, %s343
      %p347 = scmp.eq.s32.totalorder %s29, 0
      %p348 = por %p346, %p347
      %p349 = scmp.ne.s32.totalorder %s341, %s343
      %p350 = scmp.eq.s32.totalorder %s34, 1
      %p351 = por %p349, %p350
      %p352 = scmp.ne.s32.totalorder %s343, %s344
      %p353 = scmp.eq.s32.totalorder %s34, 0
      %p354 = por %p352, %p353
      %p355 = scmp.ne.s32.totalorder %s343, %s344
      %p356 = scmp.eq.s32.totalorder %s35, 1
      %p357 = por %p355, %p356
      %p359 = scmp.ne.s32.totalorder %s344, %s358
      %p360 = scmp.eq.s32.totalorder %s35, 0
      %p361 = por %p359, %p360
      %s363 = sadd.s32 %s362, 1
      %p366 = scmp.eq.s32.totalorder %s29, 1
      %p367 = scmp.ne.s32.totalorder %s362, %s364
      %p368 = scmp.eq.s32.totalorder %s29, 0
      %p369 = por %p367, %p368
      %p370 = scmp.ne.s32.totalorder %s362, %s364
      %p371 = scmp.eq.s32.totalorder %s34, 1
      %p372 = por %p370, %p371
      %p373 = scmp.ne.s32.totalorder %s364, %s365
      %p374 = scmp.eq.s32.totalorder %s34, 0
      %p375 = por %p373, %p374
      %p376 = scmp.ne.s32.totalorder %s364, %s365
      %p377 = scmp.eq.s32.totalorder %s35, 1
      %p378 = por %p376, %p377
      %p380 = scmp.ne.s32.totalorder %s365, %s379
      %p381 = scmp.eq.s32.totalorder %s35, 0
      %p382 = por %p380, %p381
      %s384 = sadd.s32 %s383, 1
      %p387 = scmp.eq.s32.totalorder %s29, 1
      %p388 = scmp.ne.s32.totalorder %s383, %s385
      %p389 = scmp.eq.s32.totalorder %s29, 0
      %p390 = por %p388, %p389
      %p391 = scmp.ne.s32.totalorder %s383, %s385
      %p392 = scmp.eq.s32.totalorder %s34, 1
      %p393 = por %p391, %p392
      %p394 = scmp.ne.s32.totalorder %s385, %s386
      %p395 = scmp.eq.s32.totalorder %s34, 0
      %p396 = por %p394, %p395
      %p397 = scmp.ne.s32.totalorder %s385, %s386
      %p398 = scmp.eq.s32.totalorder %s35, 1
      %p399 = por %p397, %p398
      %p401 = scmp.ne.s32.totalorder %s386, %s400
      %p402 = scmp.eq.s32.totalorder %s35, 0
      %p403 = por %p401, %p402
      %s405 = sadd.s32 %s404, 1
      %p408 = scmp.eq.s32.totalorder %s29, 1
      %p409 = scmp.ne.s32.totalorder %s404, %s406
      %p410 = scmp.eq.s32.totalorder %s29, 0
      %p411 = por %p409, %p410
      %p412 = scmp.ne.s32.totalorder %s404, %s406
      %p413 = scmp.eq.s32.totalorder %s34, 1
      %p414 = por %p412, %p413
      %p415 = scmp.ne.s32.totalorder %s406, %s407
      %p416 = scmp.eq.s32.totalorder %s34, 0
      %p417 = por %p415, %p416
      %p418 = scmp.ne.s32.totalorder %s406, %s407
      %p419 = scmp.eq.s32.totalorder %s35, 1
      %p420 = por %p418, %p419
      %p422 = scmp.ne.s32.totalorder %s407, %s421
      %p423 = scmp.eq.s32.totalorder %s35, 0
      %p424 = por %p422, %p423
      %s426 = sadd.s32 %s425, 1
      %p429 = scmp.eq.s32.totalorder %s29, 1
      %p430 = scmp.ne.s32.totalorder %s425, %s427
      %p431 = scmp.eq.s32.totalorder %s29, 0
      %p432 = por %p430, %p431
      %p433 = scmp.ne.s32.totalorder %s425, %s427
      %p434 = scmp.eq.s32.totalorder %s34, 1
      %p435 = por %p433, %p434
      %p436 = scmp.ne.s32.totalorder %s427, %s428
      %p437 = scmp.eq.s32.totalorder %s34, 0
      %p438 = por %p436, %p437
      %p439 = scmp.ne.s32.totalorder %s427, %s428
      %p440 = scmp.eq.s32.totalorder %s35, 1
      %p441 = por %p439, %p440
      %p443 = scmp.ne.s32.totalorder %s428, %s442
      %p444 = scmp.eq.s32.totalorder %s35, 0
      %p445 = por %p443, %p444
      %s447 = sadd.s32 %s446, 1
      %p450 = scmp.eq.s32.totalorder %s29, 1
      %p451 = scmp.ne.s32.totalorder %s446, %s448
      %p452 = scmp.eq.s32.totalorder %s29, 0
      %p453 = por %p451, %p452
      %p454 = scmp.ne.s32.totalorder %s446, %s448
      %p455 = scmp.eq.s32.totalorder %s34, 1
      %p456 = por %p454, %p455
      %p457 = scmp.ne.s32.totalorder %s448, %s449
      %p458 = scmp.eq.s32.totalorder %s34, 0
      %p459 = por %p457, %p458
      %p460 = scmp.ne.s32.totalorder %s448, %s449
      %p461 = scmp.eq.s32.totalorder %s35, 1
      %p462 = por %p460, %p461
      %p464 = scmp.ne.s32.totalorder %s449, %s463
      %p465 = scmp.eq.s32.totalorder %s35, 0
      %p466 = por %p464, %p465
      %s467 = ssub.s32 %s29, %s36
      %p468 = scmp.eq.s32.totalorder %s467, 0
      %s470 = sadd.s32 %s469, 1
      %s471 = scalar_select %p468, %s469, %s470
      %p474 = pneg %p468
      %p475 = scmp.eq.s32.totalorder %s29, 1
      %p476 = por %p474, %p475
      %p477 = scmp.ne.s32.totalorder %s469, %s472
      %p478 = scmp.eq.s32.totalorder %s29, 0
      %p479 = por %p477, %p478
      %p480 = scmp.ne.s32.totalorder %s469, %s472
      %p481 = scmp.eq.s32.totalorder %s34, 1
      %p482 = por %p480, %p481
      %p483 = scmp.ne.s32.totalorder %s472, %s473
      %p484 = scmp.eq.s32.totalorder %s34, 0
      %p485 = por %p483, %p484
      %p486 = scmp.ne.s32.totalorder %s472, %s473
      %p487 = scmp.eq.s32.totalorder %s35, 1
      %p488 = por %p486, %p487
      %p490 = scmp.ne.s32.totalorder %s473, %s489
      %p491 = scmp.eq.s32.totalorder %s35, 0
      %p492 = por %p490, %p491
      %p493 = scmp.le.s32.totalorder 1, %s29
      %p494 = scmp.lt.s32.totalorder %s29, 3
      %p495 = pnand %p493, %p494
      %p496 = pneg %p495
      // Predicated region
      $region9: #{encoder_forward.1} parent=5 // pred_check
        _
      $region10: #{encoder_forward.1} parent=5 // pred_check_branch
        %498 = sbr.rel (%p495) target = $region12
      $region11: #{encoder_forward.1} parent=5 // pred_region
        %s499 = ssub.s32 %s29, 1
        // Predicated region
        $region13: #{encoder_forward.1} parent=11 // pred_check
          %p500 = pneg %p102
        $region14: #{encoder_forward.1} parent=11 // pred_check_branch
          %502 = sbr.rel (%p500) target = $region16
        $region15: #{encoder_forward.1} parent=11 // pred_region
          _
        $region16: #{encoder_forward.1} parent=11 // pred_fallthru
          _
        // Predicated region
        $region17: #{encoder_forward.1} parent=11 // pred_check
          %p503 = pneg %p123
        $region18: #{encoder_forward.1} parent=11 // pred_check_branch
          %505 = sbr.rel (%p503) target = $region20
        $region19: #{encoder_forward.1} parent=11 // pred_region
          _
        $region20: #{encoder_forward.1} parent=11 // pred_fallthru
          _
        // Predicated region
        $region21: #{encoder_forward.1} parent=11 // pred_check
          %p506 = pneg %p144
        $region22: #{encoder_forward.1} parent=11 // pred_check_branch
          %508 = sbr.rel (%p506) target = $region24
        $region23: #{encoder_forward.1} parent=11 // pred_region
          _
        $region24: #{encoder_forward.1} parent=11 // pred_fallthru
          _
        // Predicated region
        $region25: #{encoder_forward.1} parent=11 // pred_check
          %p509 = pneg %p165
        $region26: #{encoder_forward.1} parent=11 // pred_check_branch
          %511 = sbr.rel (%p509) target = $region28
        $region27: #{encoder_forward.1} parent=11 // pred_region
          _
        $region28: #{encoder_forward.1} parent=11 // pred_fallthru
          _
        // Predicated region
        $region29: #{encoder_forward.1} parent=11 // pred_check
          %p512 = pneg %p186
        $region30: #{encoder_forward.1} parent=11 // pred_check_branch
          %514 = sbr.rel (%p512) target = $region32
        $region31: #{encoder_forward.1} parent=11 // pred_region
          _
        $region32: #{encoder_forward.1} parent=11 // pred_fallthru
          _
        // Predicated region
        $region33: #{encoder_forward.1} parent=11 // pred_check
          %p515 = pneg %p207
        $region34: #{encoder_forward.1} parent=11 // pred_check_branch
          %517 = sbr.rel (%p515) target = $region36
        $region35: #{encoder_forward.1} parent=11 // pred_region
          _
        $region36: #{encoder_forward.1} parent=11 // pred_fallthru
          _
        // Predicated region
        $region37: #{encoder_forward.1} parent=11 // pred_check
          %p518 = pneg %p228
        $region38: #{encoder_forward.1} parent=11 // pred_check_branch
          %520 = sbr.rel (%p518) target = $region40
        $region39: #{encoder_forward.1} parent=11 // pred_region
          _
        $region40: #{encoder_forward.1} parent=11 // pred_fallthru
          _
        // Predicated region
        $region41: #{encoder_forward.1} parent=11 // pred_check
          %p521 = pneg %p249
        $region42: #{encoder_forward.1} parent=11 // pred_check_branch
          %523 = sbr.rel (%p521) target = $region44
        $region43: #{encoder_forward.1} parent=11 // pred_region
          _
        $region44: #{encoder_forward.1} parent=11 // pred_fallthru
          _
        // Predicated region
        $region45: #{encoder_forward.1} parent=11 // pred_check
          %p524 = pneg %p270
        $region46: #{encoder_forward.1} parent=11 // pred_check_branch
          %526 = sbr.rel (%p524) target = $region48
        $region47: #{encoder_forward.1} parent=11 // pred_region
          _
        $region48: #{encoder_forward.1} parent=11 // pred_fallthru
          _
        // Predicated region
        $region49: #{encoder_forward.1} parent=11 // pred_check
          %p527 = pneg %p291
        $region50: #{encoder_forward.1} parent=11 // pred_check_branch
          %529 = sbr.rel (%p527) target = $region52
        $region51: #{encoder_forward.1} parent=11 // pred_region
          _
        $region52: #{encoder_forward.1} parent=11 // pred_fallthru
          _
        // Predicated region
        $region53: #{encoder_forward.1} parent=11 // pred_check
          %p530 = pneg %p312
        $region54: #{encoder_forward.1} parent=11 // pred_check_branch
          %532 = sbr.rel (%p530) target = $region56
        $region55: #{encoder_forward.1} parent=11 // pred_region
          _
        $region56: #{encoder_forward.1} parent=11 // pred_fallthru
          _
        // Predicated region
        $region57: #{encoder_forward.1} parent=11 // pred_check
          %p533 = pneg %p333
        $region58: #{encoder_forward.1} parent=11 // pred_check_branch
          %535 = sbr.rel (%p533) target = $region60
        $region59: #{encoder_forward.1} parent=11 // pred_region
          _
        $region60: #{encoder_forward.1} parent=11 // pred_fallthru
          _
        // Predicated region
        $region61: #{encoder_forward.1} parent=11 // pred_check
          %p536 = pneg %p354
        $region62: #{encoder_forward.1} parent=11 // pred_check_branch
          %538 = sbr.rel (%p536) target = $region64
        $region63: #{encoder_forward.1} parent=11 // pred_region
          _
        $region64: #{encoder_forward.1} parent=11 // pred_fallthru
          _
        // Predicated region
        $region65: #{encoder_forward.1} parent=11 // pred_check
          %p539 = pneg %p375
        $region66: #{encoder_forward.1} parent=11 // pred_check_branch
          %541 = sbr.rel (%p539) target = $region68
        $region67: #{encoder_forward.1} parent=11 // pred_region
          _
        $region68: #{encoder_forward.1} parent=11 // pred_fallthru
          _
        // Predicated region
        $region69: #{encoder_forward.1} parent=11 // pred_check
          %p542 = pneg %p396
        $region70: #{encoder_forward.1} parent=11 // pred_check_branch
          %544 = sbr.rel (%p542) target = $region72
        $region71: #{encoder_forward.1} parent=11 // pred_region
          _
        $region72: #{encoder_forward.1} parent=11 // pred_fallthru
          _
        // Predicated region
        $region73: #{encoder_forward.1} parent=11 // pred_check
          %p545 = pneg %p417
        $region74: #{encoder_forward.1} parent=11 // pred_check_branch
          %547 = sbr.rel (%p545) target = $region76
        $region75: #{encoder_forward.1} parent=11 // pred_region
          _
        $region76: #{encoder_forward.1} parent=11 // pred_fallthru
          _
        // Predicated region
        $region77: #{encoder_forward.1} parent=11 // pred_check
          %p548 = pneg %p438
        $region78: #{encoder_forward.1} parent=11 // pred_check_branch
          %550 = sbr.rel (%p548) target = $region80
        $region79: #{encoder_forward.1} parent=11 // pred_region
          _
        $region80: #{encoder_forward.1} parent=11 // pred_fallthru
          _
        // Predicated region
        $region81: #{encoder_forward.1} parent=11 // pred_check
          %p551 = pneg %p459
        $region82: #{encoder_forward.1} parent=11 // pred_check_branch
          %553 = sbr.rel (%p551) target = $region84
        $region83: #{encoder_forward.1} parent=11 // pred_region
          _
        $region84: #{encoder_forward.1} parent=11 // pred_fallthru
          _
      $region12: #{encoder_forward.1} parent=5 // pred_fallthru
        _
      %p554 = scmp.lt.s32.totalorder %s29, 2
      // Predicated region
      $region85: #{encoder_forward.1} parent=5 // pred_check
        %p555 = pneg %p554
      $region86: #{encoder_forward.1} parent=5 // pred_check_branch
        %557 = sbr.rel (%p555) target = $region88
      $region87: #{encoder_forward.1} parent=5 // pred_region
        // Predicated region
        $region89: #{encoder_forward.1} parent=87 // pred_check
          %p558 = pneg %p49
        $region90: #{encoder_forward.1} parent=87 // pred_check_branch
          %560 = sbr.rel (%p558) target = $region92
        $region91: #{encoder_forward.1} parent=87 // pred_region
          %p561 = scmp.lt.s32.totalorder %s29, 1
          %s562 = scalar_select %p561, %s29, 1
          %s563 = smul.addr %s562, 8
          %s564 = scalar_lea.vmem %s0, %s563
        $region92: #{encoder_forward.1} parent=87 // pred_fallthru
          _
        // Predicated region
        $region93: #{encoder_forward.1} parent=87 // pred_check
          %p565 = pneg %p75
        $region94: #{encoder_forward.1} parent=87 // pred_check_branch
          %567 = sbr.rel (%p565) target = $region96
        $region95: #{encoder_forward.1} parent=87 // pred_region
          %p568 = scmp.lt.s32.totalorder %s29, 1
          %s569 = scalar_select %p568, %s29, 1
          %s570 = scalar_lea.vmem %s1, %s569
        $region96: #{encoder_forward.1} parent=87 // pred_fallthru
          _
      $region88: #{encoder_forward.1} parent=5 // pred_fallthru
        _
      %p571 = scmp.le.s32.totalorder 1, %s29
      %p572 = scmp.lt.s32.totalorder %s29, 3
      %p573 = pnand %p571, %p572
      %p574 = pneg %p573
      // Predicated region
      $region97: #{encoder_forward.1} parent=5 // pred_check
        _
      $region98: #{encoder_forward.1} parent=5 // pred_check_branch
        %576 = sbr.rel (%p573) target = $region100
      $region99: #{encoder_forward.1} parent=5 // pred_region
        %s577 = ssub.s32 %s29, 1
        %p578 = scmp.lt.s32.totalorder %s34, 1
        %s579 = scalar_select %p578, %s34, 1
        %s580 = smul.addr %s579, 8
        %s581 = scalar_lea.vmem %s0, %s580
        %p582 = pneg %p55
        %p583 = pneg %p52
        %p584 = scmp.lt.s32.totalorder %s34, 1
        %s585 = scalar_select %p584, %s34, 1
        %s586 = scalar_lea.vmem %s1, %s585
        %p587 = pneg %p81
        %p588 = pneg %p78
        %p589 = pneg %p102
        %p590 = pneg %p99
        %p591 = pneg %p123
        %p592 = pneg %p120
        %p593 = pneg %p144
        %p594 = pneg %p141
        %p595 = pneg %p165
        %p596 = pneg %p162
        %p597 = pneg %p186
        %p598 = pneg %p183
        %p599 = pneg %p207
        %p600 = pneg %p204
        %p601 = pneg %p228
        %p602 = pneg %p225
        %p603 = pneg %p249
        %p604 = pneg %p246
        %p605 = pneg %p270
        %p606 = pneg %p267
        %p607 = pneg %p291
        %p608 = pneg %p288
        %p609 = pneg %p312
        %p610 = pneg %p309
        %p611 = pneg %p333
        %p612 = pneg %p330
        %p613 = pneg %p354
        %p614 = pneg %p351
        %p615 = pneg %p375
        %p616 = pneg %p372
        %p617 = pneg %p396
        %p618 = pneg %p393
        %p619 = pneg %p417
        %p620 = pneg %p414
        %p621 = pneg %p438
        %p622 = pneg %p435
        %p623 = pneg %p459
        %p624 = pneg %p456
        %p625 = pneg %p485
        %p626 = pneg %p482
        %s627 = sand.u32 %s472, 1
        %s628 = scalar_lea.sflag [#allocation3], %s627
        %s629 = sand.u32 %s472, 1
        %s630 = smul.addr %s629, 8
        %s631 = scalar_lea.vmem [#allocation2], %s630
        %p632 = scmp.lt.s32.totalorder %s34, 1
        %s633 = scalar_select %p632, %s34, 1
        %s634 = smul.addr %s633, 8
        %s635 = scalar_lea.vmem %s0, %s634
        %p636 = scmp.lt.s32.totalorder %s34, 1
        %s637 = scalar_select %p636, %s34, 1
        %s638 = scalar_lea.vmem %s1, %s637
        %v640 = vld [vmem:[%s635] sm:$0xff]
        %v641 = vld [vmem:[%s638] sm:$0x1]
        %vm642 = vcmp.eq.f32.partialorder %v641, 0.0
        %v643 = vsel %vm642, -1e+09, 0.0
        %v644 = vld [vmem:[%s14] sm:$0x1]
        %v645 = vld [vmem:[%s15] sm:$0x1]
        %vm646 = vcmask 261120
        %v647 = vsel %vm646, %v640, 0.0
        %648 = vadd.xlane.f32.xlu0 %v647
        %v649 = vpop.xlane.xlu0 %648
        %v650 = vrcp.pop 32.0
        %v651 = vmul.f32 %v649, %v650
        %v652 = vsub.f32 %v640, %v651
        %v653 = vmul.f32 %v652, %v652
        %v654 = vsel %vm646, %v653, 0.0
        %655 = vadd.xlane.f32.xlu0 %v654
        %v656 = vpop.xlane.xlu0 %655
        %v657 = vmul.f32 %v656, 0.032258064
        %v659 = vlaneseq
        %v660 = vshrl.u32 %v659, 7
        %v661 = vsub.s32 0, %v660
        %v662 = vrot.slane %v644, %v661
        %v664 = vmul.f32 %v662, %v652
        %v665 = vrsqrt.pop %v657
        %v666 = vmul.f32 %v657, %v665
        %vm667 = vcmp.eq.f32.partialorder %v657, inf
        %v668 = vsel %vm667, %v657, %v666
        %vm669 = vcmp.eq.f32.partialorder %v657, 0.0
        %v670 = vand.u32 %v657, 2147483648
        %v671 = vsel %vm669, %v670, %v668
        %v672 = vadd.f32 %v671, 1e-06
        %v673 = vrcp.pop %v672
        %v674 = vmul.f32 %v664, %v673
        %v676 = vlaneseq
        %v677 = vshrl.u32 %v676, 7
        %v678 = vsub.s32 0, %v677
        %v679 = vrot.slane %v645, %v678
        %v681 = vadd.f32 %v674, %v679
        %v682 = vpack.c.bf16 %v681, %v681
        %v683 = vld [vmem:[%s2] sm:$0xf]
        %v684 = vld [vmem:[%s2 + $0x4] sm:$0xf]
        %v685 = vld [vmem:[%s2 + $0x8] sm:$0xf]
        %v686 = vld [vmem:[%s2 + $0xc] sm:$0xf]
        %v687 = vld [vmem:[%s3] sm:$0x1]
        %v689 = vlaneseq
        %v690 = vshrl.u32 %v689, 7
        %v691 = vsub.s32 0, %v690
        %v692 = vrot.slane %v687, %v691
        %v698 = vunpack.c.l.b16 %v683
        %v699 = vunpack.c.l.b16 %v684
        %v700 = vunpack.c.l.b16 %v685
        %v701 = vunpack.c.l.b16 %v686
        %v702 = vpack.c.b16 %v699, %v698
        %v703 = vpack.c.b16 %v701, %v700
        %v707 = vsel %vm646, %v682, 0
        %709 = vmatprep.subr.bf16.mxu0 0
        %710 = vmatpush1.bf16.msra.mxu0 0
        %711 = vmatprep.subr.bf16.mxu0 0
        %712 = vmatpush1.bf16.msra.mxu0 0
        %713 = vmatprep.subr.bf16.mxu0 0
        %714 = vmatpush1.bf16.msra.mxu0 0
        %715 = vmatprep.subr.bf16.mxu0 0
        %716 = vmatpush1.bf16.msra.mxu0 0
        %717 = vmatprep.subr.bf16.mxu0 0
        %718 = vmatpush1.bf16.msra.mxu0 0
        %719 = vmatprep.subr.bf16.mxu0 0
        %720 = vmatpush1.bf16.msra.mxu0 0
        %721 = vmatprep.subr.bf16.mxu0 0
        %722 = vmatpush1.bf16.msra.mxu0 %v703
        %723 = vmatprep.subr.bf16.mxu0 0
        %724 = vmatpush1.bf16.msra.mxu0 %v702
        %725 = vmatprep.subr.bf16.mxu0 0
        %726 = vmatpush2.bf16.msra.mxu0 0
        %727 = vmatprep.subr.bf16.mxu0 0
        %728 = vmatpush2.bf16.msra.mxu0 0
        %729 = vmatprep.subr.bf16.mxu0 0
        %730 = vmatpush2.bf16.msra.mxu0 0
        %731 = vmatprep.subr.bf16.mxu0 0
        %732 = vmatpush2.bf16.msra.mxu0 0
        %733 = vmatprep.subr.bf16.mxu0 0
        %734 = vmatpush2.bf16.msra.mxu0 0
        %735 = vmatprep.subr.bf16.mxu0 0
        %736 = vmatpush2.bf16.msra.mxu0 0
        %737 = vmatprep.subr.bf16.mxu0 0
        %738 = vmatpush2.bf16.msra.mxu0 0
        %739 = vmatprep.subr.bf16.mxu0 0
        %740 = vmatpush2.bf16.msra.mxu0 0
        %741 = vmatprep.mubr.bf16.mxu0 0
        %742 = vmatmul.mubr.bf16.gmra.mxu0 %v707
        %v743 = vpop.f32.mrf.mxu0
        %v744 = vadd.f32 %v692, %v743
        %v745 = vpop.f32.mrf.mxu0
        %v746 = vpop.f32.mrf.mxu0
        %v747 = vpop.f32.mrf.mxu0
        %748 = vdwg.mxu0
        %v749 = vpack.c.bf16 %v744, %v744
        %v750 = vld [vmem:[%s4] sm:$0xf]
        %v751 = vld [vmem:[%s4 + $0x4] sm:$0xf]
        %v752 = vld [vmem:[%s4 + $0x8] sm:$0xf]
        %v753 = vld [vmem:[%s4 + $0xc] sm:$0xf]
        %v754 = vld [vmem:[%s5] sm:$0x1]
        %v756 = vlaneseq
        %v757 = vshrl.u32 %v756, 7
        %v758 = vsub.s32 0, %v757
        %v759 = vrot.slane %v754, %v758
        %v765 = vunpack.c.l.b16 %v750
        %v766 = vunpack.c.l.b16 %v751
        %v767 = vunpack.c.l.b16 %v752
        %v768 = vunpack.c.l.b16 %v753
        %v769 = vpack.c.b16 %v766, %v765
        %v770 = vpack.c.b16 %v768, %v767
        %773 = vmatprep.subr.bf16.mxu0 0
        %774 = vmatpush1.bf16.msra.mxu0 0
        %775 = vmatprep.subr.bf16.mxu0 0
        %776 = vmatpush1.bf16.msra.mxu0 0
        %777 = vmatprep.subr.bf16.mxu0 0
        %778 = vmatpush1.bf16.msra.mxu0 0
        %779 = vmatprep.subr.bf16.mxu0 0
        %780 = vmatpush1.bf16.msra.mxu0 0
        %781 = vmatprep.subr.bf16.mxu0 0
        %782 = vmatpush1.bf16.msra.mxu0 0
        %783 = vmatprep.subr.bf16.mxu0 0
        %784 = vmatpush1.bf16.msra.mxu0 0
        %785 = vmatprep.subr.bf16.mxu0 0
        %786 = vmatpush1.bf16.msra.mxu0 %v770
        %787 = vmatprep.subr.bf16.mxu0 0
        %788 = vmatpush1.bf16.msra.mxu0 %v769
        %789 = vmatprep.subr.bf16.mxu0 0
        %790 = vmatpush2.bf16.msra.mxu0 0
        %791 = vmatprep.subr.bf16.mxu0 0
        %792 = vmatpush2.bf16.msra.mxu0 0
        %793 = vmatprep.subr.bf16.mxu0 0
        %794 = vmatpush2.bf16.msra.mxu0 0
        %795 = vmatprep.subr.bf16.mxu0 0
        %796 = vmatpush2.bf16.msra.mxu0 0
        %797 = vmatprep.subr.bf16.mxu0 0
        %798 = vmatpush2.bf16.msra.mxu0 0
        %799 = vmatprep.subr.bf16.mxu0 0
        %800 = vmatpush2.bf16.msra.mxu0 0
        %801 = vmatprep.subr.bf16.mxu0 0
        %802 = vmatpush2.bf16.msra.mxu0 0
        %803 = vmatprep.subr.bf16.mxu0 0
        %804 = vmatpush2.bf16.msra.mxu0 0
        %805 = vmatprep.mubr.bf16.mxu0 0
        %806 = vmatmul.mubr.bf16.gmra.mxu0 %v707
        %v807 = vpop.f32.mrf.mxu0
        %v808 = vadd.f32 %v759, %v807
        %v809 = vpop.f32.mrf.mxu0
        %v810 = vpop.f32.mrf.mxu0
        %v811 = vpop.f32.mrf.mxu0
        %812 = vdwg.mxu0
        %v813 = vpack.c.bf16 %v808, %v808
        %v814 = vld [vmem:[%s6] sm:$0xf]
        %v815 = vld [vmem:[%s6 + $0x4] sm:$0xf]
        %v816 = vld [vmem:[%s6 + $0x8] sm:$0xf]
        %v817 = vld [vmem:[%s6 + $0xc] sm:$0xf]
        %v818 = vld [vmem:[%s7] sm:$0x1]
        %v820 = vlaneseq
        %v821 = vshrl.u32 %v820, 7
        %v822 = vsub.s32 0, %v821
        %v823 = vrot.slane %v818, %v822
        %v829 = vunpack.c.l.b16 %v814
        %v830 = vunpack.c.l.b16 %v815
        %v831 = vunpack.c.l.b16 %v816
        %v832 = vunpack.c.l.b16 %v817
        %v833 = vpack.c.b16 %v830, %v829
        %v834 = vpack.c.b16 %v832, %v831
        %837 = vmatprep.subr.bf16.mxu0 0
        %838 = vmatpush1.bf16.msra.mxu0 0
        %839 = vmatprep.subr.bf16.mxu0 0
        %840 = vmatpush1.bf16.msra.mxu0 0
        %841 = vmatprep.subr.bf16.mxu0 0
        %842 = vmatpush1.bf16.msra.mxu0 0
        %843 = vmatprep.subr.bf16.mxu0 0
        %844 = vmatpush1.bf16.msra.mxu0 0
        %845 = vmatprep.subr.bf16.mxu0 0
        %846 = vmatpush1.bf16.msra.mxu0 0
        %847 = vmatprep.subr.bf16.mxu0 0
        %848 = vmatpush1.bf16.msra.mxu0 0
        %849 = vmatprep.subr.bf16.mxu0 0
        %850 = vmatpush1.bf16.msra.mxu0 %v834
        %851 = vmatprep.subr.bf16.mxu0 0
        %852 = vmatpush1.bf16.msra.mxu0 %v833
        %853 = vmatprep.subr.bf16.mxu0 0
        %854 = vmatpush2.bf16.msra.mxu0 0
        %855 = vmatprep.subr.bf16.mxu0 0
        %856 = vmatpush2.bf16.msra.mxu0 0
        %857 = vmatprep.subr.bf16.mxu0 0
        %858 = vmatpush2.bf16.msra.mxu0 0
        %859 = vmatprep.subr.bf16.mxu0 0
        %860 = vmatpush2.bf16.msra.mxu0 0
        %861 = vmatprep.subr.bf16.mxu0 0
        %862 = vmatpush2.bf16.msra.mxu0 0
        %863 = vmatprep.subr.bf16.mxu0 0
        %864 = vmatpush2.bf16.msra.mxu0 0
        %865 = vmatprep.subr.bf16.mxu0 0
        %866 = vmatpush2.bf16.msra.mxu0 0
        %867 = vmatprep.subr.bf16.mxu0 0
        %868 = vmatpush2.bf16.msra.mxu0 0
        %869 = vmatprep.mubr.bf16.mxu0 0
        %870 = vmatmul.mubr.bf16.gmra.mxu0 %v707
        %v871 = vpop.f32.mrf.mxu0
        %v872 = vadd.f32 %v823, %v871
        %v873 = vpop.f32.mrf.mxu0
        %v874 = vpop.f32.mrf.mxu0
        %v875 = vpop.f32.mrf.mxu0
        %876 = vdwg.mxu0
        %v877 = vpack.c.bf16 %v872, %v872
        %vm878 = vcmask 64512
        %v880 = vsel %vm878, %v749, 0
        %v883 = vsel %vm878, %v813, 0
        %885 = vmatprep.subr.bf16.mxu0 0
        %886 = vmatpush1.bf16.xpose.msra.mxu0 0
        %887 = vmatprep.subr.bf16.mxu0 0
        %888 = vmatpush1.bf16.xpose.msra.mxu0 0
        %889 = vmatprep.subr.bf16.mxu0 0
        %890 = vmatpush1.bf16.xpose.msra.mxu0 0
        %891 = vmatprep.subr.bf16.mxu0 0
        %892 = vmatpush1.bf16.xpose.msra.mxu0 0
        %893 = vmatprep.subr.bf16.mxu0 0
        %894 = vmatpush1.bf16.xpose.msra.mxu0 0
        %895 = vmatprep.subr.bf16.mxu0 0
        %896 = vmatpush1.bf16.xpose.msra.mxu0 0
        %897 = vmatprep.subr.bf16.mxu0 0
        %898 = vmatpush1.bf16.xpose.msra.mxu0 0
        %899 = vmatprep.subr.bf16.mxu0 0
        %900 = vmatpush1.bf16.xpose.msra.mxu0 %v883
        %901 = vmatprep.subr.bf16.mxu0 0
        %902 = vmatpush2.bf16.xpose.msra.mxu0 0
        %903 = vmatprep.subr.bf16.mxu0 0
        %904 = vmatpush2.bf16.xpose.msra.mxu0 0
        %905 = vmatprep.subr.bf16.mxu0 0
        %906 = vmatpush2.bf16.xpose.msra.mxu0 0
        %907 = vmatprep.subr.bf16.mxu0 0
        %908 = vmatpush2.bf16.xpose.msra.mxu0 0
        %909 = vmatprep.subr.bf16.mxu0 0
        %910 = vmatpush2.bf16.xpose.msra.mxu0 0
        %911 = vmatprep.subr.bf16.mxu0 0
        %912 = vmatpush2.bf16.xpose.msra.mxu0 0
        %913 = vmatprep.subr.bf16.mxu0 0
        %914 = vmatpush2.bf16.xpose.msra.mxu0 0
        %915 = vmatprep.subr.bf16.mxu0 0
        %916 = vmatpush2.bf16.xpose.msra.mxu0 0
        %917 = vmatprep.mubr.bf16.mxu0 0
        %918 = vmatmul.mubr.bf16.gmra.mxu0 %v880
        %v919 = vpop.f32.mrf.mxu0
        %v920 = vadd.f32 0.0, %v919
        %v921 = vpop.f32.mrf.mxu0
        %v922 = vpop.f32.mrf.mxu0
        %v923 = vpop.f32.mrf.mxu0
        %924 = vdwg.mxu0
        %v925 = vmul.f32 %v920, 0.35355338
        %v927 = vlaneseq
        %v928 = vshrl.u32 %v927, 7
        %v929 = vsub.s32 0, %v928
        %v930 = vrot.slane %v643, %v929
        %v932 = vadd.f32 %v925, %v930
        %v933 = vsel %vm878, %v932, -inf
        %934 = vmax.xlane.f32.xlu0 %v933
        %v935 = vpop.xlane.xlu0 %934
        %v936 = vsub.f32 %v932, %v935
        %v937 = vmul.f32 %v936, 1.442695
        %v938 = vpow.pop %v937
        %v939 = vsel %vm878, %v938, 0.0
        %940 = vadd.xlane.f32.xlu0 %v939
        %v941 = vpop.xlane.xlu0 %940
        %v942 = vpack.c.bf16 %v938, %v938
        %v944 = vsel %vm878, %v942, 0
        %vm946 = vcmask 1043456
        %v948 = vsel %vm946, %v877, 0
        %950 = vmatprep.subr.bf16.mxu0 0
        %951 = vmatpush1.bf16.msra.mxu0 0
        %952 = vmatprep.subr.bf16.mxu0 0
        %953 = vmatpush1.bf16.msra.mxu0 0
        %954 = vmatprep.subr.bf16.mxu0 0
        %955 = vmatpush1.bf16.msra.mxu0 0
        %956 = vmatprep.subr.bf16.mxu0 0
        %957 = vmatpush1.bf16.msra.mxu0 0
        %958 = vmatprep.subr.bf16.mxu0 0
        %959 = vmatpush1.bf16.msra.mxu0 0
        %960 = vmatprep.subr.bf16.mxu0 0
        %961 = vmatpush1.bf16.msra.mxu0 0
        %962 = vmatprep.subr.bf16.mxu0 0
        %963 = vmatpush1.bf16.msra.mxu0 0
        %964 = vmatprep.subr.bf16.mxu0 0
        %965 = vmatpush1.bf16.msra.mxu0 %v948
        %966 = vmatprep.subr.bf16.mxu0 0
        %967 = vmatpush2.bf16.msra.mxu0 0
        %968 = vmatprep.subr.bf16.mxu0 0
        %969 = vmatpush2.bf16.msra.mxu0 0
        %970 = vmatprep.subr.bf16.mxu0 0
        %971 = vmatpush2.bf16.msra.mxu0 0
        %972 = vmatprep.subr.bf16.mxu0 0
        %973 = vmatpush2.bf16.msra.mxu0 0
        %974 = vmatprep.subr.bf16.mxu0 0
        %975 = vmatpush2.bf16.msra.mxu0 0
        %976 = vmatprep.subr.bf16.mxu0 0
        %977 = vmatpush2.bf16.msra.mxu0 0
        %978 = vmatprep.subr.bf16.mxu0 0
        %979 = vmatpush2.bf16.msra.mxu0 0
        %980 = vmatprep.subr.bf16.mxu0 0
        %981 = vmatpush2.bf16.msra.mxu0 0
        %982 = vmatprep.mubr.bf16.mxu0 0
        %983 = vmatmul.mubr.bf16.gmra.mxu0 %v944
        %v984 = vpop.f32.mrf.mxu0
        %v985 = vadd.f32 0.0, %v984
        %v986 = vpop.f32.mrf.mxu0
        %v987 = vpop.f32.mrf.mxu0
        %v988 = vpop.f32.mrf.mxu0
        %989 = vdwg.mxu0
        %v990 = vrcp.pop %v941
        %v991 = vmul.f32 %v985, %v990
        %v992 = vpack.c.bf16 %v991, %v991
        %v993 = vld [vmem:[%s8] sm:$0xf]
        %s994 = scalar_lea.vmem %s2, 16
        %v995 = vld [vmem:[%s994] sm:$0xf]
        %v996 = vld [vmem:[%s994 + $0x4] sm:$0xf]
        %v997 = vld [vmem:[%s994 + $0x8] sm:$0xf]
        %v998 = vld [vmem:[%s994 + $0xc] sm:$0xf]
        %s999 = scalar_lea.vmem %s3, 1
        %v1000 = vld [vmem:[%s999] sm:$0x1]
        %v1002 = vlaneseq
        %v1003 = vshrl.u32 %v1002, 7
        %v1004 = vsub.s32 0, %v1003
        %v1005 = vrot.slane %v1000, %v1004
        %v1011 = vunpack.c.l.b16 %v995
        %v1012 = vunpack.c.l.b16 %v996
        %v1013 = vunpack.c.l.b16 %v997
        %v1014 = vunpack.c.l.b16 %v998
        %v1015 = vpack.c.b16 %v1012, %v1011
        %v1016 = vpack.c.b16 %v1014, %v1013
        %1019 = vmatprep.subr.bf16.mxu0 0
        %1020 = vmatpush1.bf16.msra.mxu0 0
        %1021 = vmatprep.subr.bf16.mxu0 0
        %1022 = vmatpush1.bf16.msra.mxu0 0
        %1023 = vmatprep.subr.bf16.mxu0 0
        %1024 = vmatpush1.bf16.msra.mxu0 0
        %1025 = vmatprep.subr.bf16.mxu0 0
        %1026 = vmatpush1.bf16.msra.mxu0 0
        %1027 = vmatprep.subr.bf16.mxu0 0
        %1028 = vmatpush1.bf16.msra.mxu0 0
        %1029 = vmatprep.subr.bf16.mxu0 0
        %1030 = vmatpush1.bf16.msra.mxu0 0
        %1031 = vmatprep.subr.bf16.mxu0 0
        %1032 = vmatpush1.bf16.msra.mxu0 %v1016
        %1033 = vmatprep.subr.bf16.mxu0 0
        %1034 = vmatpush1.bf16.msra.mxu0 %v1015
        %1035 = vmatprep.subr.bf16.mxu0 0
        %1036 = vmatpush2.bf16.msra.mxu0 0
        %1037 = vmatprep.subr.bf16.mxu0 0
        %1038 = vmatpush2.bf16.msra.mxu0 0
        %1039 = vmatprep.subr.bf16.mxu0 0
        %1040 = vmatpush2.bf16.msra.mxu0 0
        %1041 = vmatprep.subr.bf16.mxu0 0
        %1042 = vmatpush2.bf16.msra.mxu0 0
        %1043 = vmatprep.subr.bf16.mxu0 0
        %1044 = vmatpush2.bf16.msra.mxu0 0
        %1045 = vmatprep.subr.bf16.mxu0 0
        %1046 = vmatpush2.bf16.msra.mxu0 0
        %1047 = vmatprep.subr.bf16.mxu0 0
        %1048 = vmatpush2.bf16.msra.mxu0 0
        %1049 = vmatprep.subr.bf16.mxu0 0
        %1050 = vmatpush2.bf16.msra.mxu0 0
        %1051 = vmatprep.mubr.bf16.mxu0 0
        %1052 = vmatmul.mubr.bf16.gmra.mxu0 %v707
        %v1053 = vpop.f32.mrf.mxu0
        %v1054 = vadd.f32 %v1005, %v1053
        %v1055 = vpop.f32.mrf.mxu0
        %v1056 = vpop.f32.mrf.mxu0
        %v1057 = vpop.f32.mrf.mxu0
        %1058 = vdwg.mxu0
        %v1059 = vpack.c.bf16 %v1054, %v1054
        %s1060 = scalar_lea.vmem %s4, 16
        %v1061 = vld [vmem:[%s1060] sm:$0xf]
        %v1062 = vld [vmem:[%s1060 + $0x4] sm:$0xf]
        %v1063 = vld [vmem:[%s1060 + $0x8] sm:$0xf]
        %v1064 = vld [vmem:[%s1060 + $0xc] sm:$0xf]
        %s1065 = scalar_lea.vmem %s5, 1
        %v1066 = vld [vmem:[%s1065] sm:$0x1]
        %v1068 = vlaneseq
        %v1069 = vshrl.u32 %v1068, 7
        %v1070 = vsub.s32 0, %v1069
        %v1071 = vrot.slane %v1066, %v1070
        %v1077 = vunpack.c.l.b16 %v1061
        %v1078 = vunpack.c.l.b16 %v1062
        %v1079 = vunpack.c.l.b16 %v1063
        %v1080 = vunpack.c.l.b16 %v1064
        %v1081 = vpack.c.b16 %v1078, %v1077
        %v1082 = vpack.c.b16 %v1080, %v1079
        %1085 = vmatprep.subr.bf16.mxu0 0
        %1086 = vmatpush1.bf16.msra.mxu0 0
        %1087 = vmatprep.subr.bf16.mxu0 0
        %1088 = vmatpush1.bf16.msra.mxu0 0
        %1089 = vmatprep.subr.bf16.mxu0 0
        %1090 = vmatpush1.bf16.msra.mxu0 0
        %1091 = vmatprep.subr.bf16.mxu0 0
        %1092 = vmatpush1.bf16.msra.mxu0 0
        %1093 = vmatprep.subr.bf16.mxu0 0
        %1094 = vmatpush1.bf16.msra.mxu0 0
        %1095 = vmatprep.subr.bf16.mxu0 0
        %1096 = vmatpush1.bf16.msra.mxu0 0
        %1097 = vmatprep.subr.bf16.mxu0 0
        %1098 = vmatpush1.bf16.msra.mxu0 %v1082
        %1099 = vmatprep.subr.bf16.mxu0 0
        %1100 = vmatpush1.bf16.msra.mxu0 %v1081
        %1101 = vmatprep.subr.bf16.mxu0 0
        %1102 = vmatpush2.bf16.msra.mxu0 0
        %1103 = vmatprep.subr.bf16.mxu0 0
        %1104 = vmatpush2.bf16.msra.mxu0 0
        %1105 = vmatprep.subr.bf16.mxu0 0
        %1106 = vmatpush2.bf16.msra.mxu0 0
        %1107 = vmatprep.subr.bf16.mxu0 0
        %1108 = vmatpush2.bf16.msra.mxu0 0
        %1109 = vmatprep.subr.bf16.mxu0 0
        %1110 = vmatpush2.bf16.msra.mxu0 0
        %1111 = vmatprep.subr.bf16.mxu0 0
        %1112 = vmatpush2.bf16.msra.mxu0 0
        %1113 = vmatprep.subr.bf16.mxu0 0
        %1114 = vmatpush2.bf16.msra.mxu0 0
        %1115 = vmatprep.subr.bf16.mxu0 0
        %1116 = vmatpush2.bf16.msra.mxu0 0
        %1117 = vmatprep.mubr.bf16.mxu0 0
        %1118 = vmatmul.mubr.bf16.gmra.mxu0 %v707
        %v1119 = vpop.f32.mrf.mxu0
        %v1120 = vadd.f32 %v1071, %v1119
        %v1121 = vpop.f32.mrf.mxu0
        %v1122 = vpop.f32.mrf.mxu0
        %v1123 = vpop.f32.mrf.mxu0
        %1124 = vdwg.mxu0
        %v1125 = vpack.c.bf16 %v1120, %v1120
        %s1126 = scalar_lea.vmem %s6, 16
        %v1127 = vld [vmem:[%s1126] sm:$0xf]
        %v1128 = vld [vmem:[%s1126 + $0x4] sm:$0xf]
        %v1129 = vld [vmem:[%s1126 + $0x8] sm:$0xf]
        %v1130 = vld [vmem:[%s1126 + $0xc] sm:$0xf]
        %s1131 = scalar_lea.vmem %s7, 1
        %v1132 = vld [vmem:[%s1131] sm:$0x1]
        %v1134 = vlaneseq
        %v1135 = vshrl.u32 %v1134, 7
        %v1136 = vsub.s32 0, %v1135
        %v1137 = vrot.slane %v1132, %v1136
        %v1143 = vunpack.c.l.b16 %v1127
        %v1144 = vunpack.c.l.b16 %v1128
        %v1145 = vunpack.c.l.b16 %v1129
        %v1146 = vunpack.c.l.b16 %v1130
        %v1147 = vpack.c.b16 %v1144, %v1143
        %v1148 = vpack.c.b16 %v1146, %v1145
        %1151 = vmatprep.subr.bf16.mxu0 0
        %1152 = vmatpush1.bf16.msra.mxu0 0
        %1153 = vmatprep.subr.bf16.mxu0 0
        %1154 = vmatpush1.bf16.msra.mxu0 0
        %1155 = vmatprep.subr.bf16.mxu0 0
        %1156 = vmatpush1.bf16.msra.mxu0 0
        %1157 = vmatprep.subr.bf16.mxu0 0
        %1158 = vmatpush1.bf16.msra.mxu0 0
        %1159 = vmatprep.subr.bf16.mxu0 0
        %1160 = vmatpush1.bf16.msra.mxu0 0
        %1161 = vmatprep.subr.bf16.mxu0 0
        %1162 = vmatpush1.bf16.msra.mxu0 0
        %1163 = vmatprep.subr.bf16.mxu0 0
        %1164 = vmatpush1.bf16.msra.mxu0 %v1148
        %1165 = vmatprep.subr.bf16.mxu0 0
        %1166 = vmatpush1.bf16.msra.mxu0 %v1147
        %1167 = vmatprep.subr.bf16.mxu0 0
        %1168 = vmatpush2.bf16.msra.mxu0 0
        %1169 = vmatprep.subr.bf16.mxu0 0
        %1170 = vmatpush2.bf16.msra.mxu0 0
        %1171 = vmatprep.subr.bf16.mxu0 0
        %1172 = vmatpush2.bf16.msra.mxu0 0
        %1173 = vmatprep.subr.bf16.mxu0 0
        %1174 = vmatpush2.bf16.msra.mxu0 0
        %1175 = vmatprep.subr.bf16.mxu0 0
        %1176 = vmatpush2.bf16.msra.mxu0 0
        %1177 = vmatprep.subr.bf16.mxu0 0
        %1178 = vmatpush2.bf16.msra.mxu0 0
        %1179 = vmatprep.subr.bf16.mxu0 0
        %1180 = vmatpush2.bf16.msra.mxu0 0
        %1181 = vmatprep.subr.bf16.mxu0 0
        %1182 = vmatpush2.bf16.msra.mxu0 0
        %1183 = vmatprep.mubr.bf16.mxu0 0
        %1184 = vmatmul.mubr.bf16.gmra.mxu0 %v707
        %v1185 = vpop.f32.mrf.mxu0
        %v1186 = vadd.f32 %v1137, %v1185
        %v1187 = vpop.f32.mrf.mxu0
        %v1188 = vpop.f32.mrf.mxu0
        %v1189 = vpop.f32.mrf.mxu0
        %1190 = vdwg.mxu0
        %v1191 = vpack.c.bf16 %v1186, %v1186
        %v1193 = vsel %vm878, %v1059, 0
        %v1196 = vsel %vm878, %v1125, 0
        %1198 = vmatprep.subr.bf16.mxu0 0
        %1199 = vmatpush1.bf16.xpose.msra.mxu0 0
        %1200 = vmatprep.subr.bf16.mxu0 0
        %1201 = vmatpush1.bf16.xpose.msra.mxu0 0
        %1202 = vmatprep.subr.bf16.mxu0 0
        %1203 = vmatpush1.bf16.xpose.msra.mxu0 0
        %1204 = vmatprep.subr.bf16.mxu0 0
        %1205 = vmatpush1.bf16.xpose.msra.mxu0 0
        %1206 = vmatprep.subr.bf16.mxu0 0
        %1207 = vmatpush1.bf16.xpose.msra.mxu0 0
        %1208 = vmatprep.subr.bf16.mxu0 0
        %1209 = vmatpush1.bf16.xpose.msra.mxu0 0
        %1210 = vmatprep.subr.bf16.mxu0 0
        %1211 = vmatpush1.bf16.xpose.msra.mxu0 0
        %1212 = vmatprep.subr.bf16.mxu0 0
        %1213 = vmatpush1.bf16.xpose.msra.mxu0 %v1196
        %1214 = vmatprep.subr.bf16.mxu0 0
        %1215 = vmatpush2.bf16.xpose.msra.mxu0 0
        %1216 = vmatprep.subr.bf16.mxu0 0
        %1217 = vmatpush2.bf16.xpose.msra.mxu0 0
        %1218 = vmatprep.subr.bf16.mxu0 0
        %1219 = vmatpush2.bf16.xpose.msra.mxu0 0
        %1220 = vmatprep.subr.bf16.mxu0 0
        %1221 = vmatpush2.bf16.xpose.msra.mxu0 0
        %1222 = vmatprep.subr.bf16.mxu0 0
        %1223 = vmatpush2.bf16.xpose.msra.mxu0 0
        %1224 = vmatprep.subr.bf16.mxu0 0
        %1225 = vmatpush2.bf16.xpose.msra.mxu0 0
        %1226 = vmatprep.subr.bf16.mxu0 0
        %1227 = vmatpush2.bf16.xpose.msra.mxu0 0
        %1228 = vmatprep.subr.bf16.mxu0 0
        %1229 = vmatpush2.bf16.xpose.msra.mxu0 0
        %1230 = vmatprep.mubr.bf16.mxu0 0
        %1231 = vmatmul.mubr.bf16.gmra.mxu0 %v1193
        %v1232 = vpop.f32.mrf.mxu0
        %v1233 = vadd.f32 0.0, %v1232
        %v1234 = vpop.f32.mrf.mxu0
        %v1235 = vpop.f32.mrf.mxu0
        %v1236 = vpop.f32.mrf.mxu0
        %1237 = vdwg.mxu0
        %v1238 = vmul.f32 %v1233, 0.35355338
        %v1239 = vadd.f32 %v1238, %v930
        %v1240 = vsel %vm878, %v1239, -inf
        %1241 = vmax.xlane.f32.xlu0 %v1240
        %v1242 = vpop.xlane.xlu0 %1241
        %v1243 = vsub.f32 %v1239, %v1242
        %v1244 = vmul.f32 %v1243, 1.442695
        %v1245 = vpow.pop %v1244
        %v1246 = vsel %vm878, %v1245, 0.0
        %1247 = vadd.xlane.f32.xlu0 %v1246
        %v1248 = vpop.xlane.xlu0 %1247
        %v1249 = vpack.c.bf16 %v1245, %v1245
        %v1251 = vsel %vm878, %v1249, 0
        %v1254 = vsel %vm946, %v1191, 0
        %1256 = vmatprep.subr.bf16.mxu0 0
        %1257 = vmatpush1.bf16.msra.mxu0 0
        %1258 = vmatprep.subr.bf16.mxu0 0
        %1259 = vmatpush1.bf16.msra.mxu0 0
        %1260 = vmatprep.subr.bf16.mxu0 0
        %1261 = vmatpush1.bf16.msra.mxu0 0
        %1262 = vmatprep.subr.bf16.mxu0 0
        %1263 = vmatpush1.bf16.msra.mxu0 0
        %1264 = vmatprep.subr.bf16.mxu0 0
        %1265 = vmatpush1.bf16.msra.mxu0 0
        %1266 = vmatprep.subr.bf16.mxu0 0
        %1267 = vmatpush1.bf16.msra.mxu0 0
        %1268 = vmatprep.subr.bf16.mxu0 0
        %1269 = vmatpush1.bf16.msra.mxu0 0
        %1270 = vmatprep.subr.bf16.mxu0 0
        %1271 = vmatpush1.bf16.msra.mxu0 %v1254
        %1272 = vmatprep.subr.bf16.mxu0 0
        %1273 = vmatpush2.bf16.msra.mxu0 0
        %1274 = vmatprep.subr.bf16.mxu0 0
        %1275 = vmatpush2.bf16.msra.mxu0 0
        %1276 = vmatprep.subr.bf16.mxu0 0
        %1277 = vmatpush2.bf16.msra.mxu0 0
        %1278 = vmatprep.subr.bf16.mxu0 0
        %1279 = vmatpush2.bf16.msra.mxu0 0
        %1280 = vmatprep.subr.bf16.mxu0 0
        %1281 = vmatpush2.bf16.msra.mxu0 0
        %1282 = vmatprep.subr.bf16.mxu0 0
        %1283 = vmatpush2.bf16.msra.mxu0 0
        %1284 = vmatprep.subr.bf16.mxu0 0
        %1285 = vmatpush2.bf16.msra.mxu0 0
        %1286 = vmatprep.subr.bf16.mxu0 0
        %1287 = vmatpush2.bf16.msra.mxu0 0
        %1288 = vmatprep.mubr.bf16.mxu0 0
        %1289 = vmatmul.mubr.bf16.gmra.mxu0 %v1251
        %v1290 = vpop.f32.mrf.mxu0
        %v1291 = vadd.f32 0.0, %v1290
        %v1292 = vpop.f32.mrf.mxu0
        %v1293 = vpop.f32.mrf.mxu0
        %v1294 = vpop.f32.mrf.mxu0
        %1295 = vdwg.mxu0
        %v1296 = vrcp.pop %v1248
        %v1297 = vmul.f32 %v1291, %v1296
        %v1298 = vpack.c.bf16 %v1297, %v1297
        %s1299 = scalar_lea.vmem %s8, 4
        %v1300 = vld [vmem:[%s1299] sm:$0xf]
        %v1302 = vsel %vm878, %v1298, 0
        %v1305 = vsel %vm946, %v1300, 0
        %1307 = vmatprep.subr.bf16.mxu0 0
        %1308 = vmatpush1.bf16.msra.mxu0 0
        %1309 = vmatprep.subr.bf16.mxu0 0
        %1310 = vmatpush1.bf16.msra.mxu0 0
        %1311 = vmatprep.subr.bf16.mxu0 0
        %1312 = vmatpush1.bf16.msra.mxu0 0
        %1313 = vmatprep.subr.bf16.mxu0 0
        %1314 = vmatpush1.bf16.msra.mxu0 0
        %1315 = vmatprep.subr.bf16.mxu0 0
        %1316 = vmatpush1.bf16.msra.mxu0 0
        %1317 = vmatprep.subr.bf16.mxu0 0
        %1318 = vmatpush1.bf16.msra.mxu0 0
        %1319 = vmatprep.subr.bf16.mxu0 0
        %1320 = vmatpush1.bf16.msra.mxu0 0
        %1321 = vmatprep.subr.bf16.mxu0 0
        %1322 = vmatpush1.bf16.msra.mxu0 %v1305
        %1323 = vmatprep.subr.bf16.mxu0 0
        %1324 = vmatpush2.bf16.msra.mxu0 0
        %1325 = vmatprep.subr.bf16.mxu0 0
        %1326 = vmatpush2.bf16.msra.mxu0 0
        %1327 = vmatprep.subr.bf16.mxu0 0
        %1328 = vmatpush2.bf16.msra.mxu0 0
        %1329 = vmatprep.subr.bf16.mxu0 0
        %1330 = vmatpush2.bf16.msra.mxu0 0
        %1331 = vmatprep.subr.bf16.mxu0 0
        %1332 = vmatpush2.bf16.msra.mxu0 0
        %1333 = vmatprep.subr.bf16.mxu0 0
        %1334 = vmatpush2.bf16.msra.mxu0 0
        %1335 = vmatprep.subr.bf16.mxu0 0
        %1336 = vmatpush2.bf16.msra.mxu0 0
        %1337 = vmatprep.subr.bf16.mxu0 0
        %1338 = vmatpush2.bf16.msra.mxu0 0
        %1339 = vmatprep.mubr.bf16.mxu0 0
        %1340 = vmatmul.mubr.bf16.gmra.mxu0 %v1302
        %v1341 = vpop.f32.mrf.mxu0
        %v1342 = vadd.f32 0.0, %v1341
        %v1343 = vpop.f32.mrf.mxu0
        %v1344 = vpop.f32.mrf.mxu0
        %v1345 = vpop.f32.mrf.mxu0
        %1346 = vdwg.mxu0
        %v1348 = vsel %vm878, %v992, 0
        %v1351 = vsel %vm946, %v993, 0
        %1353 = vmatprep.subr.bf16.mxu0 0
        %1354 = vmatpush1.bf16.msra.mxu0 0
        %1355 = vmatprep.subr.bf16.mxu0 0
        %1356 = vmatpush1.bf16.msra.mxu0 0
        %1357 = vmatprep.subr.bf16.mxu0 0
        %1358 = vmatpush1.bf16.msra.mxu0 0
        %1359 = vmatprep.subr.bf16.mxu0 0
        %1360 = vmatpush1.bf16.msra.mxu0 0
        %1361 = vmatprep.subr.bf16.mxu0 0
        %1362 = vmatpush1.bf16.msra.mxu0 0
        %1363 = vmatprep.subr.bf16.mxu0 0
        %1364 = vmatpush1.bf16.msra.mxu0 0
        %1365 = vmatprep.subr.bf16.mxu0 0
        %1366 = vmatpush1.bf16.msra.mxu0 0
        %1367 = vmatprep.subr.bf16.mxu0 0
        %1368 = vmatpush1.bf16.msra.mxu0 %v1351
        %1369 = vmatprep.subr.bf16.mxu0 0
        %1370 = vmatpush2.bf16.msra.mxu0 0
        %1371 = vmatprep.subr.bf16.mxu0 0
        %1372 = vmatpush2.bf16.msra.mxu0 0
        %1373 = vmatprep.subr.bf16.mxu0 0
        %1374 = vmatpush2.bf16.msra.mxu0 0
        %1375 = vmatprep.subr.bf16.mxu0 0
        %1376 = vmatpush2.bf16.msra.mxu0 0
        %1377 = vmatprep.subr.bf16.mxu0 0
        %1378 = vmatpush2.bf16.msra.mxu0 0
        %1379 = vmatprep.subr.bf16.mxu0 0
        %1380 = vmatpush2.bf16.msra.mxu0 0
        %1381 = vmatprep.subr.bf16.mxu0 0
        %1382 = vmatpush2.bf16.msra.mxu0 0
        %1383 = vmatprep.subr.bf16.mxu0 0
        %1384 = vmatpush2.bf16.msra.mxu0 0
        %1385 = vmatprep.mubr.bf16.mxu0 0
        %1386 = vmatmul.mubr.bf16.gmra.mxu0 %v1348
        %v1387 = vpop.f32.mrf.mxu0
        %v1388 = vadd.f32 %v1342, %v1387
        %v1389 = vpop.f32.mrf.mxu0
        %v1390 = vpop.f32.mrf.mxu0
        %v1391 = vpop.f32.mrf.mxu0
        %1392 = vdwg.mxu0
        %s1393 = scalar_lea.vmem %s2, 32
        %v1394 = vld [vmem:[%s1393] sm:$0xf]
        %v1395 = vld [vmem:[%s1393 + $0x4] sm:$0xf]
        %v1396 = vld [vmem:[%s1393 + $0x8] sm:$0xf]
        %v1397 = vld [vmem:[%s1393 + $0xc] sm:$0xf]
        %s1398 = scalar_lea.vmem %s3, 2
        %v1399 = vld [vmem:[%s1398] sm:$0x1]
        %v1401 = vlaneseq
        %v1402 = vshrl.u32 %v1401, 7
        %v1403 = vsub.s32 0, %v1402
        %v1404 = vrot.slane %v1399, %v1403
        %v1410 = vunpack.c.l.b16 %v1394
        %v1411 = vunpack.c.l.b16 %v1395
        %v1412 = vunpack.c.l.b16 %v1396
        %v1413 = vunpack.c.l.b16 %v1397
        %v1414 = vpack.c.b16 %v1411, %v1410
        %v1415 = vpack.c.b16 %v1413, %v1412
        %1418 = vmatprep.subr.bf16.mxu0 0
        %1419 = vmatpush1.bf16.msra.mxu0 0
        %1420 = vmatprep.subr.bf16.mxu0 0
        %1421 = vmatpush1.bf16.msra.mxu0 0
        %1422 = vmatprep.subr.bf16.mxu0 0
        %1423 = vmatpush1.bf16.msra.mxu0 0
        %1424 = vmatprep.subr.bf16.mxu0 0
        %1425 = vmatpush1.bf16.msra.mxu0 0
        %1426 = vmatprep.subr.bf16.mxu0 0
        %1427 = vmatpush1.bf16.msra.mxu0 0
        %1428 = vmatprep.subr.bf16.mxu0 0
        %1429 = vmatpush1.bf16.msra.mxu0 0
        %1430 = vmatprep.subr.bf16.mxu0 0
        %1431 = vmatpush1.bf16.msra.mxu0 %v1415
        %1432 = vmatprep.subr.bf16.mxu0 0
        %1433 = vmatpush1.bf16.msra.mxu0 %v1414
        %1434 = vmatprep.subr.bf16.mxu0 0
        %1435 = vmatpush2.bf16.msra.mxu0 0
        %1436 = vmatprep.subr.bf16.mxu0 0
        %1437 = vmatpush2.bf16.msra.mxu0 0
        %1438 = vmatprep.subr.bf16.mxu0 0
        %1439 = vmatpush2.bf16.msra.mxu0 0
        %1440 = vmatprep.subr.bf16.mxu0 0
        %1441 = vmatpush2.bf16.msra.mxu0 0
        %1442 = vmatprep.subr.bf16.mxu0 0
        %1443 = vmatpush2.bf16.msra.mxu0 0
        %1444 = vmatprep.subr.bf16.mxu0 0
        %1445 = vmatpush2.bf16.msra.mxu0 0
        %1446 = vmatprep.subr.bf16.mxu0 0
        %1447 = vmatpush2.bf16.msra.mxu0 0
        %1448 = vmatprep.subr.bf16.mxu0 0
        %1449 = vmatpush2.bf16.msra.mxu0 0
        %1450 = vmatprep.mubr.bf16.mxu0 0
        %1451 = vmatmul.mubr.bf16.gmra.mxu0 %v707
        %v1452 = vpop.f32.mrf.mxu0
        %v1453 = vadd.f32 %v1404, %v1452
        %v1454 = vpop.f32.mrf.mxu0
        %v1455 = vpop.f32.mrf.mxu0
        %v1456 = vpop.f32.mrf.mxu0
        %1457 = vdwg.mxu0
        %v1458 = vpack.c.bf16 %v1453, %v1453
        %s1459 = scalar_lea.vmem %s4, 32
        %v1460 = vld [vmem:[%s1459] sm:$0xf]
        %v1461 = vld [vmem:[%s1459 + $0x4] sm:$0xf]
        %v1462 = vld [vmem:[%s1459 + $0x8] sm:$0xf]
        %v1463 = vld [vmem:[%s1459 + $0xc] sm:$0xf]
        %s1464 = scalar_lea.vmem %s5, 2
        %v1465 = vld [vmem:[%s1464] sm:$0x1]
        %v1467 = vlaneseq
        %v1468 = vshrl.u32 %v1467, 7
        %v1469 = vsub.s32 0, %v1468
        %v1470 = vrot.slane %v1465, %v1469
        %v1476 = vunpack.c.l.b16 %v1460
        %v1477 = vunpack.c.l.b16 %v1461
        %v1478 = vunpack.c.l.b16 %v1462
        %v1479 = vunpack.c.l.b16 %v1463
        %v1480 = vpack.c.b16 %v1477, %v1476
        %v1481 = vpack.c.b16 %v1479, %v1478
        %1484 = vmatprep.subr.bf16.mxu0 0
        %1485 = vmatpush1.bf16.msra.mxu0 0
        %1486 = vmatprep.subr.bf16.mxu0 0
        %1487 = vmatpush1.bf16.msra.mxu0 0
        %1488 = vmatprep.subr.bf16.mxu0 0
        %1489 = vmatpush1.bf16.msra.mxu0 0
        %1490 = vmatprep.subr.bf16.mxu0 0
        %1491 = vmatpush1.bf16.msra.mxu0 0
        %1492 = vmatprep.subr.bf16.mxu0 0
        %1493 = vmatpush1.bf16.msra.mxu0 0
        %1494 = vmatprep.subr.bf16.mxu0 0
        %1495 = vmatpush1.bf16.msra.mxu0 0
        %1496 = vmatprep.subr.bf16.mxu0 0
        %1497 = vmatpush1.bf16.msra.mxu0 %v1481
        %1498 = vmatprep.subr.bf16.mxu0 0
        %1499 = vmatpush1.bf16.msra.mxu0 %v1480
        %1500 = vmatprep.subr.bf16.mxu0 0
        %1501 = vmatpush2.bf16.msra.mxu0 0
        %1502 = vmatprep.subr.bf16.mxu0 0
        %1503 = vmatpush2.bf16.msra.mxu0 0
        %1504 = vmatprep.subr.bf16.mxu0 0
        %1505 = vmatpush2.bf16.msra.mxu0 0
        %1506 = vmatprep.subr.bf16.mxu0 0
        %1507 = vmatpush2.bf16.msra.mxu0 0
        %1508 = vmatprep.subr.bf16.mxu0 0
        %1509 = vmatpush2.bf16.msra.mxu0 0
        %1510 = vmatprep.subr.bf16.mxu0 0
        %1511 = vmatpush2.bf16.msra.mxu0 0
        %1512 = vmatprep.subr.bf16.mxu0 0
        %1513 = vmatpush2.bf16.msra.mxu0 0
        %1514 = vmatprep.subr.bf16.mxu0 0
        %1515 = vmatpush2.bf16.msra.mxu0 0
        %1516 = vmatprep.mubr.bf16.mxu0 0
        %1517 = vmatmul.mubr.bf16.gmra.mxu0 %v707
        %v1518 = vpop.f32.mrf.mxu0
        %v1519 = vadd.f32 %v1470, %v1518
        %v1520 = vpop.f32.mrf.mxu0
        %v1521 = vpop.f32.mrf.mxu0
        %v1522 = vpop.f32.mrf.mxu0
        %1523 = vdwg.mxu0
        %v1524 = vpack.c.bf16 %v1519, %v1519
        %s1525 = scalar_lea.vmem %s6, 32
        %v1526 = vld [vmem:[%s1525] sm:$0xf]
        %v1527 = vld [vmem:[%s1525 + $0x4] sm:$0xf]
        %v1528 = vld [vmem:[%s1525 + $0x8] sm:$0xf]
        %v1529 = vld [vmem:[%s1525 + $0xc] sm:$0xf]
        %s1530 = scalar_lea.vmem %s7, 2
        %v1531 = vld [vmem:[%s1530] sm:$0x1]
        %v1533 = vlaneseq
        %v1534 = vshrl.u32 %v1533, 7
        %v1535 = vsub.s32 0, %v1534
        %v1536 = vrot.slane %v1531, %v1535
        %v1542 = vunpack.c.l.b16 %v1526
        %v1543 = vunpack.c.l.b16 %v1527
        %v1544 = vunpack.c.l.b16 %v1528
        %v1545 = vunpack.c.l.b16 %v1529
        %v1546 = vpack.c.b16 %v1543, %v1542
        %v1547 = vpack.c.b16 %v1545, %v1544
        %1550 = vmatprep.subr.bf16.mxu0 0
        %1551 = vmatpush1.bf16.msra.mxu0 0
        %1552 = vmatprep.subr.bf16.mxu0 0
        %1553 = vmatpush1.bf16.msra.mxu0 0
        %1554 = vmatprep.subr.bf16.mxu0 0
        %1555 = vmatpush1.bf16.msra.mxu0 0
        %1556 = vmatprep.subr.bf16.mxu0 0
        %1557 = vmatpush1.bf16.msra.mxu0 0
        %1558 = vmatprep.subr.bf16.mxu0 0
        %1559 = vmatpush1.bf16.msra.mxu0 0
        %1560 = vmatprep.subr.bf16.mxu0 0
        %1561 = vmatpush1.bf16.msra.mxu0 0
        %1562 = vmatprep.subr.bf16.mxu0 0
        %1563 = vmatpush1.bf16.msra.mxu0 %v1547
        %1564 = vmatprep.subr.bf16.mxu0 0
        %1565 = vmatpush1.bf16.msra.mxu0 %v1546
        %1566 = vmatprep.subr.bf16.mxu0 0
        %1567 = vmatpush2.bf16.msra.mxu0 0
        %1568 = vmatprep.subr.bf16.mxu0 0
        %1569 = vmatpush2.bf16.msra.mxu0 0
        %1570 = vmatprep.subr.bf16.mxu0 0
        %1571 = vmatpush2.bf16.msra.mxu0 0
        %1572 = vmatprep.subr.bf16.mxu0 0
        %1573 = vmatpush2.bf16.msra.mxu0 0
        %1574 = vmatprep.subr.bf16.mxu0 0
        %1575 = vmatpush2.bf16.msra.mxu0 0
        %1576 = vmatprep.subr.bf16.mxu0 0
        %1577 = vmatpush2.bf16.msra.mxu0 0
        %1578 = vmatprep.subr.bf16.mxu0 0
        %1579 = vmatpush2.bf16.msra.mxu0 0
        %1580 = vmatprep.subr.bf16.mxu0 0
        %1581 = vmatpush2.bf16.msra.mxu0 0
        %1582 = vmatprep.mubr.bf16.mxu0 0
        %1583 = vmatmul.mubr.bf16.gmra.mxu0 %v707
        %v1584 = vpop.f32.mrf.mxu0
        %v1585 = vadd.f32 %v1536, %v1584
        %v1586 = vpop.f32.mrf.mxu0
        %v1587 = vpop.f32.mrf.mxu0
        %v1588 = vpop.f32.mrf.mxu0
        %1589 = vdwg.mxu0
        %v1590 = vpack.c.bf16 %v1585, %v1585
        %v1592 = vsel %vm878, %v1458, 0
        %v1595 = vsel %vm878, %v1524, 0
        %1597 = vmatprep.subr.bf16.mxu0 0
        %1598 = vmatpush1.bf16.xpose.msra.mxu0 0
        %1599 = vmatprep.subr.bf16.mxu0 0
        %1600 = vmatpush1.bf16.xpose.msra.mxu0 0
        %1601 = vmatprep.subr.bf16.mxu0 0
        %1602 = vmatpush1.bf16.xpose.msra.mxu0 0
        %1603 = vmatprep.subr.bf16.mxu0 0
        %1604 = vmatpush1.bf16.xpose.msra.mxu0 0
        %1605 = vmatprep.subr.bf16.mxu0 0
        %1606 = vmatpush1.bf16.xpose.msra.mxu0 0
        %1607 = vmatprep.subr.bf16.mxu0 0
        %1608 = vmatpush1.bf16.xpose.msra.mxu0 0
        %1609 = vmatprep.subr.bf16.mxu0 0
        %1610 = vmatpush1.bf16.xpose.msra.mxu0 0
        %1611 = vmatprep.subr.bf16.mxu0 0
        %1612 = vmatpush1.bf16.xpose.msra.mxu0 %v1595
        %1613 = vmatprep.subr.bf16.mxu0 0
        %1614 = vmatpush2.bf16.xpose.msra.mxu0 0
        %1615 = vmatprep.subr.bf16.mxu0 0
        %1616 = vmatpush2.bf16.xpose.msra.mxu0 0
        %1617 = vmatprep.subr.bf16.mxu0 0
        %1618 = vmatpush2.bf16.xpose.msra.mxu0 0
        %1619 = vmatprep.subr.bf16.mxu0 0
        %1620 = vmatpush2.bf16.xpose.msra.mxu0 0
        %1621 = vmatprep.subr.bf16.mxu0 0
        %1622 = vmatpush2.bf16.xpose.msra.mxu0 0
        %1623 = vmatprep.subr.bf16.mxu0 0
        %1624 = vmatpush2.bf16.xpose.msra.mxu0 0
        %1625 = vmatprep.subr.bf16.mxu0 0
        %1626 = vmatpush2.bf16.xpose.msra.mxu0 0
        %1627 = vmatprep.subr.bf16.mxu0 0
        %1628 = vmatpush2.bf16.xpose.msra.mxu0 0
        %1629 = vmatprep.mubr.bf16.mxu0 0
        %1630 = vmatmul.mubr.bf16.gmra.mxu0 %v1592
        %v1631 = vpop.f32.mrf.mxu0
        %v1632 = vadd.f32 0.0, %v1631
        %v1633 = vpop.f32.mrf.mxu0
        %v1634 = vpop.f32.mrf.mxu0
        %v1635 = vpop.f32.mrf.mxu0
        %1636 = vdwg.mxu0
        %v1637 = vmul.f32 %v1632, 0.35355338
        %v1638 = vadd.f32 %v1637, %v930
        %v1639 = vsel %vm878, %v1638, -inf
        %1640 = vmax.xlane.f32.xlu0 %v1639
        %v1641 = vpop.xlane.xlu0 %1640
        %v1642 = vsub.f32 %v1638, %v1641
        %v1643 = vmul.f32 %v1642, 1.442695
        %v1644 = vpow.pop %v1643
        %v1645 = vsel %vm878, %v1644, 0.0
        %1646 = vadd.xlane.f32.xlu0 %v1645
        %v1647 = vpop.xlane.xlu0 %1646
        %v1648 = vpack.c.bf16 %v1644, %v1644
        %v1650 = vsel %vm878, %v1648, 0
        %v1653 = vsel %vm946, %v1590, 0
        %1655 = vmatprep.subr.bf16.mxu0 0
        %1656 = vmatpush1.bf16.msra.mxu0 0
        %1657 = vmatprep.subr.bf16.mxu0 0
        %1658 = vmatpush1.bf16.msra.mxu0 0
        %1659 = vmatprep.subr.bf16.mxu0 0
        %1660 = vmatpush1.bf16.msra.mxu0 0
        %1661 = vmatprep.subr.bf16.mxu0 0
        %1662 = vmatpush1.bf16.msra.mxu0 0
        %1663 = vmatprep.subr.bf16.mxu0 0
        %1664 = vmatpush1.bf16.msra.mxu0 0
        %1665 = vmatprep.subr.bf16.mxu0 0
        %1666 = vmatpush1.bf16.msra.mxu0 0
        %1667 = vmatprep.subr.bf16.mxu0 0
        %1668 = vmatpush1.bf16.msra.mxu0 0
        %1669 = vmatprep.subr.bf16.mxu0 0
        %1670 = vmatpush1.bf16.msra.mxu0 %v1653
        %1671 = vmatprep.subr.bf16.mxu0 0
        %1672 = vmatpush2.bf16.msra.mxu0 0
        %1673 = vmatprep.subr.bf16.mxu0 0
        %1674 = vmatpush2.bf16.msra.mxu0 0
        %1675 = vmatprep.subr.bf16.mxu0 0
        %1676 = vmatpush2.bf16.msra.mxu0 0
        %1677 = vmatprep.subr.bf16.mxu0 0
        %1678 = vmatpush2.bf16.msra.mxu0 0
        %1679 = vmatprep.subr.bf16.mxu0 0
        %1680 = vmatpush2.bf16.msra.mxu0 0
        %1681 = vmatprep.subr.bf16.mxu0 0
        %1682 = vmatpush2.bf16.msra.mxu0 0
        %1683 = vmatprep.subr.bf16.mxu0 0
        %1684 = vmatpush2.bf16.msra.mxu0 0
        %1685 = vmatprep.subr.bf16.mxu0 0
        %1686 = vmatpush2.bf16.msra.mxu0 0
        %1687 = vmatprep.mubr.bf16.mxu0 0
        %1688 = vmatmul.mubr.bf16.gmra.mxu0 %v1650
        %v1689 = vpop.f32.mrf.mxu0
        %v1690 = vadd.f32 0.0, %v1689
        %v1691 = vpop.f32.mrf.mxu0
        %v1692 = vpop.f32.mrf.mxu0
        %v1693 = vpop.f32.mrf.mxu0
        %1694 = vdwg.mxu0
        %v1695 = vrcp.pop %v1647
        %v1696 = vmul.f32 %v1690, %v1695
        %v1697 = vpack.c.bf16 %v1696, %v1696
        %s1698 = scalar_lea.vmem %s8, 8
        %v1699 = vld [vmem:[%s1698] sm:$0xf]
        %v1701 = vsel %vm878, %v1697, 0
        %v1704 = vsel %vm946, %v1699, 0
        %1706 = vmatprep.subr.bf16.mxu0 0
        %1707 = vmatpush1.bf16.msra.mxu0 0
        %1708 = vmatprep.subr.bf16.mxu0 0
        %1709 = vmatpush1.bf16.msra.mxu0 0
        %1710 = vmatprep.subr.bf16.mxu0 0
        %1711 = vmatpush1.bf16.msra.mxu0 0
        %1712 = vmatprep.subr.bf16.mxu0 0
        %1713 = vmatpush1.bf16.msra.mxu0 0
        %1714 = vmatprep.subr.bf16.mxu0 0
        %1715 = vmatpush1.bf16.msra.mxu0 0
        %1716 = vmatprep.subr.bf16.mxu0 0
        %1717 = vmatpush1.bf16.msra.mxu0 0
        %1718 = vmatprep.subr.bf16.mxu0 0
        %1719 = vmatpush1.bf16.msra.mxu0 0
        %1720 = vmatprep.subr.bf16.mxu0 0
        %1721 = vmatpush1.bf16.msra.mxu0 %v1704
        %1722 = vmatprep.subr.bf16.mxu0 0
        %1723 = vmatpush2.bf16.msra.mxu0 0
        %1724 = vmatprep.subr.bf16.mxu0 0
        %1725 = vmatpush2.bf16.msra.mxu0 0
        %1726 = vmatprep.subr.bf16.mxu0 0
        %1727 = vmatpush2.bf16.msra.mxu0 0
        %1728 = vmatprep.subr.bf16.mxu0 0
        %1729 = vmatpush2.bf16.msra.mxu0 0
        %1730 = vmatprep.subr.bf16.mxu0 0
        %1731 = vmatpush2.bf16.msra.mxu0 0
        %1732 = vmatprep.subr.bf16.mxu0 0
        %1733 = vmatpush2.bf16.msra.mxu0 0
        %1734 = vmatprep.subr.bf16.mxu0 0
        %1735 = vmatpush2.bf16.msra.mxu0 0
        %1736 = vmatprep.subr.bf16.mxu0 0
        %1737 = vmatpush2.bf16.msra.mxu0 0
        %1738 = vmatprep.mubr.bf16.mxu0 0
        %1739 = vmatmul.mubr.bf16.gmra.mxu0 %v1701
        %v1740 = vpop.f32.mrf.mxu0
        %v1741 = vadd.f32 0.0, %v1740
        %v1742 = vpop.f32.mrf.mxu0
        %v1743 = vpop.f32.mrf.mxu0
        %v1744 = vpop.f32.mrf.mxu0
        %1745 = vdwg.mxu0
        %v1746 = vadd.f32 %v1388, %v1741
        %s1747 = scalar_lea.vmem %s2, 48
        %v1748 = vld [vmem:[%s1747] sm:$0xf]
        %v1749 = vld [vmem:[%s1747 + $0x4] sm:$0xf]
        %v1750 = vld [vmem:[%s1747 + $0x8] sm:$0xf]
        %v1751 = vld [vmem:[%s1747 + $0xc] sm:$0xf]
        %s1752 = scalar_lea.vmem %s3, 3
        %v1753 = vld [vmem:[%s1752] sm:$0x1]
        %v1755 = vlaneseq
        %v1756 = vshrl.u32 %v1755, 7
        %v1757 = vsub.s32 0, %v1756
        %v1758 = vrot.slane %v1753, %v1757
        %v1764 = vunpack.c.l.b16 %v1748
        %v1765 = vunpack.c.l.b16 %v1749
        %v1766 = vunpack.c.l.b16 %v1750
        %v1767 = vunpack.c.l.b16 %v1751
        %v1768 = vpack.c.b16 %v1765, %v1764
        %v1769 = vpack.c.b16 %v1767, %v1766
        %1772 = vmatprep.subr.bf16.mxu0 0
        %1773 = vmatpush1.bf16.msra.mxu0 0
        %1774 = vmatprep.subr.bf16.mxu0 0
        %1775 = vmatpush1.bf16.msra.mxu0 0
        %1776 = vmatprep.subr.bf16.mxu0 0
        %1777 = vmatpush1.bf16.msra.mxu0 0
        %1778 = vmatprep.subr.bf16.mxu0 0
        %1779 = vmatpush1.bf16.msra.mxu0 0
        %1780 = vmatprep.subr.bf16.mxu0 0
        %1781 = vmatpush1.bf16.msra.mxu0 0
        %1782 = vmatprep.subr.bf16.mxu0 0
        %1783 = vmatpush1.bf16.msra.mxu0 0
        %1784 = vmatprep.subr.bf16.mxu0 0
        %1785 = vmatpush1.bf16.msra.mxu0 %v1769
        %1786 = vmatprep.subr.bf16.mxu0 0
        %1787 = vmatpush1.bf16.msra.mxu0 %v1768
        %1788 = vmatprep.subr.bf16.mxu0 0
        %1789 = vmatpush2.bf16.msra.mxu0 0
        %1790 = vmatprep.subr.bf16.mxu0 0
        %1791 = vmatpush2.bf16.msra.mxu0 0
        %1792 = vmatprep.subr.bf16.mxu0 0
        %1793 = vmatpush2.bf16.msra.mxu0 0
        %1794 = vmatprep.subr.bf16.mxu0 0
        %1795 = vmatpush2.bf16.msra.mxu0 0
        %1796 = vmatprep.subr.bf16.mxu0 0
        %1797 = vmatpush2.bf16.msra.mxu0 0
        %1798 = vmatprep.subr.bf16.mxu0 0
        %1799 = vmatpush2.bf16.msra.mxu0 0
        %1800 = vmatprep.subr.bf16.mxu0 0
        %1801 = vmatpush2.bf16.msra.mxu0 0
        %1802 = vmatprep.subr.bf16.mxu0 0
        %1803 = vmatpush2.bf16.msra.mxu0 0
        %1804 = vmatprep.mubr.bf16.mxu0 0
        %1805 = vmatmul.mubr.bf16.gmra.mxu0 %v707
        %v1806 = vpop.f32.mrf.mxu0
        %v1807 = vadd.f32 %v1758, %v1806
        %v1808 = vpop.f32.mrf.mxu0
        %v1809 = vpop.f32.mrf.mxu0
        %v1810 = vpop.f32.mrf.mxu0
        %1811 = vdwg.mxu0
        %v1812 = vpack.c.bf16 %v1807, %v1807
        %s1813 = scalar_lea.vmem %s4, 48
        %v1814 = vld [vmem:[%s1813] sm:$0xf]
        %v1815 = vld [vmem:[%s1813 + $0x4] sm:$0xf]
        %v1816 = vld [vmem:[%s1813 + $0x8] sm:$0xf]
        %v1817 = vld [vmem:[%s1813 + $0xc] sm:$0xf]
        %s1818 = scalar_lea.vmem %s5, 3
        %v1819 = vld [vmem:[%s1818] sm:$0x1]
        %v1821 = vlaneseq
        %v1822 = vshrl.u32 %v1821, 7
        %v1823 = vsub.s32 0, %v1822
        %v1824 = vrot.slane %v1819, %v1823
        %v1830 = vunpack.c.l.b16 %v1814
        %v1831 = vunpack.c.l.b16 %v1815
        %v1832 = vunpack.c.l.b16 %v1816
        %v1833 = vunpack.c.l.b16 %v1817
        %v1834 = vpack.c.b16 %v1831, %v1830
        %v1835 = vpack.c.b16 %v1833, %v1832
        %1838 = vmatprep.subr.bf16.mxu0 0
        %1839 = vmatpush1.bf16.msra.mxu0 0
        %1840 = vmatprep.subr.bf16.mxu0 0
        %1841 = vmatpush1.bf16.msra.mxu0 0
        %1842 = vmatprep.subr.bf16.mxu0 0
        %1843 = vmatpush1.bf16.msra.mxu0 0
        %1844 = vmatprep.subr.bf16.mxu0 0
        %1845 = vmatpush1.bf16.msra.mxu0 0
        %1846 = vmatprep.subr.bf16.mxu0 0
        %1847 = vmatpush1.bf16.msra.mxu0 0
        %1848 = vmatprep.subr.bf16.mxu0 0
        %1849 = vmatpush1.bf16.msra.mxu0 0
        %1850 = vmatprep.subr.bf16.mxu0 0
        %1851 = vmatpush1.bf16.msra.mxu0 %v1835
        %1852 = vmatprep.subr.bf16.mxu0 0
        %1853 = vmatpush1.bf16.msra.mxu0 %v1834
        %1854 = vmatprep.subr.bf16.mxu0 0
        %1855 = vmatpush2.bf16.msra.mxu0 0
        %1856 = vmatprep.subr.bf16.mxu0 0
        %1857 = vmatpush2.bf16.msra.mxu0 0
        %1858 = vmatprep.subr.bf16.mxu0 0
        %1859 = vmatpush2.bf16.msra.mxu0 0
        %1860 = vmatprep.subr.bf16.mxu0 0
        %1861 = vmatpush2.bf16.msra.mxu0 0
        %1862 = vmatprep.subr.bf16.mxu0 0
        %1863 = vmatpush2.bf16.msra.mxu0 0
        %1864 = vmatprep.subr.bf16.mxu0 0
        %1865 = vmatpush2.bf16.msra.mxu0 0
        %1866 = vmatprep.subr.bf16.mxu0 0
        %1867 = vmatpush2.bf16.msra.mxu0 0
        %1868 = vmatprep.subr.bf16.mxu0 0
        %1869 = vmatpush2.bf16.msra.mxu0 0
        %1870 = vmatprep.mubr.bf16.mxu0 0
        %1871 = vmatmul.mubr.bf16.gmra.mxu0 %v707
        %v1872 = vpop.f32.mrf.mxu0
        %v1873 = vadd.f32 %v1824, %v1872
        %v1874 = vpop.f32.mrf.mxu0
        %v1875 = vpop.f32.mrf.mxu0
        %v1876 = vpop.f32.mrf.mxu0
        %1877 = vdwg.mxu0
        %v1878 = vpack.c.bf16 %v1873, %v1873
        %s1879 = scalar_lea.vmem %s6, 48
        %v1880 = vld [vmem:[%s1879] sm:$0xf]
        %v1881 = vld [vmem:[%s1879 + $0x4] sm:$0xf]
        %v1882 = vld [vmem:[%s1879 + $0x8] sm:$0xf]
        %v1883 = vld [vmem:[%s1879 + $0xc] sm:$0xf]
        %s1884 = scalar_lea.vmem %s7, 3
        %v1885 = vld [vmem:[%s1884] sm:$0x1]
        %v1887 = vlaneseq
        %v1888 = vshrl.u32 %v1887, 7
        %v1889 = vsub.s32 0, %v1888
        %v1890 = vrot.slane %v1885, %v1889
        %v1896 = vunpack.c.l.b16 %v1880
        %v1897 = vunpack.c.l.b16 %v1881
        %v1898 = vunpack.c.l.b16 %v1882
        %v1899 = vunpack.c.l.b16 %v1883
        %v1900 = vpack.c.b16 %v1897, %v1896
        %v1901 = vpack.c.b16 %v1899, %v1898
        %1904 = vmatprep.subr.bf16.mxu0 0
        %1905 = vmatpush1.bf16.msra.mxu0 0
        %1906 = vmatprep.subr.bf16.mxu0 0
        %1907 = vmatpush1.bf16.msra.mxu0 0
        %1908 = vmatprep.subr.bf16.mxu0 0
        %1909 = vmatpush1.bf16.msra.mxu0 0
        %1910 = vmatprep.subr.bf16.mxu0 0
        %1911 = vmatpush1.bf16.msra.mxu0 0
        %1912 = vmatprep.subr.bf16.mxu0 0
        %1913 = vmatpush1.bf16.msra.mxu0 0
        %1914 = vmatprep.subr.bf16.mxu0 0
        %1915 = vmatpush1.bf16.msra.mxu0 0
        %1916 = vmatprep.subr.bf16.mxu0 0
        %1917 = vmatpush1.bf16.msra.mxu0 %v1901
        %1918 = vmatprep.subr.bf16.mxu0 0
        %1919 = vmatpush1.bf16.msra.mxu0 %v1900
        %1920 = vmatprep.subr.bf16.mxu0 0
        %1921 = vmatpush2.bf16.msra.mxu0 0
        %1922 = vmatprep.subr.bf16.mxu0 0
        %1923 = vmatpush2.bf16.msra.mxu0 0
        %1924 = vmatprep.subr.bf16.mxu0 0
        %1925 = vmatpush2.bf16.msra.mxu0 0
        %1926 = vmatprep.subr.bf16.mxu0 0
        %1927 = vmatpush2.bf16.msra.mxu0 0
        %1928 = vmatprep.subr.bf16.mxu0 0
        %1929 = vmatpush2.bf16.msra.mxu0 0
        %1930 = vmatprep.subr.bf16.mxu0 0
        %1931 = vmatpush2.bf16.msra.mxu0 0
        %1932 = vmatprep.subr.bf16.mxu0 0
        %1933 = vmatpush2.bf16.msra.mxu0 0
        %1934 = vmatprep.subr.bf16.mxu0 0
        %1935 = vmatpush2.bf16.msra.mxu0 0
        %1936 = vmatprep.mubr.bf16.mxu0 0
        %1937 = vmatmul.mubr.bf16.gmra.mxu0 %v707
        %v1938 = vpop.f32.mrf.mxu0
        %v1939 = vadd.f32 %v1890, %v1938
        %v1940 = vpop.f32.mrf.mxu0
        %v1941 = vpop.f32.mrf.mxu0
        %v1942 = vpop.f32.mrf.mxu0
        %1943 = vdwg.mxu0
        %v1944 = vpack.c.bf16 %v1939, %v1939
        %v1946 = vsel %vm878, %v1812, 0
        %v1949 = vsel %vm878, %v1878, 0
        %1951 = vmatprep.subr.bf16.mxu0 0
        %1952 = vmatpush1.bf16.xpose.msra.mxu0 0
        %1953 = vmatprep.subr.bf16.mxu0 0
        %1954 = vmatpush1.bf16.xpose.msra.mxu0 0
        %1955 = vmatprep.subr.bf16.mxu0 0
        %1956 = vmatpush1.bf16.xpose.msra.mxu0 0
        %1957 = vmatprep.subr.bf16.mxu0 0
        %1958 = vmatpush1.bf16.xpose.msra.mxu0 0
        %1959 = vmatprep.subr.bf16.mxu0 0
        %1960 = vmatpush1.bf16.xpose.msra.mxu0 0
        %1961 = vmatprep.subr.bf16.mxu0 0
        %1962 = vmatpush1.bf16.xpose.msra.mxu0 0
        %1963 = vmatprep.subr.bf16.mxu0 0
        %1964 = vmatpush1.bf16.xpose.msra.mxu0 0
        %1965 = vmatprep.subr.bf16.mxu0 0
        %1966 = vmatpush1.bf16.xpose.msra.mxu0 %v1949
        %1967 = vmatprep.subr.bf16.mxu0 0
        %1968 = vmatpush2.bf16.xpose.msra.mxu0 0
        %1969 = vmatprep.subr.bf16.mxu0 0
        %1970 = vmatpush2.bf16.xpose.msra.mxu0 0
        %1971 = vmatprep.subr.bf16.mxu0 0
        %1972 = vmatpush2.bf16.xpose.msra.mxu0 0
        %1973 = vmatprep.subr.bf16.mxu0 0
        %1974 = vmatpush2.bf16.xpose.msra.mxu0 0
        %1975 = vmatprep.subr.bf16.mxu0 0
        %1976 = vmatpush2.bf16.xpose.msra.mxu0 0
        %1977 = vmatprep.subr.bf16.mxu0 0
        %1978 = vmatpush2.bf16.xpose.msra.mxu0 0
        %1979 = vmatprep.subr.bf16.mxu0 0
        %1980 = vmatpush2.bf16.xpose.msra.mxu0 0
        %1981 = vmatprep.subr.bf16.mxu0 0
        %1982 = vmatpush2.bf16.xpose.msra.mxu0 0
        %1983 = vmatprep.mubr.bf16.mxu0 0
        %1984 = vmatmul.mubr.bf16.gmra.mxu0 %v1946
        %v1985 = vpop.f32.mrf.mxu0
        %v1986 = vadd.f32 0.0, %v1985
        %v1987 = vpop.f32.mrf.mxu0
        %v1988 = vpop.f32.mrf.mxu0
        %v1989 = vpop.f32.mrf.mxu0
        %1990 = vdwg.mxu0
        %v1991 = vmul.f32 %v1986, 0.35355338
        %v1992 = vadd.f32 %v1991, %v930
        %v1993 = vsel %vm878, %v1992, -inf
        %1994 = vmax.xlane.f32.xlu0 %v1993
        %v1995 = vpop.xlane.xlu0 %1994
        %v1996 = vsub.f32 %v1992, %v1995
        %v1997 = vmul.f32 %v1996, 1.442695
        %v1998 = vpow.pop %v1997
        %v1999 = vsel %vm878, %v1998, 0.0
        %2000 = vadd.xlane.f32.xlu0 %v1999
        %v2001 = vpop.xlane.xlu0 %2000
        %v2002 = vpack.c.bf16 %v1998, %v1998
        %v2004 = vsel %vm878, %v2002, 0
        %v2007 = vsel %vm946, %v1944, 0
        %2009 = vmatprep.subr.bf16.mxu0 0
        %2010 = vmatpush1.bf16.msra.mxu0 0
        %2011 = vmatprep.subr.bf16.mxu0 0
        %2012 = vmatpush1.bf16.msra.mxu0 0
        %2013 = vmatprep.subr.bf16.mxu0 0
        %2014 = vmatpush1.bf16.msra.mxu0 0
        %2015 = vmatprep.subr.bf16.mxu0 0
        %2016 = vmatpush1.bf16.msra.mxu0 0
        %2017 = vmatprep.subr.bf16.mxu0 0
        %2018 = vmatpush1.bf16.msra.mxu0 0
        %2019 = vmatprep.subr.bf16.mxu0 0
        %2020 = vmatpush1.bf16.msra.mxu0 0
        %2021 = vmatprep.subr.bf16.mxu0 0
        %2022 = vmatpush1.bf16.msra.mxu0 0
        %2023 = vmatprep.subr.bf16.mxu0 0
        %2024 = vmatpush1.bf16.msra.mxu0 %v2007
        %2025 = vmatprep.subr.bf16.mxu0 0
        %2026 = vmatpush2.bf16.msra.mxu0 0
        %2027 = vmatprep.subr.bf16.mxu0 0
        %2028 = vmatpush2.bf16.msra.mxu0 0
        %2029 = vmatprep.subr.bf16.mxu0 0
        %2030 = vmatpush2.bf16.msra.mxu0 0
        %2031 = vmatprep.subr.bf16.mxu0 0
        %2032 = vmatpush2.bf16.msra.mxu0 0
        %2033 = vmatprep.subr.bf16.mxu0 0
        %2034 = vmatpush2.bf16.msra.mxu0 0
        %2035 = vmatprep.subr.bf16.mxu0 0
        %2036 = vmatpush2.bf16.msra.mxu0 0
        %2037 = vmatprep.subr.bf16.mxu0 0
        %2038 = vmatpush2.bf16.msra.mxu0 0
        %2039 = vmatprep.subr.bf16.mxu0 0
        %2040 = vmatpush2.bf16.msra.mxu0 0
        %2041 = vmatprep.mubr.bf16.mxu0 0
        %2042 = vmatmul.mubr.bf16.gmra.mxu0 %v2004
        %v2043 = vpop.f32.mrf.mxu0
        %v2044 = vadd.f32 0.0, %v2043
        %v2045 = vpop.f32.mrf.mxu0
        %v2046 = vpop.f32.mrf.mxu0
        %v2047 = vpop.f32.mrf.mxu0
        %2048 = vdwg.mxu0
        %v2049 = vrcp.pop %v2001
        %v2050 = vmul.f32 %v2044, %v2049
        %v2051 = vpack.c.bf16 %v2050, %v2050
        %s2052 = scalar_lea.vmem %s8, 12
        %v2053 = vld [vmem:[%s2052] sm:$0xf]
        %v2055 = vsel %vm878, %v2051, 0
        %v2058 = vsel %vm946, %v2053, 0
        %2060 = vmatprep.subr.bf16.mxu0 0
        %2061 = vmatpush1.bf16.msra.mxu0 0
        %2062 = vmatprep.subr.bf16.mxu0 0
        %2063 = vmatpush1.bf16.msra.mxu0 0
        %2064 = vmatprep.subr.bf16.mxu0 0
        %2065 = vmatpush1.bf16.msra.mxu0 0
        %2066 = vmatprep.subr.bf16.mxu0 0
        %2067 = vmatpush1.bf16.msra.mxu0 0
        %2068 = vmatprep.subr.bf16.mxu0 0
        %2069 = vmatpush1.bf16.msra.mxu0 0
        %2070 = vmatprep.subr.bf16.mxu0 0
        %2071 = vmatpush1.bf16.msra.mxu0 0
        %2072 = vmatprep.subr.bf16.mxu0 0
        %2073 = vmatpush1.bf16.msra.mxu0 0
        %2074 = vmatprep.subr.bf16.mxu0 0
        %2075 = vmatpush1.bf16.msra.mxu0 %v2058
        %2076 = vmatprep.subr.bf16.mxu0 0
        %2077 = vmatpush2.bf16.msra.mxu0 0
        %2078 = vmatprep.subr.bf16.mxu0 0
        %2079 = vmatpush2.bf16.msra.mxu0 0
        %2080 = vmatprep.subr.bf16.mxu0 0
        %2081 = vmatpush2.bf16.msra.mxu0 0
        %2082 = vmatprep.subr.bf16.mxu0 0
        %2083 = vmatpush2.bf16.msra.mxu0 0
        %2084 = vmatprep.subr.bf16.mxu0 0
        %2085 = vmatpush2.bf16.msra.mxu0 0
        %2086 = vmatprep.subr.bf16.mxu0 0
        %2087 = vmatpush2.bf16.msra.mxu0 0
        %2088 = vmatprep.subr.bf16.mxu0 0
        %2089 = vmatpush2.bf16.msra.mxu0 0
        %2090 = vmatprep.subr.bf16.mxu0 0
        %2091 = vmatpush2.bf16.msra.mxu0 0
        %2092 = vmatprep.mubr.bf16.mxu0 0
        %2093 = vmatmul.mubr.bf16.gmra.mxu0 %v2055
        %v2094 = vpop.f32.mrf.mxu0
        %v2095 = vadd.f32 0.0, %v2094
        %v2096 = vpop.f32.mrf.mxu0
        %v2097 = vpop.f32.mrf.mxu0
        %v2098 = vpop.f32.mrf.mxu0
        %2099 = vdwg.mxu0
        %v2100 = vadd.f32 %v1746, %v2095
        %v2101 = vadd.f32 %v640, %v2100
        %v2102 = vld [vmem:[%s9] sm:$0x1]
        %v2104 = vlaneseq
        %v2105 = vshrl.u32 %v2104, 7
        %v2106 = vsub.s32 0, %v2105
        %v2107 = vrot.slane %v2102, %v2106
        %v2109 = vadd.f32 %v2101, %v2107
        %v2110 = vld [vmem:[%s16] sm:$0x1]
        %v2111 = vld [vmem:[%s17] sm:$0x1]
        %v2112 = vsel %vm646, %v2109, 0.0
        %2113 = vadd.xlane.f32.xlu0 %v2112
        %v2114 = vpop.xlane.xlu0 %2113
        %v2115 = vmul.f32 %v2114, %v650
        %v2116 = vsub.f32 %v2109, %v2115
        %v2117 = vmul.f32 %v2116, %v2116
        %v2118 = vsel %vm646, %v2117, 0.0
        %2119 = vadd.xlane.f32.xlu0 %v2118
        %v2120 = vpop.xlane.xlu0 %2119
        %v2121 = vmul.f32 %v2120, 0.032258064
        %v2123 = vlaneseq
        %v2124 = vshrl.u32 %v2123, 7
        %v2125 = vsub.s32 0, %v2124
        %v2126 = vrot.slane %v2110, %v2125
        %v2128 = vmul.f32 %v2126, %v2116
        %v2129 = vrsqrt.pop %v2121
        %v2130 = vmul.f32 %v2121, %v2129
        %vm2131 = vcmp.eq.f32.partialorder %v2121, inf
        %v2132 = vsel %vm2131, %v2121, %v2130
        %vm2133 = vcmp.eq.f32.partialorder %v2121, 0.0
        %v2134 = vand.u32 %v2121, 2147483648
        %v2135 = vsel %vm2133, %v2134, %v2132
        %v2136 = vadd.f32 %v2135, 1e-06
        %v2137 = vrcp.pop %v2136
        %v2138 = vmul.f32 %v2128, %v2137
        %v2140 = vlaneseq
        %v2141 = vshrl.u32 %v2140, 7
        %v2142 = vsub.s32 0, %v2141
        %v2143 = vrot.slane %v2111, %v2142
        %v2145 = vadd.f32 %v2138, %v2143
        %v2146 = vpack.c.bf16 %v2145, %v2145
        %v2147 = vld [vmem:[%s10] sm:$0xf]
        %v2148 = vld [vmem:[%s10 + $0x4] sm:$0xf]
        %v2149 = vld [vmem:[%s10 + $0x8] sm:$0xf]
        %v2150 = vld [vmem:[%s10 + $0xc] sm:$0xf]
        %v2151 = vld [vmem:[%s11] sm:$0x1]
        %v2153 = vlaneseq
        %v2154 = vshrl.u32 %v2153, 7
        %v2155 = vsub.s32 0, %v2154
        %v2156 = vrot.slane %v2151, %v2155
        %v2162 = vunpack.c.l.b16 %v2147
        %v2163 = vunpack.c.l.b16 %v2148
        %v2164 = vunpack.c.l.b16 %v2149
        %v2165 = vunpack.c.l.b16 %v2150
        %v2166 = vpack.c.b16 %v2163, %v2162
        %v2167 = vpack.c.b16 %v2165, %v2164
        %v2171 = vsel %vm646, %v2146, 0
        %2173 = vmatprep.subr.bf16.mxu0 0
        %2174 = vmatpush1.bf16.msra.mxu0 0
        %2175 = vmatprep.subr.bf16.mxu0 0
        %2176 = vmatpush1.bf16.msra.mxu0 0
        %2177 = vmatprep.subr.bf16.mxu0 0
        %2178 = vmatpush1.bf16.msra.mxu0 0
        %2179 = vmatprep.subr.bf16.mxu0 0
        %2180 = vmatpush1.bf16.msra.mxu0 0
        %2181 = vmatprep.subr.bf16.mxu0 0
        %2182 = vmatpush1.bf16.msra.mxu0 0
        %2183 = vmatprep.subr.bf16.mxu0 0
        %2184 = vmatpush1.bf16.msra.mxu0 0
        %2185 = vmatprep.subr.bf16.mxu0 0
        %2186 = vmatpush1.bf16.msra.mxu0 %v2167
        %2187 = vmatprep.subr.bf16.mxu0 0
        %2188 = vmatpush1.bf16.msra.mxu0 %v2166
        %2189 = vmatprep.subr.bf16.mxu0 0
        %2190 = vmatpush2.bf16.msra.mxu0 0
        %2191 = vmatprep.subr.bf16.mxu0 0
        %2192 = vmatpush2.bf16.msra.mxu0 0
        %2193 = vmatprep.subr.bf16.mxu0 0
        %2194 = vmatpush2.bf16.msra.mxu0 0
        %2195 = vmatprep.subr.bf16.mxu0 0
        %2196 = vmatpush2.bf16.msra.mxu0 0
        %2197 = vmatprep.subr.bf16.mxu0 0
        %2198 = vmatpush2.bf16.msra.mxu0 0
        %2199 = vmatprep.subr.bf16.mxu0 0
        %2200 = vmatpush2.bf16.msra.mxu0 0
        %2201 = vmatprep.subr.bf16.mxu0 0
        %2202 = vmatpush2.bf16.msra.mxu0 0
        %2203 = vmatprep.subr.bf16.mxu0 0
        %2204 = vmatpush2.bf16.msra.mxu0 0
        %2205 = vmatprep.mubr.bf16.mxu0 0
        %2206 = vmatmul.mubr.bf16.gmra.mxu0 %v2171
        %v2207 = vpop.f32.mrf.mxu0
        %v2208 = vadd.f32 %v2156, %v2207
        %v2209 = vpop.f32.mrf.mxu0
        %v2210 = vpop.f32.mrf.mxu0
        %v2211 = vpop.f32.mrf.mxu0
        %2212 = vdwg.mxu0
        %v2213 = vmax.f32 %v2208, 0.0
        %v2214 = vpack.c.bf16 %v2213, %v2213
        %v2215 = vld [vmem:[%s12] sm:$0xf]
        %v2216 = vld [vmem:[%s12 + $0x4] sm:$0xf]
        %v2217 = vld [vmem:[%s12 + $0x8] sm:$0xf]
        %v2218 = vld [vmem:[%s12 + $0xc] sm:$0xf]
        %v2219 = vld [vmem:[%s12 + $0x10] sm:$0xf]
        %v2220 = vld [vmem:[%s12 + $0x14] sm:$0xf]
        %v2221 = vld [vmem:[%s12 + $0x18] sm:$0xf]
        %v2222 = vld [vmem:[%s12 + $0x1c] sm:$0xf]
        %v2223 = vld [vmem:[%s13] sm:$0x1]
        %v2225 = vlaneseq
        %v2226 = vshrl.u32 %v2225, 7
        %v2227 = vsub.s32 0, %v2226
        %v2228 = vrot.slane %v2223, %v2227
        %v2238 = vunpack.c.l.b16 %v2215
        %v2239 = vunpack.c.l.b16 %v2216
        %v2240 = vunpack.c.l.b16 %v2217
        %v2241 = vunpack.c.l.b16 %v2218
        %v2242 = vunpack.c.l.b16 %v2219
        %v2243 = vunpack.c.l.b16 %v2220
        %v2244 = vunpack.c.l.b16 %v2221
        %v2245 = vunpack.c.l.b16 %v2222
        %v2246 = vpack.c.b16 %v2239, %v2238
        %v2247 = vpack.c.b16 %v2241, %v2240
        %v2248 = vpack.c.b16 %v2243, %v2242
        %v2249 = vpack.c.b16 %v2245, %v2244
        %vm2254 = vcmask 523264
        %v2256 = vsel %vm2254, %v2214, 0
        %2258 = vmatprep.subr.bf16.mxu0 0
        %2259 = vmatpush1.bf16.msra.mxu0 0
        %2260 = vmatprep.subr.bf16.mxu0 0
        %2261 = vmatpush1.bf16.msra.mxu0 0
        %2262 = vmatprep.subr.bf16.mxu0 0
        %2263 = vmatpush1.bf16.msra.mxu0 0
        %2264 = vmatprep.subr.bf16.mxu0 0
        %2265 = vmatpush1.bf16.msra.mxu0 0
        %2266 = vmatprep.subr.bf16.mxu0 0
        %2267 = vmatpush1.bf16.msra.mxu0 %v2249
        %2268 = vmatprep.subr.bf16.mxu0 0
        %2269 = vmatpush1.bf16.msra.mxu0 %v2248
        %2270 = vmatprep.subr.bf16.mxu0 0
        %2271 = vmatpush1.bf16.msra.mxu0 %v2247
        %2272 = vmatprep.subr.bf16.mxu0 0
        %2273 = vmatpush1.bf16.msra.mxu0 %v2246
        %2274 = vmatprep.subr.bf16.mxu0 0
        %2275 = vmatpush2.bf16.msra.mxu0 0
        %2276 = vmatprep.subr.bf16.mxu0 0
        %2277 = vmatpush2.bf16.msra.mxu0 0
        %2278 = vmatprep.subr.bf16.mxu0 0
        %2279 = vmatpush2.bf16.msra.mxu0 0
        %2280 = vmatprep.subr.bf16.mxu0 0
        %2281 = vmatpush2.bf16.msra.mxu0 0
        %2282 = vmatprep.subr.bf16.mxu0 0
        %2283 = vmatpush2.bf16.msra.mxu0 0
        %2284 = vmatprep.subr.bf16.mxu0 0
        %2285 = vmatpush2.bf16.msra.mxu0 0
        %2286 = vmatprep.subr.bf16.mxu0 0
        %2287 = vmatpush2.bf16.msra.mxu0 0
        %2288 = vmatprep.subr.bf16.mxu0 0
        %2289 = vmatpush2.bf16.msra.mxu0 0
        %2290 = vmatprep.mubr.bf16.mxu0 0
        %2291 = vmatmul.mubr.bf16.gmra.mxu0 %v2256
        %v2292 = vpop.f32.mrf.mxu0
        %v2293 = vadd.f32 %v2228, %v2292
        %v2294 = vpop.f32.mrf.mxu0
        %v2295 = vpop.f32.mrf.mxu0
        %v2296 = vpop.f32.mrf.mxu0
        %2297 = vdwg.mxu0
        %v2298 = vadd.f32 %v2109, %v2293
        %v2299 = vsel %vm646, %v2298, 0.0
        %2300 = vadd.xlane.f32.xlu0 %v2299
        %v2301 = vpop.xlane.xlu0 %2300
        %v2302 = vmul.f32 %v2301, %v650
        %v2303 = vsub.f32 %v2298, %v2302
        %v2304 = vmul.f32 %v2303, %v2303
        %v2305 = vsel %vm646, %v2304, 0.0
        %2306 = vadd.xlane.f32.xlu0 %v2305
        %v2307 = vpop.xlane.xlu0 %2306
        %v2308 = vmul.f32 %v2307, 0.032258064
        %v2309 = vmul.f32 %v662, %v2303
        %v2310 = vrsqrt.pop %v2308
        %v2311 = vmul.f32 %v2308, %v2310
        %vm2312 = vcmp.eq.f32.partialorder %v2308, inf
        %v2313 = vsel %vm2312, %v2308, %v2311
        %vm2314 = vcmp.eq.f32.partialorder %v2308, 0.0
        %v2315 = vand.u32 %v2308, 2147483648
        %v2316 = vsel %vm2314, %v2315, %v2313
        %v2317 = vadd.f32 %v2316, 1e-06
        %v2318 = vrcp.pop %v2317
        %v2319 = vmul.f32 %v2309, %v2318
        %v2320 = vadd.f32 %v2319, %v679
        %v2321 = vpack.c.bf16 %v2320, %v2320
        %v2323 = vsel %vm646, %v2321, 0
        %2325 = vmatprep.subr.bf16.mxu0 0
        %2326 = vmatpush1.bf16.msra.mxu0 0
        %2327 = vmatprep.subr.bf16.mxu0 0
        %2328 = vmatpush1.bf16.msra.mxu0 0
        %2329 = vmatprep.subr.bf16.mxu0 0
        %2330 = vmatpush1.bf16.msra.mxu0 0
        %2331 = vmatprep.subr.bf16.mxu0 0
        %2332 = vmatpush1.bf16.msra.mxu0 0
        %2333 = vmatprep.subr.bf16.mxu0 0
        %2334 = vmatpush1.bf16.msra.mxu0 0
        %2335 = vmatprep.subr.bf16.mxu0 0
        %2336 = vmatpush1.bf16.msra.mxu0 0
        %2337 = vmatprep.subr.bf16.mxu0 0
        %2338 = vmatpush1.bf16.msra.mxu0 %v703
        %2339 = vmatprep.subr.bf16.mxu0 0
        %2340 = vmatpush1.bf16.msra.mxu0 %v702
        %2341 = vmatprep.subr.bf16.mxu0 0
        %2342 = vmatpush2.bf16.msra.mxu0 0
        %2343 = vmatprep.subr.bf16.mxu0 0
        %2344 = vmatpush2.bf16.msra.mxu0 0
        %2345 = vmatprep.subr.bf16.mxu0 0
        %2346 = vmatpush2.bf16.msra.mxu0 0
        %2347 = vmatprep.subr.bf16.mxu0 0
        %2348 = vmatpush2.bf16.msra.mxu0 0
        %2349 = vmatprep.subr.bf16.mxu0 0
        %2350 = vmatpush2.bf16.msra.mxu0 0
        %2351 = vmatprep.subr.bf16.mxu0 0
        %2352 = vmatpush2.bf16.msra.mxu0 0
        %2353 = vmatprep.subr.bf16.mxu0 0
        %2354 = vmatpush2.bf16.msra.mxu0 0
        %2355 = vmatprep.subr.bf16.mxu0 0
        %2356 = vmatpush2.bf16.msra.mxu0 0
        %2357 = vmatprep.mubr.bf16.mxu0 0
        %2358 = vmatmul.mubr.bf16.gmra.mxu0 %v2323
        %v2359 = vpop.f32.mrf.mxu0
        %v2360 = vadd.f32 %v692, %v2359
        %v2361 = vpop.f32.mrf.mxu0
        %v2362 = vpop.f32.mrf.mxu0
        %v2363 = vpop.f32.mrf.mxu0
        %2364 = vdwg.mxu0
        %v2365 = vpack.c.bf16 %v2360, %v2360
        %2366 = vmatprep.subr.bf16.mxu0 0
        %2367 = vmatpush1.bf16.msra.mxu0 0
        %2368 = vmatprep.subr.bf16.mxu0 0
        %2369 = vmatpush1.bf16.msra.mxu0 0
        %2370 = vmatprep.subr.bf16.mxu0 0
        %2371 = vmatpush1.bf16.msra.mxu0 0
        %2372 = vmatprep.subr.bf16.mxu0 0
        %2373 = vmatpush1.bf16.msra.mxu0 0
        %2374 = vmatprep.subr.bf16.mxu0 0
        %2375 = vmatpush1.bf16.msra.mxu0 0
        %2376 = vmatprep.subr.bf16.mxu0 0
        %2377 = vmatpush1.bf16.msra.mxu0 0
        %2378 = vmatprep.subr.bf16.mxu0 0
        %2379 = vmatpush1.bf16.msra.mxu0 %v770
        %2380 = vmatprep.subr.bf16.mxu0 0
        %2381 = vmatpush1.bf16.msra.mxu0 %v769
        %2382 = vmatprep.subr.bf16.mxu0 0
        %2383 = vmatpush2.bf16.msra.mxu0 0
        %2384 = vmatprep.subr.bf16.mxu0 0
        %2385 = vmatpush2.bf16.msra.mxu0 0
        %2386 = vmatprep.subr.bf16.mxu0 0
        %2387 = vmatpush2.bf16.msra.mxu0 0
        %2388 = vmatprep.subr.bf16.mxu0 0
        %2389 = vmatpush2.bf16.msra.mxu0 0
        %2390 = vmatprep.subr.bf16.mxu0 0
        %2391 = vmatpush2.bf16.msra.mxu0 0
        %2392 = vmatprep.subr.bf16.mxu0 0
        %2393 = vmatpush2.bf16.msra.mxu0 0
        %2394 = vmatprep.subr.bf16.mxu0 0
        %2395 = vmatpush2.bf16.msra.mxu0 0
        %2396 = vmatprep.subr.bf16.mxu0 0
        %2397 = vmatpush2.bf16.msra.mxu0 0
        %2398 = vmatprep.mubr.bf16.mxu0 0
        %2399 = vmatmul.mubr.bf16.gmra.mxu0 %v2323
        %v2400 = vpop.f32.mrf.mxu0
        %v2401 = vadd.f32 %v759, %v2400
        %v2402 = vpop.f32.mrf.mxu0
        %v2403 = vpop.f32.mrf.mxu0
        %v2404 = vpop.f32.mrf.mxu0
        %2405 = vdwg.mxu0
        %v2406 = vpack.c.bf16 %v2401, %v2401
        %2407 = vmatprep.subr.bf16.mxu0 0
        %2408 = vmatpush1.bf16.msra.mxu0 0
        %2409 = vmatprep.subr.bf16.mxu0 0
        %2410 = vmatpush1.bf16.msra.mxu0 0
        %2411 = vmatprep.subr.bf16.mxu0 0
        %2412 = vmatpush1.bf16.msra.mxu0 0
        %2413 = vmatprep.subr.bf16.mxu0 0
        %2414 = vmatpush1.bf16.msra.mxu0 0
        %2415 = vmatprep.subr.bf16.mxu0 0
        %2416 = vmatpush1.bf16.msra.mxu0 0
        %2417 = vmatprep.subr.bf16.mxu0 0
        %2418 = vmatpush1.bf16.msra.mxu0 0
        %2419 = vmatprep.subr.bf16.mxu0 0
        %2420 = vmatpush1.bf16.msra.mxu0 %v834
        %2421 = vmatprep.subr.bf16.mxu0 0
        %2422 = vmatpush1.bf16.msra.mxu0 %v833
        %2423 = vmatprep.subr.bf16.mxu0 0
        %2424 = vmatpush2.bf16.msra.mxu0 0
        %2425 = vmatprep.subr.bf16.mxu0 0
        %2426 = vmatpush2.bf16.msra.mxu0 0
        %2427 = vmatprep.subr.bf16.mxu0 0
        %2428 = vmatpush2.bf16.msra.mxu0 0
        %2429 = vmatprep.subr.bf16.mxu0 0
        %2430 = vmatpush2.bf16.msra.mxu0 0
        %2431 = vmatprep.subr.bf16.mxu0 0
        %2432 = vmatpush2.bf16.msra.mxu0 0
        %2433 = vmatprep.subr.bf16.mxu0 0
        %2434 = vmatpush2.bf16.msra.mxu0 0
        %2435 = vmatprep.subr.bf16.mxu0 0
        %2436 = vmatpush2.bf16.msra.mxu0 0
        %2437 = vmatprep.subr.bf16.mxu0 0
        %2438 = vmatpush2.bf16.msra.mxu0 0
        %2439 = vmatprep.mubr.bf16.mxu0 0
        %2440 = vmatmul.mubr.bf16.gmra.mxu0 %v2323
        %v2441 = vpop.f32.mrf.mxu0
        %v2442 = vadd.f32 %v823, %v2441
        %v2443 = vpop.f32.mrf.mxu0
        %v2444 = vpop.f32.mrf.mxu0
        %v2445 = vpop.f32.mrf.mxu0
        %2446 = vdwg.mxu0
        %v2447 = vpack.c.bf16 %v2442, %v2442
        %v2449 = vsel %vm878, %v2365, 0
        %v2452 = vsel %vm878, %v2406, 0
        %2454 = vmatprep.subr.bf16.mxu0 0
        %2455 = vmatpush1.bf16.xpose.msra.mxu0 0
        %2456 = vmatprep.subr.bf16.mxu0 0
        %2457 = vmatpush1.bf16.xpose.msra.mxu0 0
        %2458 = vmatprep.subr.bf16.mxu0 0
        %2459 = vmatpush1.bf16.xpose.msra.mxu0 0
        %2460 = vmatprep.subr.bf16.mxu0 0
        %2461 = vmatpush1.bf16.xpose.msra.mxu0 0
        %2462 = vmatprep.subr.bf16.mxu0 0
        %2463 = vmatpush1.bf16.xpose.msra.mxu0 0
        %2464 = vmatprep.subr.bf16.mxu0 0
        %2465 = vmatpush1.bf16.xpose.msra.mxu0 0
        %2466 = vmatprep.subr.bf16.mxu0 0
        %2467 = vmatpush1.bf16.xpose.msra.mxu0 0
        %2468 = vmatprep.subr.bf16.mxu0 0
        %2469 = vmatpush1.bf16.xpose.msra.mxu0 %v2452
        %2470 = vmatprep.subr.bf16.mxu0 0
        %2471 = vmatpush2.bf16.xpose.msra.mxu0 0
        %2472 = vmatprep.subr.bf16.mxu0 0
        %2473 = vmatpush2.bf16.xpose.msra.mxu0 0
        %2474 = vmatprep.subr.bf16.mxu0 0
        %2475 = vmatpush2.bf16.xpose.msra.mxu0 0
        %2476 = vmatprep.subr.bf16.mxu0 0
        %2477 = vmatpush2.bf16.xpose.msra.mxu0 0
        %2478 = vmatprep.subr.bf16.mxu0 0
        %2479 = vmatpush2.bf16.xpose.msra.mxu0 0
        %2480 = vmatprep.subr.bf16.mxu0 0
        %2481 = vmatpush2.bf16.xpose.msra.mxu0 0
        %2482 = vmatprep.subr.bf16.mxu0 0
        %2483 = vmatpush2.bf16.xpose.msra.mxu0 0
        %2484 = vmatprep.subr.bf16.mxu0 0
        %2485 = vmatpush2.bf16.xpose.msra.mxu0 0
        %2486 = vmatprep.mubr.bf16.mxu0 0
        %2487 = vmatmul.mubr.bf16.gmra.mxu0 %v2449
        %v2488 = vpop.f32.mrf.mxu0
        %v2489 = vadd.f32 0.0, %v2488
        %v2490 = vpop.f32.mrf.mxu0
        %v2491 = vpop.f32.mrf.mxu0
        %v2492 = vpop.f32.mrf.mxu0
        %2493 = vdwg.mxu0
        %v2494 = vmul.f32 %v2489, 0.35355338
        %v2495 = vadd.f32 %v2494, %v930
        %v2496 = vsel %vm878, %v2495, -inf
        %2497 = vmax.xlane.f32.xlu0 %v2496
        %v2498 = vpop.xlane.xlu0 %2497
        %v2499 = vsub.f32 %v2495, %v2498
        %v2500 = vmul.f32 %v2499, 1.442695
        %v2501 = vpow.pop %v2500
        %v2502 = vsel %vm878, %v2501, 0.0
        %2503 = vadd.xlane.f32.xlu0 %v2502
        %v2504 = vpop.xlane.xlu0 %2503
        %v2505 = vpack.c.bf16 %v2501, %v2501
        %v2507 = vsel %vm878, %v2505, 0
        %v2510 = vsel %vm946, %v2447, 0
        %2512 = vmatprep.subr.bf16.mxu0 0
        %2513 = vmatpush1.bf16.msra.mxu0 0
        %2514 = vmatprep.subr.bf16.mxu0 0
        %2515 = vmatpush1.bf16.msra.mxu0 0
        %2516 = vmatprep.subr.bf16.mxu0 0
        %2517 = vmatpush1.bf16.msra.mxu0 0
        %2518 = vmatprep.subr.bf16.mxu0 0
        %2519 = vmatpush1.bf16.msra.mxu0 0
        %2520 = vmatprep.subr.bf16.mxu0 0
        %2521 = vmatpush1.bf16.msra.mxu0 0
        %2522 = vmatprep.subr.bf16.mxu0 0
        %2523 = vmatpush1.bf16.msra.mxu0 0
        %2524 = vmatprep.subr.bf16.mxu0 0
        %2525 = vmatpush1.bf16.msra.mxu0 0
        %2526 = vmatprep.subr.bf16.mxu0 0
        %2527 = vmatpush1.bf16.msra.mxu0 %v2510
        %2528 = vmatprep.subr.bf16.mxu0 0
        %2529 = vmatpush2.bf16.msra.mxu0 0
        %2530 = vmatprep.subr.bf16.mxu0 0
        %2531 = vmatpush2.bf16.msra.mxu0 0
        %2532 = vmatprep.subr.bf16.mxu0 0
        %2533 = vmatpush2.bf16.msra.mxu0 0
        %2534 = vmatprep.subr.bf16.mxu0 0
        %2535 = vmatpush2.bf16.msra.mxu0 0
        %2536 = vmatprep.subr.bf16.mxu0 0
        %2537 = vmatpush2.bf16.msra.mxu0 0
        %2538 = vmatprep.subr.bf16.mxu0 0
        %2539 = vmatpush2.bf16.msra.mxu0 0
        %2540 = vmatprep.subr.bf16.mxu0 0
        %2541 = vmatpush2.bf16.msra.mxu0 0
        %2542 = vmatprep.subr.bf16.mxu0 0
        %2543 = vmatpush2.bf16.msra.mxu0 0
        %2544 = vmatprep.mubr.bf16.mxu0 0
        %2545 = vmatmul.mubr.bf16.gmra.mxu0 %v2507
        %v2546 = vpop.f32.mrf.mxu0
        %v2547 = vadd.f32 0.0, %v2546
        %v2548 = vpop.f32.mrf.mxu0
        %v2549 = vpop.f32.mrf.mxu0
        %v2550 = vpop.f32.mrf.mxu0
        %2551 = vdwg.mxu0
        %v2552 = vrcp.pop %v2504
        %v2553 = vmul.f32 %v2547, %v2552
        %v2554 = vpack.c.bf16 %v2553, %v2553
        %2555 = vmatprep.subr.bf16.mxu0 0
        %2556 = vmatpush1.bf16.msra.mxu0 0
        %2557 = vmatprep.subr.bf16.mxu0 0
        %2558 = vmatpush1.bf16.msra.mxu0 0
        %2559 = vmatprep.subr.bf16.mxu0 0
        %2560 = vmatpush1.bf16.msra.mxu0 0
        %2561 = vmatprep.subr.bf16.mxu0 0
        %2562 = vmatpush1.bf16.msra.mxu0 0
        %2563 = vmatprep.subr.bf16.mxu0 0
        %2564 = vmatpush1.bf16.msra.mxu0 0
        %2565 = vmatprep.subr.bf16.mxu0 0
        %2566 = vmatpush1.bf16.msra.mxu0 0
        %2567 = vmatprep.subr.bf16.mxu0 0
        %2568 = vmatpush1.bf16.msra.mxu0 %v1016
        %2569 = vmatprep.subr.bf16.mxu0 0
        %2570 = vmatpush1.bf16.msra.mxu0 %v1015
        %2571 = vmatprep.subr.bf16.mxu0 0
        %2572 = vmatpush2.bf16.msra.mxu0 0
        %2573 = vmatprep.subr.bf16.mxu0 0
        %2574 = vmatpush2.bf16.msra.mxu0 0
        %2575 = vmatprep.subr.bf16.mxu0 0
        %2576 = vmatpush2.bf16.msra.mxu0 0
        %2577 = vmatprep.subr.bf16.mxu0 0
        %2578 = vmatpush2.bf16.msra.mxu0 0
        %2579 = vmatprep.subr.bf16.mxu0 0
        %2580 = vmatpush2.bf16.msra.mxu0 0
        %2581 = vmatprep.subr.bf16.mxu0 0
        %2582 = vmatpush2.bf16.msra.mxu0 0
        %2583 = vmatprep.subr.bf16.mxu0 0
        %2584 = vmatpush2.bf16.msra.mxu0 0
        %2585 = vmatprep.subr.bf16.mxu0 0
        %2586 = vmatpush2.bf16.msra.mxu0 0
        %2587 = vmatprep.mubr.bf16.mxu0 0
        %2588 = vmatmul.mubr.bf16.gmra.mxu0 %v2323
        %v2589 = vpop.f32.mrf.mxu0
        %v2590 = vadd.f32 %v1005, %v2589
        %v2591 = vpop.f32.mrf.mxu0
        %v2592 = vpop.f32.mrf.mxu0
        %v2593 = vpop.f32.mrf.mxu0
        %2594 = vdwg.mxu0
        %v2595 = vpack.c.bf16 %v2590, %v2590
        %2596 = vmatprep.subr.bf16.mxu0 0
        %2597 = vmatpush1.bf16.msra.mxu0 0
        %2598 = vmatprep.subr.bf16.mxu0 0
        %2599 = vmatpush1.bf16.msra.mxu0 0
        %2600 = vmatprep.subr.bf16.mxu0 0
        %2601 = vmatpush1.bf16.msra.mxu0 0
        %2602 = vmatprep.subr.bf16.mxu0 0
        %2603 = vmatpush1.bf16.msra.mxu0 0
        %2604 = vmatprep.subr.bf16.mxu0 0
        %2605 = vmatpush1.bf16.msra.mxu0 0
        %2606 = vmatprep.subr.bf16.mxu0 0
        %2607 = vmatpush1.bf16.msra.mxu0 0
        %2608 = vmatprep.subr.bf16.mxu0 0
        %2609 = vmatpush1.bf16.msra.mxu0 %v1082
        %2610 = vmatprep.subr.bf16.mxu0 0
        %2611 = vmatpush1.bf16.msra.mxu0 %v1081
        %2612 = vmatprep.subr.bf16.mxu0 0
        %2613 = vmatpush2.bf16.msra.mxu0 0
        %2614 = vmatprep.subr.bf16.mxu0 0
        %2615 = vmatpush2.bf16.msra.mxu0 0
        %2616 = vmatprep.subr.bf16.mxu0 0
        %2617 = vmatpush2.bf16.msra.mxu0 0
        %2618 = vmatprep.subr.bf16.mxu0 0
        %2619 = vmatpush2.bf16.msra.mxu0 0
        %2620 = vmatprep.subr.bf16.mxu0 0
        %2621 = vmatpush2.bf16.msra.mxu0 0
        %2622 = vmatprep.subr.bf16.mxu0 0
        %2623 = vmatpush2.bf16.msra.mxu0 0
        %2624 = vmatprep.subr.bf16.mxu0 0
        %2625 = vmatpush2.bf16.msra.mxu0 0
        %2626 = vmatprep.subr.bf16.mxu0 0
        %2627 = vmatpush2.bf16.msra.mxu0 0
        %2628 = vmatprep.mubr.bf16.mxu0 0
        %2629 = vmatmul.mubr.bf16.gmra.mxu0 %v2323
        %v2630 = vpop.f32.mrf.mxu0
        %v2631 = vadd.f32 %v1071, %v2630
        %v2632 = vpop.f32.mrf.mxu0
        %v2633 = vpop.f32.mrf.mxu0
        %v2634 = vpop.f32.mrf.mxu0
        %2635 = vdwg.mxu0
        %v2636 = vpack.c.bf16 %v2631, %v2631
        %2637 = vmatprep.subr.bf16.mxu0 0
        %2638 = vmatpush1.bf16.msra.mxu0 0
        %2639 = vmatprep.subr.bf16.mxu0 0
        %2640 = vmatpush1.bf16.msra.mxu0 0
        %2641 = vmatprep.subr.bf16.mxu0 0
        %2642 = vmatpush1.bf16.msra.mxu0 0
        %2643 = vmatprep.subr.bf16.mxu0 0
        %2644 = vmatpush1.bf16.msra.mxu0 0
        %2645 = vmatprep.subr.bf16.mxu0 0
        %2646 = vmatpush1.bf16.msra.mxu0 0
        %2647 = vmatprep.subr.bf16.mxu0 0
        %2648 = vmatpush1.bf16.msra.mxu0 0
        %2649 = vmatprep.subr.bf16.mxu0 0
        %2650 = vmatpush1.bf16.msra.mxu0 %v1148
        %2651 = vmatprep.subr.bf16.mxu0 0
        %2652 = vmatpush1.bf16.msra.mxu0 %v1147
        %2653 = vmatprep.subr.bf16.mxu0 0
        %2654 = vmatpush2.bf16.msra.mxu0 0
        %2655 = vmatprep.subr.bf16.mxu0 0
        %2656 = vmatpush2.bf16.msra.mxu0 0
        %2657 = vmatprep.subr.bf16.mxu0 0
        %2658 = vmatpush2.bf16.msra.mxu0 0
        %2659 = vmatprep.subr.bf16.mxu0 0
        %2660 = vmatpush2.bf16.msra.mxu0 0
        %2661 = vmatprep.subr.bf16.mxu0 0
        %2662 = vmatpush2.bf16.msra.mxu0 0
        %2663 = vmatprep.subr.bf16.mxu0 0
        %2664 = vmatpush2.bf16.msra.mxu0 0
        %2665 = vmatprep.subr.bf16.mxu0 0
        %2666 = vmatpush2.bf16.msra.mxu0 0
        %2667 = vmatprep.subr.bf16.mxu0 0
        %2668 = vmatpush2.bf16.msra.mxu0 0
        %2669 = vmatprep.mubr.bf16.mxu0 0
        %2670 = vmatmul.mubr.bf16.gmra.mxu0 %v2323
        %v2671 = vpop.f32.mrf.mxu0
        %v2672 = vadd.f32 %v1137, %v2671
        %v2673 = vpop.f32.mrf.mxu0
        %v2674 = vpop.f32.mrf.mxu0
        %v2675 = vpop.f32.mrf.mxu0
        %2676 = vdwg.mxu0
        %v2677 = vpack.c.bf16 %v2672, %v2672
        %v2679 = vsel %vm878, %v2595, 0
        %v2682 = vsel %vm878, %v2636, 0
        %2684 = vmatprep.subr.bf16.mxu0 0
        %2685 = vmatpush1.bf16.xpose.msra.mxu0 0
        %2686 = vmatprep.subr.bf16.mxu0 0
        %2687 = vmatpush1.bf16.xpose.msra.mxu0 0
        %2688 = vmatprep.subr.bf16.mxu0 0
        %2689 = vmatpush1.bf16.xpose.msra.mxu0 0
        %2690 = vmatprep.subr.bf16.mxu0 0
        %2691 = vmatpush1.bf16.xpose.msra.mxu0 0
        %2692 = vmatprep.subr.bf16.mxu0 0
        %2693 = vmatpush1.bf16.xpose.msra.mxu0 0
        %2694 = vmatprep.subr.bf16.mxu0 0
        %2695 = vmatpush1.bf16.xpose.msra.mxu0 0
        %2696 = vmatprep.subr.bf16.mxu0 0
        %2697 = vmatpush1.bf16.xpose.msra.mxu0 0
        %2698 = vmatprep.subr.bf16.mxu0 0
        %2699 = vmatpush1.bf16.xpose.msra.mxu0 %v2682
        %2700 = vmatprep.subr.bf16.mxu0 0
        %2701 = vmatpush2.bf16.xpose.msra.mxu0 0
        %2702 = vmatprep.subr.bf16.mxu0 0
        %2703 = vmatpush2.bf16.xpose.msra.mxu0 0
        %2704 = vmatprep.subr.bf16.mxu0 0
        %2705 = vmatpush2.bf16.xpose.msra.mxu0 0
        %2706 = vmatprep.subr.bf16.mxu0 0
        %2707 = vmatpush2.bf16.xpose.msra.mxu0 0
        %2708 = vmatprep.subr.bf16.mxu0 0
        %2709 = vmatpush2.bf16.xpose.msra.mxu0 0
        %2710 = vmatprep.subr.bf16.mxu0 0
        %2711 = vmatpush2.bf16.xpose.msra.mxu0 0
        %2712 = vmatprep.subr.bf16.mxu0 0
        %2713 = vmatpush2.bf16.xpose.msra.mxu0 0
        %2714 = vmatprep.subr.bf16.mxu0 0
        %2715 = vmatpush2.bf16.xpose.msra.mxu0 0
        %2716 = vmatprep.mubr.bf16.mxu0 0
        %2717 = vmatmul.mubr.bf16.gmra.mxu0 %v2679
        %v2718 = vpop.f32.mrf.mxu0
        %v2719 = vadd.f32 0.0, %v2718
        %v2720 = vpop.f32.mrf.mxu0
        %v2721 = vpop.f32.mrf.mxu0
        %v2722 = vpop.f32.mrf.mxu0
        %2723 = vdwg.mxu0
        %v2724 = vmul.f32 %v2719, 0.35355338
        %v2725 = vadd.f32 %v2724, %v930
        %v2726 = vsel %vm878, %v2725, -inf
        %2727 = vmax.xlane.f32.xlu0 %v2726
        %v2728 = vpop.xlane.xlu0 %2727
        %v2729 = vsub.f32 %v2725, %v2728
        %v2730 = vmul.f32 %v2729, 1.442695
        %v2731 = vpow.pop %v2730
        %v2732 = vsel %vm878, %v2731, 0.0
        %2733 = vadd.xlane.f32.xlu0 %v2732
        %v2734 = vpop.xlane.xlu0 %2733
        %v2735 = vpack.c.bf16 %v2731, %v2731
        %v2737 = vsel %vm878, %v2735, 0
        %v2740 = vsel %vm946, %v2677, 0
        %2742 = vmatprep.subr.bf16.mxu0 0
        %2743 = vmatpush1.bf16.msra.mxu0 0
        %2744 = vmatprep.subr.bf16.mxu0 0
        %2745 = vmatpush1.bf16.msra.mxu0 0
        %2746 = vmatprep.subr.bf16.mxu0 0
        %2747 = vmatpush1.bf16.msra.mxu0 0
        %2748 = vmatprep.subr.bf16.mxu0 0
        %2749 = vmatpush1.bf16.msra.mxu0 0
        %2750 = vmatprep.subr.bf16.mxu0 0
        %2751 = vmatpush1.bf16.msra.mxu0 0
        %2752 = vmatprep.subr.bf16.mxu0 0
        %2753 = vmatpush1.bf16.msra.mxu0 0
        %2754 = vmatprep.subr.bf16.mxu0 0
        %2755 = vmatpush1.bf16.msra.mxu0 0
        %2756 = vmatprep.subr.bf16.mxu0 0
        %2757 = vmatpush1.bf16.msra.mxu0 %v2740
        %2758 = vmatprep.subr.bf16.mxu0 0
        %2759 = vmatpush2.bf16.msra.mxu0 0
        %2760 = vmatprep.subr.bf16.mxu0 0
        %2761 = vmatpush2.bf16.msra.mxu0 0
        %2762 = vmatprep.subr.bf16.mxu0 0
        %2763 = vmatpush2.bf16.msra.mxu0 0
        %2764 = vmatprep.subr.bf16.mxu0 0
        %2765 = vmatpush2.bf16.msra.mxu0 0
        %2766 = vmatprep.subr.bf16.mxu0 0
        %2767 = vmatpush2.bf16.msra.mxu0 0
        %2768 = vmatprep.subr.bf16.mxu0 0
        %2769 = vmatpush2.bf16.msra.mxu0 0
        %2770 = vmatprep.subr.bf16.mxu0 0
        %2771 = vmatpush2.bf16.msra.mxu0 0
        %2772 = vmatprep.subr.bf16.mxu0 0
        %2773 = vmatpush2.bf16.msra.mxu0 0
        %2774 = vmatprep.mubr.bf16.mxu0 0
        %2775 = vmatmul.mubr.bf16.gmra.mxu0 %v2737
        %v2776 = vpop.f32.mrf.mxu0
        %v2777 = vadd.f32 0.0, %v2776
        %v2778 = vpop.f32.mrf.mxu0
        %v2779 = vpop.f32.mrf.mxu0
        %v2780 = vpop.f32.mrf.mxu0
        %2781 = vdwg.mxu0
        %v2782 = vrcp.pop %v2734
        %v2783 = vmul.f32 %v2777, %v2782
        %v2784 = vpack.c.bf16 %v2783, %v2783
        %v2786 = vsel %vm878, %v2784, 0
        %2788 = vmatprep.subr.bf16.mxu0 0
        %2789 = vmatpush1.bf16.msra.mxu0 0
        %2790 = vmatprep.subr.bf16.mxu0 0
        %2791 = vmatpush1.bf16.msra.mxu0 0
        %2792 = vmatprep.subr.bf16.mxu0 0
        %2793 = vmatpush1.bf16.msra.mxu0 0
        %2794 = vmatprep.subr.bf16.mxu0 0
        %2795 = vmatpush1.bf16.msra.mxu0 0
        %2796 = vmatprep.subr.bf16.mxu0 0
        %2797 = vmatpush1.bf16.msra.mxu0 0
        %2798 = vmatprep.subr.bf16.mxu0 0
        %2799 = vmatpush1.bf16.msra.mxu0 0
        %2800 = vmatprep.subr.bf16.mxu0 0
        %2801 = vmatpush1.bf16.msra.mxu0 0
        %2802 = vmatprep.subr.bf16.mxu0 0
        %2803 = vmatpush1.bf16.msra.mxu0 %v1305
        %2804 = vmatprep.subr.bf16.mxu0 0
        %2805 = vmatpush2.bf16.msra.mxu0 0
        %2806 = vmatprep.subr.bf16.mxu0 0
        %2807 = vmatpush2.bf16.msra.mxu0 0
        %2808 = vmatprep.subr.bf16.mxu0 0
        %2809 = vmatpush2.bf16.msra.mxu0 0
        %2810 = vmatprep.subr.bf16.mxu0 0
        %2811 = vmatpush2.bf16.msra.mxu0 0
        %2812 = vmatprep.subr.bf16.mxu0 0
        %2813 = vmatpush2.bf16.msra.mxu0 0
        %2814 = vmatprep.subr.bf16.mxu0 0
        %2815 = vmatpush2.bf16.msra.mxu0 0
        %2816 = vmatprep.subr.bf16.mxu0 0
        %2817 = vmatpush2.bf16.msra.mxu0 0
        %2818 = vmatprep.subr.bf16.mxu0 0
        %2819 = vmatpush2.bf16.msra.mxu0 0
        %2820 = vmatprep.mubr.bf16.mxu0 0
        %2821 = vmatmul.mubr.bf16.gmra.mxu0 %v2786
        %v2822 = vpop.f32.mrf.mxu0
        %v2823 = vadd.f32 0.0, %v2822
        %v2824 = vpop.f32.mrf.mxu0
        %v2825 = vpop.f32.mrf.mxu0
        %v2826 = vpop.f32.mrf.mxu0
        %2827 = vdwg.mxu0
        %v2829 = vsel %vm878, %v2554, 0
        %2831 = vmatprep.subr.bf16.mxu0 0
        %2832 = vmatpush1.bf16.msra.mxu0 0
        %2833 = vmatprep.subr.bf16.mxu0 0
        %2834 = vmatpush1.bf16.msra.mxu0 0
        %2835 = vmatprep.subr.bf16.mxu0 0
        %2836 = vmatpush1.bf16.msra.mxu0 0
        %2837 = vmatprep.subr.bf16.mxu0 0
        %2838 = vmatpush1.bf16.msra.mxu0 0
        %2839 = vmatprep.subr.bf16.mxu0 0
        %2840 = vmatpush1.bf16.msra.mxu0 0
        %2841 = vmatprep.subr.bf16.mxu0 0
        %2842 = vmatpush1.bf16.msra.mxu0 0
        %2843 = vmatprep.subr.bf16.mxu0 0
        %2844 = vmatpush1.bf16.msra.mxu0 0
        %2845 = vmatprep.subr.bf16.mxu0 0
        %2846 = vmatpush1.bf16.msra.mxu0 %v1351
        %2847 = vmatprep.subr.bf16.mxu0 0
        %2848 = vmatpush2.bf16.msra.mxu0 0
        %2849 = vmatprep.subr.bf16.mxu0 0
        %2850 = vmatpush2.bf16.msra.mxu0 0
        %2851 = vmatprep.subr.bf16.mxu0 0
        %2852 = vmatpush2.bf16.msra.mxu0 0
        %2853 = vmatprep.subr.bf16.mxu0 0
        %2854 = vmatpush2.bf16.msra.mxu0 0
        %2855 = vmatprep.subr.bf16.mxu0 0
        %2856 = vmatpush2.bf16.msra.mxu0 0
        %2857 = vmatprep.subr.bf16.mxu0 0
        %2858 = vmatpush2.bf16.msra.mxu0 0
        %2859 = vmatprep.subr.bf16.mxu0 0
        %2860 = vmatpush2.bf16.msra.mxu0 0
        %2861 = vmatprep.subr.bf16.mxu0 0
        %2862 = vmatpush2.bf16.msra.mxu0 0
        %2863 = vmatprep.mubr.bf16.mxu0 0
        %2864 = vmatmul.mubr.bf16.gmra.mxu0 %v2829
        %v2865 = vpop.f32.mrf.mxu0
        %v2866 = vadd.f32 %v2823, %v2865
        %v2867 = vpop.f32.mrf.mxu0
        %v2868 = vpop.f32.mrf.mxu0
        %v2869 = vpop.f32.mrf.mxu0
        %2870 = vdwg.mxu0
        %2871 = vmatprep.subr.bf16.mxu0 0
        %2872 = vmatpush1.bf16.msra.mxu0 0
        %2873 = vmatprep.subr.bf16.mxu0 0
        %2874 = vmatpush1.bf16.msra.mxu0 0
        %2875 = vmatprep.subr.bf16.mxu0 0
        %2876 = vmatpush1.bf16.msra.mxu0 0
        %2877 = vmatprep.subr.bf16.mxu0 0
        %2878 = vmatpush1.bf16.msra.mxu0 0
        %2879 = vmatprep.subr.bf16.mxu0 0
        %2880 = vmatpush1.bf16.msra.mxu0 0
        %2881 = vmatprep.subr.bf16.mxu0 0
        %2882 = vmatpush1.bf16.msra.mxu0 0
        %2883 = vmatprep.subr.bf16.mxu0 0
        %2884 = vmatpush1.bf16.msra.mxu0 %v1415
        %2885 = vmatprep.subr.bf16.mxu0 0
        %2886 = vmatpush1.bf16.msra.mxu0 %v1414
        %2887 = vmatprep.subr.bf16.mxu0 0
        %2888 = vmatpush2.bf16.msra.mxu0 0
        %2889 = vmatprep.subr.bf16.mxu0 0
        %2890 = vmatpush2.bf16.msra.mxu0 0
        %2891 = vmatprep.subr.bf16.mxu0 0
        %2892 = vmatpush2.bf16.msra.mxu0 0
        %2893 = vmatprep.subr.bf16.mxu0 0
        %2894 = vmatpush2.bf16.msra.mxu0 0
        %2895 = vmatprep.subr.bf16.mxu0 0
        %2896 = vmatpush2.bf16.msra.mxu0 0
        %2897 = vmatprep.subr.bf16.mxu0 0
        %2898 = vmatpush2.bf16.msra.mxu0 0
        %2899 = vmatprep.subr.bf16.mxu0 0
        %2900 = vmatpush2.bf16.msra.mxu0 0
        %2901 = vmatprep.subr.bf16.mxu0 0
        %2902 = vmatpush2.bf16.msra.mxu0 0
        %2903 = vmatprep.mubr.bf16.mxu0 0
        %2904 = vmatmul.mubr.bf16.gmra.mxu0 %v2323
        %v2905 = vpop.f32.mrf.mxu0
        %v2906 = vadd.f32 %v1404, %v2905
        %v2907 = vpop.f32.mrf.mxu0
        %v2908 = vpop.f32.mrf.mxu0
        %v2909 = vpop.f32.mrf.mxu0
        %2910 = vdwg.mxu0
        %v2911 = vpack.c.bf16 %v2906, %v2906
        %2912 = vmatprep.subr.bf16.mxu0 0
        %2913 = vmatpush1.bf16.msra.mxu0 0
        %2914 = vmatprep.subr.bf16.mxu0 0
        %2915 = vmatpush1.bf16.msra.mxu0 0
        %2916 = vmatprep.subr.bf16.mxu0 0
        %2917 = vmatpush1.bf16.msra.mxu0 0
        %2918 = vmatprep.subr.bf16.mxu0 0
        %2919 = vmatpush1.bf16.msra.mxu0 0
        %2920 = vmatprep.subr.bf16.mxu0 0
        %2921 = vmatpush1.bf16.msra.mxu0 0
        %2922 = vmatprep.subr.bf16.mxu0 0
        %2923 = vmatpush1.bf16.msra.mxu0 0
        %2924 = vmatprep.subr.bf16.mxu0 0
        %2925 = vmatpush1.bf16.msra.mxu0 %v1481
        %2926 = vmatprep.subr.bf16.mxu0 0
        %2927 = vmatpush1.bf16.msra.mxu0 %v1480
        %2928 = vmatprep.subr.bf16.mxu0 0
        %2929 = vmatpush2.bf16.msra.mxu0 0
        %2930 = vmatprep.subr.bf16.mxu0 0
        %2931 = vmatpush2.bf16.msra.mxu0 0
        %2932 = vmatprep.subr.bf16.mxu0 0
        %2933 = vmatpush2.bf16.msra.mxu0 0
        %2934 = vmatprep.subr.bf16.mxu0 0
        %2935 = vmatpush2.bf16.msra.mxu0 0
        %2936 = vmatprep.subr.bf16.mxu0 0
        %2937 = vmatpush2.bf16.msra.mxu0 0
        %2938 = vmatprep.subr.bf16.mxu0 0
        %2939 = vmatpush2.bf16.msra.mxu0 0
        %2940 = vmatprep.subr.bf16.mxu0 0
        %2941 = vmatpush2.bf16.msra.mxu0 0
        %2942 = vmatprep.subr.bf16.mxu0 0
        %2943 = vmatpush2.bf16.msra.mxu0 0
        %2944 = vmatprep.mubr.bf16.mxu0 0
        %2945 = vmatmul.mubr.bf16.gmra.mxu0 %v2323
        %v2946 = vpop.f32.mrf.mxu0
        %v2947 = vadd.f32 %v1470, %v2946
        %v2948 = vpop.f32.mrf.mxu0
        %v2949 = vpop.f32.mrf.mxu0
        %v2950 = vpop.f32.mrf.mxu0
        %2951 = vdwg.mxu0
        %v2952 = vpack.c.bf16 %v2947, %v2947
        %2953 = vmatprep.subr.bf16.mxu0 0
        %2954 = vmatpush1.bf16.msra.mxu0 0
        %2955 = vmatprep.subr.bf16.mxu0 0
        %2956 = vmatpush1.bf16.msra.mxu0 0
        %2957 = vmatprep.subr.bf16.mxu0 0
        %2958 = vmatpush1.bf16.msra.mxu0 0
        %2959 = vmatprep.subr.bf16.mxu0 0
        %2960 = vmatpush1.bf16.msra.mxu0 0
        %2961 = vmatprep.subr.bf16.mxu0 0
        %2962 = vmatpush1.bf16.msra.mxu0 0
        %2963 = vmatprep.subr.bf16.mxu0 0
        %2964 = vmatpush1.bf16.msra.mxu0 0
        %2965 = vmatprep.subr.bf16.mxu0 0
        %2966 = vmatpush1.bf16.msra.mxu0 %v1547
        %2967 = vmatprep.subr.bf16.mxu0 0
        %2968 = vmatpush1.bf16.msra.mxu0 %v1546
        %2969 = vmatprep.subr.bf16.mxu0 0
        %2970 = vmatpush2.bf16.msra.mxu0 0
        %2971 = vmatprep.subr.bf16.mxu0 0
        %2972 = vmatpush2.bf16.msra.mxu0 0
        %2973 = vmatprep.subr.bf16.mxu0 0
        %2974 = vmatpush2.bf16.msra.mxu0 0
        %2975 = vmatprep.subr.bf16.mxu0 0
        %2976 = vmatpush2.bf16.msra.mxu0 0
        %2977 = vmatprep.subr.bf16.mxu0 0
        %2978 = vmatpush2.bf16.msra.mxu0 0
        %2979 = vmatprep.subr.bf16.mxu0 0
        %2980 = vmatpush2.bf16.msra.mxu0 0
        %2981 = vmatprep.subr.bf16.mxu0 0
        %2982 = vmatpush2.bf16.msra.mxu0 0
        %2983 = vmatprep.subr.bf16.mxu0 0
        %2984 = vmatpush2.bf16.msra.mxu0 0
        %2985 = vmatprep.mubr.bf16.mxu0 0
        %2986 = vmatmul.mubr.bf16.gmra.mxu0 %v2323
        %v2987 = vpop.f32.mrf.mxu0
        %v2988 = vadd.f32 %v1536, %v2987
        %v2989 = vpop.f32.mrf.mxu0
        %v2990 = vpop.f32.mrf.mxu0
        %v2991 = vpop.f32.mrf.mxu0
        %2992 = vdwg.mxu0
        %v2993 = vpack.c.bf16 %v2988, %v2988
        %v2995 = vsel %vm878, %v2911, 0
        %v2998 = vsel %vm878, %v2952, 0
        %3000 = vmatprep.subr.bf16.mxu0 0
        %3001 = vmatpush1.bf16.xpose.msra.mxu0 0
        %3002 = vmatprep.subr.bf16.mxu0 0
        %3003 = vmatpush1.bf16.xpose.msra.mxu0 0
        %3004 = vmatprep.subr.bf16.mxu0 0
        %3005 = vmatpush1.bf16.xpose.msra.mxu0 0
        %3006 = vmatprep.subr.bf16.mxu0 0
        %3007 = vmatpush1.bf16.xpose.msra.mxu0 0
        %3008 = vmatprep.subr.bf16.mxu0 0
        %3009 = vmatpush1.bf16.xpose.msra.mxu0 0
        %3010 = vmatprep.subr.bf16.mxu0 0
        %3011 = vmatpush1.bf16.xpose.msra.mxu0 0
        %3012 = vmatprep.subr.bf16.mxu0 0
        %3013 = vmatpush1.bf16.xpose.msra.mxu0 0
        %3014 = vmatprep.subr.bf16.mxu0 0
        %3015 = vmatpush1.bf16.xpose.msra.mxu0 %v2998
        %3016 = vmatprep.subr.bf16.mxu0 0
        %3017 = vmatpush2.bf16.xpose.msra.mxu0 0
        %3018 = vmatprep.subr.bf16.mxu0 0
        %3019 = vmatpush2.bf16.xpose.msra.mxu0 0
        %3020 = vmatprep.subr.bf16.mxu0 0
        %3021 = vmatpush2.bf16.xpose.msra.mxu0 0
        %3022 = vmatprep.subr.bf16.mxu0 0
        %3023 = vmatpush2.bf16.xpose.msra.mxu0 0
        %3024 = vmatprep.subr.bf16.mxu0 0
        %3025 = vmatpush2.bf16.xpose.msra.mxu0 0
        %3026 = vmatprep.subr.bf16.mxu0 0
        %3027 = vmatpush2.bf16.xpose.msra.mxu0 0
        %3028 = vmatprep.subr.bf16.mxu0 0
        %3029 = vmatpush2.bf16.xpose.msra.mxu0 0
        %3030 = vmatprep.subr.bf16.mxu0 0
        %3031 = vmatpush2.bf16.xpose.msra.mxu0 0
        %3032 = vmatprep.mubr.bf16.mxu0 0
        %3033 = vmatmul.mubr.bf16.gmra.mxu0 %v2995
        %v3034 = vpop.f32.mrf.mxu0
        %v3035 = vadd.f32 0.0, %v3034
        %v3036 = vpop.f32.mrf.mxu0
        %v3037 = vpop.f32.mrf.mxu0
        %v3038 = vpop.f32.mrf.mxu0
        %3039 = vdwg.mxu0
        %v3040 = vmul.f32 %v3035, 0.35355338
        %v3041 = vadd.f32 %v3040, %v930
        %v3042 = vsel %vm878, %v3041, -inf
        %3043 = vmax.xlane.f32.xlu0 %v3042
        %v3044 = vpop.xlane.xlu0 %3043
        %v3045 = vsub.f32 %v3041, %v3044
        %v3046 = vmul.f32 %v3045, 1.442695
        %v3047 = vpow.pop %v3046
        %v3048 = vsel %vm878, %v3047, 0.0
        %3049 = vadd.xlane.f32.xlu0 %v3048
        %v3050 = vpop.xlane.xlu0 %3049
        %v3051 = vpack.c.bf16 %v3047, %v3047
        %v3053 = vsel %vm878, %v3051, 0
        %v3056 = vsel %vm946, %v2993, 0
        %3058 = vmatprep.subr.bf16.mxu0 0
        %3059 = vmatpush1.bf16.msra.mxu0 0
        %3060 = vmatprep.subr.bf16.mxu0 0
        %3061 = vmatpush1.bf16.msra.mxu0 0
        %3062 = vmatprep.subr.bf16.mxu0 0
        %3063 = vmatpush1.bf16.msra.mxu0 0
        %3064 = vmatprep.subr.bf16.mxu0 0
        %3065 = vmatpush1.bf16.msra.mxu0 0
        %3066 = vmatprep.subr.bf16.mxu0 0
        %3067 = vmatpush1.bf16.msra.mxu0 0
        %3068 = vmatprep.subr.bf16.mxu0 0
        %3069 = vmatpush1.bf16.msra.mxu0 0
        %3070 = vmatprep.subr.bf16.mxu0 0
        %3071 = vmatpush1.bf16.msra.mxu0 0
        %3072 = vmatprep.subr.bf16.mxu0 0
        %3073 = vmatpush1.bf16.msra.mxu0 %v3056
        %3074 = vmatprep.subr.bf16.mxu0 0
        %3075 = vmatpush2.bf16.msra.mxu0 0
        %3076 = vmatprep.subr.bf16.mxu0 0
        %3077 = vmatpush2.bf16.msra.mxu0 0
        %3078 = vmatprep.subr.bf16.mxu0 0
        %3079 = vmatpush2.bf16.msra.mxu0 0
        %3080 = vmatprep.subr.bf16.mxu0 0
        %3081 = vmatpush2.bf16.msra.mxu0 0
        %3082 = vmatprep.subr.bf16.mxu0 0
        %3083 = vmatpush2.bf16.msra.mxu0 0
        %3084 = vmatprep.subr.bf16.mxu0 0
        %3085 = vmatpush2.bf16.msra.mxu0 0
        %3086 = vmatprep.subr.bf16.mxu0 0
        %3087 = vmatpush2.bf16.msra.mxu0 0
        %3088 = vmatprep.subr.bf16.mxu0 0
        %3089 = vmatpush2.bf16.msra.mxu0 0
        %3090 = vmatprep.mubr.bf16.mxu0 0
        %3091 = vmatmul.mubr.bf16.gmra.mxu0 %v3053
        %v3092 = vpop.f32.mrf.mxu0
        %v3093 = vadd.f32 0.0, %v3092
        %v3094 = vpop.f32.mrf.mxu0
        %v3095 = vpop.f32.mrf.mxu0
        %v3096 = vpop.f32.mrf.mxu0
        %3097 = vdwg.mxu0
        %v3098 = vrcp.pop %v3050
        %v3099 = vmul.f32 %v3093, %v3098
        %v3100 = vpack.c.bf16 %v3099, %v3099
        %v3102 = vsel %vm878, %v3100, 0
        %3104 = vmatprep.subr.bf16.mxu0 0
        %3105 = vmatpush1.bf16.msra.mxu0 0
        %3106 = vmatprep.subr.bf16.mxu0 0
        %3107 = vmatpush1.bf16.msra.mxu0 0
        %3108 = vmatprep.subr.bf16.mxu0 0
        %3109 = vmatpush1.bf16.msra.mxu0 0
        %3110 = vmatprep.subr.bf16.mxu0 0
        %3111 = vmatpush1.bf16.msra.mxu0 0
        %3112 = vmatprep.subr.bf16.mxu0 0
        %3113 = vmatpush1.bf16.msra.mxu0 0
        %3114 = vmatprep.subr.bf16.mxu0 0
        %3115 = vmatpush1.bf16.msra.mxu0 0
        %3116 = vmatprep.subr.bf16.mxu0 0
        %3117 = vmatpush1.bf16.msra.mxu0 0
        %3118 = vmatprep.subr.bf16.mxu0 0
        %3119 = vmatpush1.bf16.msra.mxu0 %v1704
        %3120 = vmatprep.subr.bf16.mxu0 0
        %3121 = vmatpush2.bf16.msra.mxu0 0
        %3122 = vmatprep.subr.bf16.mxu0 0
        %3123 = vmatpush2.bf16.msra.mxu0 0
        %3124 = vmatprep.subr.bf16.mxu0 0
        %3125 = vmatpush2.bf16.msra.mxu0 0
        %3126 = vmatprep.subr.bf16.mxu0 0
        %3127 = vmatpush2.bf16.msra.mxu0 0
        %3128 = vmatprep.subr.bf16.mxu0 0
        %3129 = vmatpush2.bf16.msra.mxu0 0
        %3130 = vmatprep.subr.bf16.mxu0 0
        %3131 = vmatpush2.bf16.msra.mxu0 0
        %3132 = vmatprep.subr.bf16.mxu0 0
        %3133 = vmatpush2.bf16.msra.mxu0 0
        %3134 = vmatprep.subr.bf16.mxu0 0
        %3135 = vmatpush2.bf16.msra.mxu0 0
        %3136 = vmatprep.mubr.bf16.mxu0 0
        %3137 = vmatmul.mubr.bf16.gmra.mxu0 %v3102
        %v3138 = vpop.f32.mrf.mxu0
        %v3139 = vadd.f32 0.0, %v3138
        %v3140 = vpop.f32.mrf.mxu0
        %v3141 = vpop.f32.mrf.mxu0
        %v3142 = vpop.f32.mrf.mxu0
        %3143 = vdwg.mxu0
        %v3144 = vadd.f32 %v2866, %v3139
        %3145 = vmatprep.subr.bf16.mxu0 0
        %3146 = vmatpush1.bf16.msra.mxu0 0
        %3147 = vmatprep.subr.bf16.mxu0 0
        %3148 = vmatpush1.bf16.msra.mxu0 0
        %3149 = vmatprep.subr.bf16.mxu0 0
        %3150 = vmatpush1.bf16.msra.mxu0 0
        %3151 = vmatprep.subr.bf16.mxu0 0
        %3152 = vmatpush1.bf16.msra.mxu0 0
        %3153 = vmatprep.subr.bf16.mxu0 0
        %3154 = vmatpush1.bf16.msra.mxu0 0
        %3155 = vmatprep.subr.bf16.mxu0 0
        %3156 = vmatpush1.bf16.msra.mxu0 0
        %3157 = vmatprep.subr.bf16.mxu0 0
        %3158 = vmatpush1.bf16.msra.mxu0 %v1769
        %3159 = vmatprep.subr.bf16.mxu0 0
        %3160 = vmatpush1.bf16.msra.mxu0 %v1768
        %3161 = vmatprep.subr.bf16.mxu0 0
        %3162 = vmatpush2.bf16.msra.mxu0 0
        %3163 = vmatprep.subr.bf16.mxu0 0
        %3164 = vmatpush2.bf16.msra.mxu0 0
        %3165 = vmatprep.subr.bf16.mxu0 0
        %3166 = vmatpush2.bf16.msra.mxu0 0
        %3167 = vmatprep.subr.bf16.mxu0 0
        %3168 = vmatpush2.bf16.msra.mxu0 0
        %3169 = vmatprep.subr.bf16.mxu0 0
        %3170 = vmatpush2.bf16.msra.mxu0 0
        %3171 = vmatprep.subr.bf16.mxu0 0
        %3172 = vmatpush2.bf16.msra.mxu0 0
        %3173 = vmatprep.subr.bf16.mxu0 0
        %3174 = vmatpush2.bf16.msra.mxu0 0
        %3175 = vmatprep.subr.bf16.mxu0 0
        %3176 = vmatpush2.bf16.msra.mxu0 0
        %3177 = vmatprep.mubr.bf16.mxu0 0
        %3178 = vmatmul.mubr.bf16.gmra.mxu0 %v2323
        %v3179 = vpop.f32.mrf.mxu0
        %v3180 = vadd.f32 %v1758, %v3179
        %v3181 = vpop.f32.mrf.mxu0
        %v3182 = vpop.f32.mrf.mxu0
        %v3183 = vpop.f32.mrf.mxu0
        %3184 = vdwg.mxu0
        %v3185 = vpack.c.bf16 %v3180, %v3180
        %3186 = vmatprep.subr.bf16.mxu0 0
        %3187 = vmatpush1.bf16.msra.mxu0 0
        %3188 = vmatprep.subr.bf16.mxu0 0
        %3189 = vmatpush1.bf16.msra.mxu0 0
        %3190 = vmatprep.subr.bf16.mxu0 0
        %3191 = vmatpush1.bf16.msra.mxu0 0
        %3192 = vmatprep.subr.bf16.mxu0 0
        %3193 = vmatpush1.bf16.msra.mxu0 0
        %3194 = vmatprep.subr.bf16.mxu0 0
        %3195 = vmatpush1.bf16.msra.mxu0 0
        %3196 = vmatprep.subr.bf16.mxu0 0
        %3197 = vmatpush1.bf16.msra.mxu0 0
        %3198 = vmatprep.subr.bf16.mxu0 0
        %3199 = vmatpush1.bf16.msra.mxu0 %v1835
        %3200 = vmatprep.subr.bf16.mxu0 0
        %3201 = vmatpush1.bf16.msra.mxu0 %v1834
        %3202 = vmatprep.subr.bf16.mxu0 0
        %3203 = vmatpush2.bf16.msra.mxu0 0
        %3204 = vmatprep.subr.bf16.mxu0 0
        %3205 = vmatpush2.bf16.msra.mxu0 0
        %3206 = vmatprep.subr.bf16.mxu0 0
        %3207 = vmatpush2.bf16.msra.mxu0 0
        %3208 = vmatprep.subr.bf16.mxu0 0
        %3209 = vmatpush2.bf16.msra.mxu0 0
        %3210 = vmatprep.subr.bf16.mxu0 0
        %3211 = vmatpush2.bf16.msra.mxu0 0
        %3212 = vmatprep.subr.bf16.mxu0 0
        %3213 = vmatpush2.bf16.msra.mxu0 0
        %3214 = vmatprep.subr.bf16.mxu0 0
        %3215 = vmatpush2.bf16.msra.mxu0 0
        %3216 = vmatprep.subr.bf16.mxu0 0
        %3217 = vmatpush2.bf16.msra.mxu0 0
        %3218 = vmatprep.mubr.bf16.mxu0 0
        %3219 = vmatmul.mubr.bf16.gmra.mxu0 %v2323
        %v3220 = vpop.f32.mrf.mxu0
        %v3221 = vadd.f32 %v1824, %v3220
        %v3222 = vpop.f32.mrf.mxu0
        %v3223 = vpop.f32.mrf.mxu0
        %v3224 = vpop.f32.mrf.mxu0
        %3225 = vdwg.mxu0
        %v3226 = vpack.c.bf16 %v3221, %v3221
        %3227 = vmatprep.subr.bf16.mxu0 0
        %3228 = vmatpush1.bf16.msra.mxu0 0
        %3229 = vmatprep.subr.bf16.mxu0 0
        %3230 = vmatpush1.bf16.msra.mxu0 0
        %3231 = vmatprep.subr.bf16.mxu0 0
        %3232 = vmatpush1.bf16.msra.mxu0 0
        %3233 = vmatprep.subr.bf16.mxu0 0
        %3234 = vmatpush1.bf16.msra.mxu0 0
        %3235 = vmatprep.subr.bf16.mxu0 0
        %3236 = vmatpush1.bf16.msra.mxu0 0
        %3237 = vmatprep.subr.bf16.mxu0 0
        %3238 = vmatpush1.bf16.msra.mxu0 0
        %3239 = vmatprep.subr.bf16.mxu0 0
        %3240 = vmatpush1.bf16.msra.mxu0 %v1901
        %3241 = vmatprep.subr.bf16.mxu0 0
        %3242 = vmatpush1.bf16.msra.mxu0 %v1900
        %3243 = vmatprep.subr.bf16.mxu0 0
        %3244 = vmatpush2.bf16.msra.mxu0 0
        %3245 = vmatprep.subr.bf16.mxu0 0
        %3246 = vmatpush2.bf16.msra.mxu0 0
        %3247 = vmatprep.subr.bf16.mxu0 0
        %3248 = vmatpush2.bf16.msra.mxu0 0
        %3249 = vmatprep.subr.bf16.mxu0 0
        %3250 = vmatpush2.bf16.msra.mxu0 0
        %3251 = vmatprep.subr.bf16.mxu0 0
        %3252 = vmatpush2.bf16.msra.mxu0 0
        %3253 = vmatprep.subr.bf16.mxu0 0
        %3254 = vmatpush2.bf16.msra.mxu0 0
        %3255 = vmatprep.subr.bf16.mxu0 0
        %3256 = vmatpush2.bf16.msra.mxu0 0
        %3257 = vmatprep.subr.bf16.mxu0 0
        %3258 = vmatpush2.bf16.msra.mxu0 0
        %3259 = vmatprep.mubr.bf16.mxu0 0
        %3260 = vmatmul.mubr.bf16.gmra.mxu0 %v2323
        %v3261 = vpop.f32.mrf.mxu0
        %v3262 = vadd.f32 %v1890, %v3261
        %v3263 = vpop.f32.mrf.mxu0
        %v3264 = vpop.f32.mrf.mxu0
        %v3265 = vpop.f32.mrf.mxu0
        %3266 = vdwg.mxu0
        %v3267 = vpack.c.bf16 %v3262, %v3262
        %v3269 = vsel %vm878, %v3185, 0
        %v3272 = vsel %vm878, %v3226, 0
        %3274 = vmatprep.subr.bf16.mxu0 0
        %3275 = vmatpush1.bf16.xpose.msra.mxu0 0
        %3276 = vmatprep.subr.bf16.mxu0 0
        %3277 = vmatpush1.bf16.xpose.msra.mxu0 0
        %3278 = vmatprep.subr.bf16.mxu0 0
        %3279 = vmatpush1.bf16.xpose.msra.mxu0 0
        %3280 = vmatprep.subr.bf16.mxu0 0
        %3281 = vmatpush1.bf16.xpose.msra.mxu0 0
        %3282 = vmatprep.subr.bf16.mxu0 0
        %3283 = vmatpush1.bf16.xpose.msra.mxu0 0
        %3284 = vmatprep.subr.bf16.mxu0 0
        %3285 = vmatpush1.bf16.xpose.msra.mxu0 0
        %3286 = vmatprep.subr.bf16.mxu0 0
        %3287 = vmatpush1.bf16.xpose.msra.mxu0 0
        %3288 = vmatprep.subr.bf16.mxu0 0
        %3289 = vmatpush1.bf16.xpose.msra.mxu0 %v3272
        %3290 = vmatprep.subr.bf16.mxu0 0
        %3291 = vmatpush2.bf16.xpose.msra.mxu0 0
        %3292 = vmatprep.subr.bf16.mxu0 0
        %3293 = vmatpush2.bf16.xpose.msra.mxu0 0
        %3294 = vmatprep.subr.bf16.mxu0 0
        %3295 = vmatpush2.bf16.xpose.msra.mxu0 0
        %3296 = vmatprep.subr.bf16.mxu0 0
        %3297 = vmatpush2.bf16.xpose.msra.mxu0 0
        %3298 = vmatprep.subr.bf16.mxu0 0
        %3299 = vmatpush2.bf16.xpose.msra.mxu0 0
        %3300 = vmatprep.subr.bf16.mxu0 0
        %3301 = vmatpush2.bf16.xpose.msra.mxu0 0
        %3302 = vmatprep.subr.bf16.mxu0 0
        %3303 = vmatpush2.bf16.xpose.msra.mxu0 0
        %3304 = vmatprep.subr.bf16.mxu0 0
        %3305 = vmatpush2.bf16.xpose.msra.mxu0 0
        %3306 = vmatprep.mubr.bf16.mxu0 0
        %3307 = vmatmul.mubr.bf16.gmra.mxu0 %v3269
        %v3308 = vpop.f32.mrf.mxu0
        %v3309 = vadd.f32 0.0, %v3308
        %v3310 = vpop.f32.mrf.mxu0
        %v3311 = vpop.f32.mrf.mxu0
        %v3312 = vpop.f32.mrf.mxu0
        %3313 = vdwg.mxu0
        %v3314 = vmul.f32 %v3309, 0.35355338
        %v3315 = vadd.f32 %v3314, %v930
        %v3316 = vsel %vm878, %v3315, -inf
        %3317 = vmax.xlane.f32.xlu0 %v3316
        %v3318 = vpop.xlane.xlu0 %3317
        %v3319 = vsub.f32 %v3315, %v3318
        %v3320 = vmul.f32 %v3319, 1.442695
        %v3321 = vpow.pop %v3320
        %v3322 = vsel %vm878, %v3321, 0.0
        %3323 = vadd.xlane.f32.xlu0 %v3322
        %v3324 = vpop.xlane.xlu0 %3323
        %v3325 = vpack.c.bf16 %v3321, %v3321
        %v3327 = vsel %vm878, %v3325, 0
        %v3330 = vsel %vm946, %v3267, 0
        %3332 = vmatprep.subr.bf16.mxu0 0
        %3333 = vmatpush1.bf16.msra.mxu0 0
        %3334 = vmatprep.subr.bf16.mxu0 0
        %3335 = vmatpush1.bf16.msra.mxu0 0
        %3336 = vmatprep.subr.bf16.mxu0 0
        %3337 = vmatpush1.bf16.msra.mxu0 0
        %3338 = vmatprep.subr.bf16.mxu0 0
        %3339 = vmatpush1.bf16.msra.mxu0 0
        %3340 = vmatprep.subr.bf16.mxu0 0
        %3341 = vmatpush1.bf16.msra.mxu0 0
        %3342 = vmatprep.subr.bf16.mxu0 0
        %3343 = vmatpush1.bf16.msra.mxu0 0
        %3344 = vmatprep.subr.bf16.mxu0 0
        %3345 = vmatpush1.bf16.msra.mxu0 0
        %3346 = vmatprep.subr.bf16.mxu0 0
        %3347 = vmatpush1.bf16.msra.mxu0 %v3330
        %3348 = vmatprep.subr.bf16.mxu0 0
        %3349 = vmatpush2.bf16.msra.mxu0 0
        %3350 = vmatprep.subr.bf16.mxu0 0
        %3351 = vmatpush2.bf16.msra.mxu0 0
        %3352 = vmatprep.subr.bf16.mxu0 0
        %3353 = vmatpush2.bf16.msra.mxu0 0
        %3354 = vmatprep.subr.bf16.mxu0 0
        %3355 = vmatpush2.bf16.msra.mxu0 0
        %3356 = vmatprep.subr.bf16.mxu0 0
        %3357 = vmatpush2.bf16.msra.mxu0 0
        %3358 = vmatprep.subr.bf16.mxu0 0
        %3359 = vmatpush2.bf16.msra.mxu0 0
        %3360 = vmatprep.subr.bf16.mxu0 0
        %3361 = vmatpush2.bf16.msra.mxu0 0
        %3362 = vmatprep.subr.bf16.mxu0 0
        %3363 = vmatpush2.bf16.msra.mxu0 0
        %3364 = vmatprep.mubr.bf16.mxu0 0
        %3365 = vmatmul.mubr.bf16.gmra.mxu0 %v3327
        %v3366 = vpop.f32.mrf.mxu0
        %v3367 = vadd.f32 0.0, %v3366
        %v3368 = vpop.f32.mrf.mxu0
        %v3369 = vpop.f32.mrf.mxu0
        %v3370 = vpop.f32.mrf.mxu0
        %3371 = vdwg.mxu0
        %v3372 = vrcp.pop %v3324
        %v3373 = vmul.f32 %v3367, %v3372
        %v3374 = vpack.c.bf16 %v3373, %v3373
        %v3376 = vsel %vm878, %v3374, 0
        %3378 = vmatprep.subr.bf16.mxu0 0
        %3379 = vmatpush1.bf16.msra.mxu0 0
        %3380 = vmatprep.subr.bf16.mxu0 0
        %3381 = vmatpush1.bf16.msra.mxu0 0
        %3382 = vmatprep.subr.bf16.mxu0 0
        %3383 = vmatpush1.bf16.msra.mxu0 0
        %3384 = vmatprep.subr.bf16.mxu0 0
        %3385 = vmatpush1.bf16.msra.mxu0 0
        %3386 = vmatprep.subr.bf16.mxu0 0
        %3387 = vmatpush1.bf16.msra.mxu0 0
        %3388 = vmatprep.subr.bf16.mxu0 0
        %3389 = vmatpush1.bf16.msra.mxu0 0
        %3390 = vmatprep.subr.bf16.mxu0 0
        %3391 = vmatpush1.bf16.msra.mxu0 0
        %3392 = vmatprep.subr.bf16.mxu0 0
        %3393 = vmatpush1.bf16.msra.mxu0 %v2058
        %3394 = vmatprep.subr.bf16.mxu0 0
        %3395 = vmatpush2.bf16.msra.mxu0 0
        %3396 = vmatprep.subr.bf16.mxu0 0
        %3397 = vmatpush2.bf16.msra.mxu0 0
        %3398 = vmatprep.subr.bf16.mxu0 0
        %3399 = vmatpush2.bf16.msra.mxu0 0
        %3400 = vmatprep.subr.bf16.mxu0 0
        %3401 = vmatpush2.bf16.msra.mxu0 0
        %3402 = vmatprep.subr.bf16.mxu0 0
        %3403 = vmatpush2.bf16.msra.mxu0 0
        %3404 = vmatprep.subr.bf16.mxu0 0
        %3405 = vmatpush2.bf16.msra.mxu0 0
        %3406 = vmatprep.subr.bf16.mxu0 0
        %3407 = vmatpush2.bf16.msra.mxu0 0
        %3408 = vmatprep.subr.bf16.mxu0 0
        %3409 = vmatpush2.bf16.msra.mxu0 0
        %3410 = vmatprep.mubr.bf16.mxu0 0
        %3411 = vmatmul.mubr.bf16.gmra.mxu0 %v3376
        %v3412 = vpop.f32.mrf.mxu0
        %v3413 = vadd.f32 0.0, %v3412
        %v3414 = vpop.f32.mrf.mxu0
        %v3415 = vpop.f32.mrf.mxu0
        %v3416 = vpop.f32.mrf.mxu0
        %3417 = vdwg.mxu0
        %v3418 = vadd.f32 %v3144, %v3413
        %v3419 = vadd.f32 %v2298, %v3418
        %v3420 = vadd.f32 %v3419, %v2107
        %v3421 = vsel %vm646, %v3420, 0.0
        %3422 = vadd.xlane.f32.xlu0 %v3421
        %v3423 = vpop.xlane.xlu0 %3422
        %v3424 = vmul.f32 %v3423, %v650
        %v3425 = vsub.f32 %v3420, %v3424
        %v3426 = vmul.f32 %v3425, %v3425
        %v3427 = vsel %vm646, %v3426, 0.0
        %3428 = vadd.xlane.f32.xlu0 %v3427
        %v3429 = vpop.xlane.xlu0 %3428
        %v3430 = vmul.f32 %v3429, 0.032258064
        %v3431 = vmul.f32 %v2126, %v3425
        %v3432 = vrsqrt.pop %v3430
        %v3433 = vmul.f32 %v3430, %v3432
        %vm3434 = vcmp.eq.f32.partialorder %v3430, inf
        %v3435 = vsel %vm3434, %v3430, %v3433
        %vm3436 = vcmp.eq.f32.partialorder %v3430, 0.0
        %v3437 = vand.u32 %v3430, 2147483648
        %v3438 = vsel %vm3436, %v3437, %v3435
        %v3439 = vadd.f32 %v3438, 1e-06
        %v3440 = vrcp.pop %v3439
        %v3441 = vmul.f32 %v3431, %v3440
        %v3442 = vadd.f32 %v3441, %v2143
        %v3443 = vpack.c.bf16 %v3442, %v3442
        %v3445 = vsel %vm646, %v3443, 0
        %3447 = vmatprep.subr.bf16.mxu0 0
        %3448 = vmatpush1.bf16.msra.mxu0 0
        %3449 = vmatprep.subr.bf16.mxu0 0
        %3450 = vmatpush1.bf16.msra.mxu0 0
        %3451 = vmatprep.subr.bf16.mxu0 0
        %3452 = vmatpush1.bf16.msra.mxu0 0
        %3453 = vmatprep.subr.bf16.mxu0 0
        %3454 = vmatpush1.bf16.msra.mxu0 0
        %3455 = vmatprep.subr.bf16.mxu0 0
        %3456 = vmatpush1.bf16.msra.mxu0 0
        %3457 = vmatprep.subr.bf16.mxu0 0
        %3458 = vmatpush1.bf16.msra.mxu0 0
        %3459 = vmatprep.subr.bf16.mxu0 0
        %3460 = vmatpush1.bf16.msra.mxu0 %v2167
        %3461 = vmatprep.subr.bf16.mxu0 0
        %3462 = vmatpush1.bf16.msra.mxu0 %v2166
        %3463 = vmatprep.subr.bf16.mxu0 0
        %3464 = vmatpush2.bf16.msra.mxu0 0
        %3465 = vmatprep.subr.bf16.mxu0 0
        %3466 = vmatpush2.bf16.msra.mxu0 0
        %3467 = vmatprep.subr.bf16.mxu0 0
        %3468 = vmatpush2.bf16.msra.mxu0 0
        %3469 = vmatprep.subr.bf16.mxu0 0
        %3470 = vmatpush2.bf16.msra.mxu0 0
        %3471 = vmatprep.subr.bf16.mxu0 0
        %3472 = vmatpush2.bf16.msra.mxu0 0
        %3473 = vmatprep.subr.bf16.mxu0 0
        %3474 = vmatpush2.bf16.msra.mxu0 0
        %3475 = vmatprep.subr.bf16.mxu0 0
        %3476 = vmatpush2.bf16.msra.mxu0 0
        %3477 = vmatprep.subr.bf16.mxu0 0
        %3478 = vmatpush2.bf16.msra.mxu0 0
        %3479 = vmatprep.mubr.bf16.mxu0 0
        %3480 = vmatmul.mubr.bf16.gmra.mxu0 %v3445
        %v3481 = vpop.f32.mrf.mxu0
        %v3482 = vadd.f32 %v2156, %v3481
        %v3483 = vpop.f32.mrf.mxu0
        %v3484 = vpop.f32.mrf.mxu0
        %v3485 = vpop.f32.mrf.mxu0
        %3486 = vdwg.mxu0
        %v3487 = vmax.f32 %v3482, 0.0
        %v3488 = vpack.c.bf16 %v3487, %v3487
        %v3490 = vsel %vm2254, %v3488, 0
        %3492 = vmatprep.subr.bf16.mxu0 0
        %3493 = vmatpush1.bf16.msra.mxu0 0
        %3494 = vmatprep.subr.bf16.mxu0 0
        %3495 = vmatpush1.bf16.msra.mxu0 0
        %3496 = vmatprep.subr.bf16.mxu0 0
        %3497 = vmatpush1.bf16.msra.mxu0 0
        %3498 = vmatprep.subr.bf16.mxu0 0
        %3499 = vmatpush1.bf16.msra.mxu0 0
        %3500 = vmatprep.subr.bf16.mxu0 0
        %3501 = vmatpush1.bf16.msra.mxu0 %v2249
        %3502 = vmatprep.subr.bf16.mxu0 0
        %3503 = vmatpush1.bf16.msra.mxu0 %v2248
        %3504 = vmatprep.subr.bf16.mxu0 0
        %3505 = vmatpush1.bf16.msra.mxu0 %v2247
        %3506 = vmatprep.subr.bf16.mxu0 0
        %3507 = vmatpush1.bf16.msra.mxu0 %v2246
        %3508 = vmatprep.subr.bf16.mxu0 0
        %3509 = vmatpush2.bf16.msra.mxu0 0
        %3510 = vmatprep.subr.bf16.mxu0 0
        %3511 = vmatpush2.bf16.msra.mxu0 0
        %3512 = vmatprep.subr.bf16.mxu0 0
        %3513 = vmatpush2.bf16.msra.mxu0 0
        %3514 = vmatprep.subr.bf16.mxu0 0
        %3515 = vmatpush2.bf16.msra.mxu0 0
        %3516 = vmatprep.subr.bf16.mxu0 0
        %3517 = vmatpush2.bf16.msra.mxu0 0
        %3518 = vmatprep.subr.bf16.mxu0 0
        %3519 = vmatpush2.bf16.msra.mxu0 0
        %3520 = vmatprep.subr.bf16.mxu0 0
        %3521 = vmatpush2.bf16.msra.mxu0 0
        %3522 = vmatprep.subr.bf16.mxu0 0
        %3523 = vmatpush2.bf16.msra.mxu0 0
        %3524 = vmatprep.mubr.bf16.mxu0 0
        %3525 = vmatmul.mubr.bf16.gmra.mxu0 %v3490
        %v3526 = vpop.f32.mrf.mxu0
        %v3527 = vadd.f32 %v2228, %v3526
        %v3528 = vpop.f32.mrf.mxu0
        %v3529 = vpop.f32.mrf.mxu0
        %v3530 = vpop.f32.mrf.mxu0
        %3531 = vdwg.mxu0
        %v3532 = vadd.f32 %v3420, %v3527
        %v3533 = vld [vmem:[%s18] sm:$0x1]
        %v3534 = vld [vmem:[%s19] sm:$0x1]
        %v3535 = vsel %vm646, %v3532, 0.0
        %3536 = vadd.xlane.f32.xlu0 %v3535
        %v3537 = vpop.xlane.xlu0 %3536
        %v3538 = vmul.f32 %v3537, %v650
        %v3539 = vsub.f32 %v3532, %v3538
        %v3540 = vmul.f32 %v3539, %v3539
        %v3541 = vsel %vm646, %v3540, 0.0
        %3542 = vadd.xlane.f32.xlu0 %v3541
        %v3543 = vpop.xlane.xlu0 %3542
        %v3544 = vmul.f32 %v3543, 0.032258064
        %v3546 = vlaneseq
        %v3547 = vshrl.u32 %v3546, 7
        %v3548 = vsub.s32 0, %v3547
        %v3549 = vrot.slane %v3533, %v3548
        %v3551 = vmul.f32 %v3549, %v3539
        %v3552 = vrsqrt.pop %v3544
        %v3553 = vmul.f32 %v3544, %v3552
        %vm3554 = vcmp.eq.f32.partialorder %v3544, inf
        %v3555 = vsel %vm3554, %v3544, %v3553
        %vm3556 = vcmp.eq.f32.partialorder %v3544, 0.0
        %v3557 = vand.u32 %v3544, 2147483648
        %v3558 = vsel %vm3556, %v3557, %v3555
        %v3559 = vadd.f32 %v3558, 1e-06
        %v3560 = vrcp.pop %v3559
        %v3561 = vmul.f32 %v3551, %v3560
        %v3563 = vlaneseq
        %v3564 = vshrl.u32 %v3563, 7
        %v3565 = vsub.s32 0, %v3564
        %v3566 = vrot.slane %v3534, %v3565
        %v3568 = vadd.f32 %v3561, %v3566
        %3569 = vst.msk [vmem:[%s631] sm:$0xff] %vm646, %v3568
        %s3570 = sand.u32 %s472, 1
        %s3571 = scalar_lea.sflag [#allocation3], %s3570
        %s3572 = sand.u32 %s472, 1
        %s3573 = smul.addr %s3572, 8
        %s3574 = scalar_lea.vmem [#allocation2], %s3573
        // Predicated region
        $region101: #{encoder_forward.1} parent=99 // pred_check
          %p3575 = pneg %p482
        $region102: #{encoder_forward.1} parent=99 // pred_check_branch
          %3577 = sbr.rel (%p3575) target = $region104
        $region103: #{encoder_forward.1} parent=99 // pred_region
          %s3579 = ssub.s32 128, 128
          %3580 = vsyncadd %s3571, %s3579
          %s3581 = smul.addr %s34, 128
          %s3582 = scalar_lea.hbm %s20, %s3581
          %s3584 = sshll.u32 %s3574, 4
          %s3585 = int_to_ptr.vmem [resolvable:$true] %s3584
          %3587 = dma.vmem_to_hbm [thread:$0]  %s3585, 128, %s3582, %s3571
        $region104: #{encoder_forward.1} parent=99 // pred_fallthru
          _
      $region100: #{encoder_forward.1} parent=5 // pred_fallthru
        _
      %p3588 = scmp.le.s32.totalorder 2, %s29
      // Predicated region
      $region105: #{encoder_forward.1} parent=5 // pred_check
        %p3589 = pneg %p3588
      $region106: #{encoder_forward.1} parent=5 // pred_check_branch
        %3591 = sbr.rel (%p3589) target = $region108
      $region107: #{encoder_forward.1} parent=5 // pred_region
        %s3592 = ssub.s32 %s29, 2
        // Predicated region
        $region109: #{encoder_forward.1} parent=107 // pred_check
          %p3593 = pneg %p488
        $region110: #{encoder_forward.1} parent=107 // pred_check_branch
          %3595 = sbr.rel (%p3593) target = $region112
        $region111: #{encoder_forward.1} parent=107 // pred_region
          %s3596 = sand.u32 %s473, 1
          %s3597 = scalar_lea.sflag [#allocation3], %s3596
          %s3598 = sand.u32 %s473, 1
          %s3599 = smul.addr %s3598, 8
          %s3600 = scalar_lea.vmem [#allocation2], %s3599
          %3601 = dma.done %s3597, 128
        $region112: #{encoder_forward.1} parent=107 // pred_fallthru
          _
      $region108: #{encoder_forward.1} parent=5 // pred_fallthru
        _
    $region6: #{encoder_forward.1} parent=1 // loop_footer
      %s33 = sadd.s32 1, %s29
    $region7: #{encoder_forward.1} parent=1 // loop_footer_branch
      %28 = sbr.rel target = $region3
    $region8: #{encoder_forward.1} parent=1 // loop_exit
      _
    %3602 = vsyncpa [#allocation3], 1
    %s3603 = scalar_lea.sflag [#allocation3], 1
    %3604 = vsyncpa %s3603, 1

</llo_original>
